<compile_context>
chip_gen: v5e
topology: v5e:2x2
jax: 0.10.0
libtpu: 0.0.40
codegen_flags: <defaults>
</compile_context>

<pallas_src>
import jax
import jax.numpy as jnp
from jax.experimental import pallas as pl
from jax.experimental.pallas import tpu as pltpu


# ----------------------------------------------------------------------------
# Pallas kernels
# ----------------------------------------------------------------------------
def _matmul_bias_relu_kernel(a_ref, b_ref, bias_ref, o_ref, acc_ref):
    # a: (tm, tk) bf16, b: (tk, tn) bf16, bias: (1, tn) f32, o/acc: (tm, tn) f32
    @pl.when(pl.program_id(2) == 0)
    def _init():
        acc_ref[...] = jnp.zeros_like(acc_ref)

    acc_ref[...] += jnp.dot(a_ref[...], b_ref[...],
                            preferred_element_type=jnp.float32)

    @pl.when(pl.program_id(2) == pl.num_programs(2) - 1)
    def _finalize():
        o_ref[...] = jnp.maximum(acc_ref[...] + bias_ref[...], 0.0)


def _attn_head_kernel(feat_ref, wa_ref, ba_ref, wc_ref, bc_ref, o_ref):
    # feats: (S, 256) f32.  N=1 matvecs done on the VPU/XLU (multiply + lane
    # reduction) instead of wasting the MXU on single-lane outputs.
    feats = feat_ref[...]
    # attention logits: (S, 1) = sum_d feats * w_att + b_att
    logits = jnp.sum(feats * wa_ref[...], axis=-1, keepdims=True) + ba_ref[...]
    # numerically stable softmax over the slice axis (dim 0)
    m = jnp.max(logits, axis=0, keepdims=True)
    e = jnp.exp(logits - m)
    a = e / jnp.sum(e, axis=0, keepdims=True)
    # attention-weighted sum over slices -> (1, 256)
    pooled = jnp.sum(a * feats, axis=0, keepdims=True)
    # classifier: (1, 1)
    o_ref[...] = jnp.sum(pooled * wc_ref[...], axis=-1, keepdims=True) + bc_ref[...]


# ----------------------------------------------------------------------------
# Pallas wrappers
# ----------------------------------------------------------------------------
def _round_up(x, m):
    return (x + m - 1) // m * m


def _pad2d(x, rows, cols):
    r, c = x.shape
    if r == rows and c == cols:
        return x
    return jnp.pad(x, ((0, rows - r), (0, cols - c)))


def matmul_bias_relu(a, b, bias, *, tm=256, tk=256):
    """relu(a @ b + bias) via a tiled, pipelined Pallas GEMM (bf16 MXU, f32 acc)."""
    m, k = a.shape
    k2, n = b.shape
    assert k == k2

    # Lane-dense, 128-aligned N; pick tn that divides the padded N.
    n_p = _round_up(n, 128)
    tn = 256 if n_p % 256 == 0 else 128
    # M tiles are multiples of 8 sublanes; don't over-pad tiny M.
    tm_eff = min(tm, _round_up(m, 8))
    m_p = _round_up(m, tm_eff)
    k_p = _round_up(k, tk)

    a_p = _pad2d(a, m_p, k_p).astype(jnp.bfloat16)
    b_p = _pad2d(b, k_p, n_p).astype(jnp.bfloat16)
    bias_p = jnp.pad(bias.astype(jnp.float32), (0, n_p - n)).reshape(1, n_p)

    grid = (m_p // tm_eff, n_p // tn, k_p // tk)

    # VMEM budget: double-buffered bf16 A/B tiles + f32 out (double) + f32 acc.
    tile_bytes = (2 * (tm_eff * tk + tk * tn) * 2
                  + 3 * tm_eff * tn * 4 + 2 * tn * 4)
    vmem_limit = int(min(max(2 * tile_bytes, 16 << 20), 48 << 20))

    cost = pl.CostEstimate(
        flops=2 * m_p * n_p * k_p,
        transcendentals=0,
        bytes_accessed=(m_p * k_p + k_p * n_p) * 2 + m_p * n_p * 4,
    )

    out = pl.pallas_call(
        _matmul_bias_relu_kernel,
        out_shape=jax.ShapeDtypeStruct((m_p, n_p), jnp.float32),
        grid_spec=pltpu.PrefetchScalarGridSpec(
            num_scalar_prefetch=0,
            grid=grid,
            in_specs=[
                pl.BlockSpec((tm_eff, tk), lambda i, j, kk: (i, kk)),
                pl.BlockSpec((tk, tn), lambda i, j, kk: (kk, j)),
                pl.BlockSpec((1, tn), lambda i, j, kk: (0, j)),
            ],
            out_specs=pl.BlockSpec((tm_eff, tn), lambda i, j, kk: (i, j)),
            scratch_shapes=[pltpu.VMEM((tm_eff, tn), jnp.float32)],
        ),
        compiler_params=pltpu.CompilerParams(
            dimension_semantics=("parallel", "parallel", "arbitrary"),
            vmem_limit_bytes=vmem_limit,
        ),
        cost_estimate=cost,
    )(a_p, b_p, bias_p)
    return out[:m, :n]


def attention_head(feats, att_w, att_b, cls_w, cls_b):
    s, d = feats.shape
    return pl.pallas_call(
        _attn_head_kernel,
        out_shape=jax.ShapeDtypeStruct((1, 1), jnp.float32),
        in_specs=[pl.BlockSpec(memory_space=pltpu.MemorySpace.VMEM)] * 5,
        out_specs=pl.BlockSpec(memory_space=pltpu.MemorySpace.VMEM),
    )(feats, att_w.reshape(1, d), att_b.reshape(1, 1),
      cls_w.reshape(1, d), cls_b.reshape(1, 1))


# ----------------------------------------------------------------------------
# Plain-JAX glue (data rearrangement only; all GEMM / reduction hot paths are
# inside the Pallas kernels above)
# ----------------------------------------------------------------------------
def im2col_nhwc(x, kh, kw, stride, pad):
    # x: (S, H, W, C) -> patches: (S*Ho*Wo, kh*kw*C) with (kh, kw, C) ordering,
    # matching weight.transpose(2, 3, 1, 0).reshape(kh*kw*Cin, Cout).
    # TODO(synk): im2col is still materialized in HBM; fully fusing patch
    # extraction into the GEMM (pl.ANY + strided DMA per output tile) is the
    # next step to cut the kh*kw read amplification.
    s, h, w, c = x.shape
    xp = jnp.pad(x, ((0, 0), (pad, pad), (pad, pad), (0, 0)))
    ho = (h + 2 * pad - kh) // stride + 1
    wo = (w + 2 * pad - kw) // stride + 1
    cols = []
    for i in range(kh):
        for j in range(kw):
            cols.append(xp[:, i:i + stride * ho:stride,
                           j:j + stride * wo:stride, :])
    patches = jnp.stack(cols, axis=3)                 # (s, ho, wo, kh*kw, c)
    patches = patches.reshape(s * ho * wo, kh * kw * c)
    return patches, ho, wo


def conv2d_relu(x, weight, bias, stride, pad):
    # x: (S, H, W, Cin) NHWC; weight: (Cout, Cin, kh, kw) as in PyTorch.
    cout, cin, kh, kw = weight.shape
    patches, ho, wo = im2col_nhwc(x, kh, kw, stride, pad)
    wmat = jnp.transpose(weight, (2, 3, 1, 0)).reshape(kh * kw * cin, cout)
    out = matmul_bias_relu(patches, wmat, bias)       # (S*ho*wo, Cout)
    s = x.shape[0]
    return out.reshape(s, ho, wo, cout)               # stay NHWC, no transpose


def maxpool2d(x, k=3, s=2):
    # MaxPool2d(kernel_size=3, stride=2), floor mode (VALID), NHWC.
    # TODO(synk): max-pool kept in plain JAX; conv GEMMs dominate the hot path.
    return jax.lax.reduce_window(x, -jnp.inf, jax.lax.max,
                                 (1, k, k, 1), (1, s, s, 1), 'VALID')


def mrnet_attention_forward(params, x):
    # x: (1, S, 3, H, W) -> squeeze(dim=0) -> (S, 3, H, W) -> NHWC once.
    x = jnp.squeeze(x, axis=0)
    x = jnp.transpose(x, (0, 2, 3, 1))
    # AlexNet .features
    x = conv2d_relu(x, params["conv1_w"], params["conv1_b"], stride=4, pad=2)
    x = maxpool2d(x)
    x = conv2d_relu(x, params["conv2_w"], params["conv2_b"], stride=1, pad=2)
    x = maxpool2d(x)
    x = conv2d_relu(x, params["conv3_w"], params["conv3_b"], stride=1, pad=1)
    x = conv2d_relu(x, params["conv4_w"], params["conv4_b"], stride=1, pad=1)
    x = conv2d_relu(x, params["conv5_w"], params["conv5_b"], stride=1, pad=1)
    x = maxpool2d(x)
    # AdaptiveAvgPool2d(1) + flatten -> (S, 256)
    feats = jnp.mean(x, axis=(1, 2))
    # softmax attention over slices + classifier -> (1, 1)
    return attention_head(feats, params["att_w"], params["att_b"],
                          params["cls_w"], params["cls_b"])


# ----------------------------------------------------------------------------
# Driver
# ----------------------------------------------------------------------------
if __name__ == "__main__":
    key = jax.random.PRNGKey(0)
    keys = jax.random.split(key, 16)

    def rnd(k, shape, scale=0.05):
        return scale * jax.random.normal(k, shape, dtype=jnp.float32)

    # Deterministic synthetic AlexNet-feature + head parameters.
    params = {
        "conv1_w": rnd(keys[0], (64, 3, 11, 11)),  "conv1_b": rnd(keys[1], (64,)),
        "conv2_w": rnd(keys[2], (192, 64, 5, 5)),  "conv2_b": rnd(keys[3], (192,)),
        "conv3_w": rnd(keys[4], (384, 192, 3, 3)), "conv3_b": rnd(keys[5], (384,)),
        "conv4_w": rnd(keys[6], (256, 384, 3, 3)), "conv4_b": rnd(keys[7], (256,)),
        "conv5_w": rnd(keys[8], (256, 256, 3, 3)), "conv5_b": rnd(keys[9], (256,)),
        "att_w":   rnd(keys[10], (1, 256)),        "att_b":   rnd(keys[11], (1,)),
        "cls_w":   rnd(keys[12], (1, 256)),        "cls_b":   rnd(keys[13], (1,)),
    }

    # Small but shape-valid input: (1, S=4 slices, 3, 63, 63) -> final spatial 1x1.
    S, H, W = 4, 63, 63
    x = jax.random.normal(keys[14], (1, S, 3, H, W), dtype=jnp.float32)

    out = jax.jit(mrnet_attention_forward)(params, x)
    out = jax.block_until_ready(out)
    assert out.shape == (1, 1) and out.dtype == jnp.float32
    print("KERNEL_OK")
</pallas_src>

<mosaic_0001>
module attributes {stable_mosaic.version = 11 : i64} {
  func.func @_matmul_bias_relu_kernel(%arg0: i32, %arg1: i32, %arg2: i32, %arg3: memref<256x256xbf16, #tpu.memory_space<vmem>>, %arg4: memref<256x128xbf16, #tpu.memory_space<vmem>>, %arg5: memref<1x128xf32, #tpu.memory_space<vmem>>, %arg6: memref<256x128xf32, #tpu.memory_space<vmem>>, %arg7: memref<256x128xf32, #tpu.memory_space<vmem>>) attributes {dimension_semantics = [#tpu.dimension_semantics<parallel>, #tpu.dimension_semantics<parallel>, #tpu.dimension_semantics<arbitrary>], iteration_bounds = array<i64: 4, 1, 2>, scalar_prefetch = 0 : i64, scratch_operands = 1 : i64, tpu.core_type = #tpu.core_type<tc>, window_params = [{transform_indices = @transform_0, window_bounds = array<i64: 256, 256>}, {transform_indices = @transform_1, window_bounds = array<i64: 256, 128>}, {transform_indices = @transform_2, window_bounds = array<i64: 1, 128>}, {transform_indices = @transform_3, window_bounds = array<i64: 256, 128>}]} {
    %c0_i32 = arith.constant 0 : i32
    %0 = arith.cmpi eq, %arg2, %c0_i32 : i32
    %1 = arith.extui %0 : i1 to i32
    %c0_i32_0 = arith.constant 0 : i32
    %2 = arith.cmpi ne, %1, %c0_i32_0 : i32
    scf.if %2 {
      %cst_9 = arith.constant 0.000000e+00 : f32
      %12 = vector.broadcast %cst_9 : f32 to vector<256x128xf32>
      %c0_10 = arith.constant 0 : index
      %c0_11 = arith.constant 0 : index
      %13 = vector.load %arg7[%c0_10, %c0_11] : memref<256x128xf32, #tpu.memory_space<vmem>>, vector<256x128xf32>
      tpu.vector_store %arg7[%c0_10, %c0_11], %12 {strides = array<i32>} : memref<256x128xf32, #tpu.memory_space<vmem>>, vector<256x128xf32>,
    } else {
    }
    %c0 = arith.constant 0 : index
    %c0_1 = arith.constant 0 : index
    %3 = vector.load %arg7[%c0, %c0_1] : memref<256x128xf32, #tpu.memory_space<vmem>>, vector<256x128xf32>
    %c0_2 = arith.constant 0 : index
    %c0_3 = arith.constant 0 : index
    %4 = vector.load %arg3[%c0_2, %c0_3] : memref<256x256xbf16, #tpu.memory_space<vmem>>, vector<256x256xbf16>
    %c0_4 = arith.constant 0 : index
    %c0_5 = arith.constant 0 : index
    %5 = vector.load %arg4[%c0_4, %c0_5] : memref<256x128xbf16, #tpu.memory_space<vmem>>, vector<256x128xbf16>
    %cst = arith.constant dense<0.000000e+00> : vector<256x128xf32>
    %6 = tpu.matmul %4, %5, %cst {dimension_numbers = #tpu.dot_dimension_numbers<[1], [0], [0], [1], [0, 0, 1, 1], [], []>} : vector<256x256xbf16>, vector<256x128xbf16>, vector<256x128xf32> -> vector<256x128xf32>
    %7 = arith.addf %3, %6 : vector<256x128xf32>
    %c0_6 = arith.constant 0 : index
    %c0_7 = arith.constant 0 : index
    %8 = vector.load %arg7[%c0_6, %c0_7] : memref<256x128xf32, #tpu.memory_space<vmem>>, vector<256x128xf32>
    tpu.vector_store %arg7[%c0_6, %c0_7], %7 {strides = array<i32>} : memref<256x128xf32, #tpu.memory_space<vmem>>, vector<256x128xf32>,
    %c1_i32 = arith.constant 1 : i32
    %9 = arith.cmpi eq, %arg2, %c1_i32 : i32
    %10 = arith.extui %9 : i1 to i32
    %c0_i32_8 = arith.constant 0 : i32
    %11 = arith.cmpi ne, %10, %c0_i32_8 : i32
    scf.if %11 {
      %c0_9 = arith.constant 0 : index
      %c0_10 = arith.constant 0 : index
      %12 = vector.load %arg7[%c0_9, %c0_10] : memref<256x128xf32, #tpu.memory_space<vmem>>, vector<256x128xf32>
      %c0_11 = arith.constant 0 : index
      %c0_12 = arith.constant 0 : index
      %13 = vector.load %arg5[%c0_11, %c0_12] : memref<1x128xf32, #tpu.memory_space<vmem>>, vector<1x128xf32>
      %14 = vector.broadcast %13 : vector<1x128xf32> to vector<256x128xf32>
      %15 = arith.addf %12, %14 : vector<256x128xf32>
      %cst_13 = arith.constant 0.000000e+00 : f32
      %16 = vector.broadcast %cst_13 : f32 to vector<256x128xf32>
      %17 = arith.maximumf %15, %16 : vector<256x128xf32>
      %c0_14 = arith.constant 0 : index
      %c0_15 = arith.constant 0 : index
      %18 = vector.load %arg6[%c0_14, %c0_15] : memref<256x128xf32, #tpu.memory_space<vmem>>, vector<256x128xf32>
      tpu.vector_store %arg6[%c0_14, %c0_15], %17 {strides = array<i32>} : memref<256x128xf32, #tpu.memory_space<vmem>>, vector<256x128xf32>,
    } else {
    }
    return
  }
  func.func @transform_0(%arg0: i32, %arg1: i32, %arg2: i32) -> (i32, i32) {
    %c0_i32 = arith.constant 0 : i32
    return %arg0, %arg2 : i32, i32
  }
  func.func @transform_1(%arg0: i32, %arg1: i32, %arg2: i32) -> (i32, i32) {
    %c0_i32 = arith.constant 0 : i32
    return %arg2, %arg1 : i32, i32
  }
  func.func @transform_2(%arg0: i32, %arg1: i32, %arg2: i32) -> (i32, i32) {
    %c0_i32 = arith.constant 0 : i32
    %c0_i32_0 = arith.constant 0 : i32
    return %c0_i32, %arg1 : i32, i32
  }
  func.func @transform_3(%arg0: i32, %arg1: i32, %arg2: i32) -> (i32, i32) {
    %c0_i32 = arith.constant 0 : i32
    return %arg0, %arg1 : i32, i32
  }
}

module attributes {stable_mosaic.version = 11 : i64} {
  func.func @_matmul_bias_relu_kernel(%arg0: i32, %arg1: i32, %arg2: i32, %arg3: memref<200x256xbf16, #tpu.memory_space<vmem>>, %arg4: memref<256x256xbf16, #tpu.memory_space<vmem>>, %arg5: memref<1x256xf32, #tpu.memory_space<vmem>>, %arg6: memref<200x256xf32, #tpu.memory_space<vmem>>, %arg7: memref<200x256xf32, #tpu.memory_space<vmem>>) attributes {dimension_semantics = [#tpu.dimension_semantics<parallel>, #tpu.dimension_semantics<parallel>, #tpu.dimension_semantics<arbitrary>], iteration_bounds = array<i64: 1, 1, 7>, scalar_prefetch = 0 : i64, scratch_operands = 1 : i64, tpu.core_type = #tpu.core_type<tc>, window_params = [{transform_indices = @transform_0, window_bounds = array<i64: 200, 256>}, {transform_indices = @transform_1, window_bounds = array<i64: 256, 256>}, {transform_indices = @transform_2, window_bounds = array<i64: 1, 256>}, {transform_indices = @transform_3, window_bounds = array<i64: 200, 256>}]} {
    %c0_i32 = arith.constant 0 : i32
    %0 = arith.cmpi eq, %arg2, %c0_i32 : i32
    %1 = arith.extui %0 : i1 to i32
    %c0_i32_0 = arith.constant 0 : i32
    %2 = arith.cmpi ne, %1, %c0_i32_0 : i32
    scf.if %2 {
      %cst_9 = arith.constant 0.000000e+00 : f32
      %12 = vector.broadcast %cst_9 : f32 to vector<200x256xf32>
      %c0_10 = arith.constant 0 : index
      %c0_11 = arith.constant 0 : index
      %13 = vector.load %arg7[%c0_10, %c0_11] : memref<200x256xf32, #tpu.memory_space<vmem>>, vector<200x256xf32>
      tpu.vector_store %arg7[%c0_10, %c0_11], %12 {strides = array<i32>} : memref<200x256xf32, #tpu.memory_space<vmem>>, vector<200x256xf32>,
    } else {
    }
    %c0 = arith.constant 0 : index
    %c0_1 = arith.constant 0 : index
    %3 = vector.load %arg7[%c0, %c0_1] : memref<200x256xf32, #tpu.memory_space<vmem>>, vector<200x256xf32>
    %c0_2 = arith.constant 0 : index
    %c0_3 = arith.constant 0 : index
    %4 = vector.load %arg3[%c0_2, %c0_3] : memref<200x256xbf16, #tpu.memory_space<vmem>>, vector<200x256xbf16>
    %c0_4 = arith.constant 0 : index
    %c0_5 = arith.constant 0 : index
    %5 = vector.load %arg4[%c0_4, %c0_5] : memref<256x256xbf16, #tpu.memory_space<vmem>>, vector<256x256xbf16>
    %cst = arith.constant dense<0.000000e+00> : vector<200x256xf32>
    %6 = tpu.matmul %4, %5, %cst {dimension_numbers = #tpu.dot_dimension_numbers<[1], [0], [0], [1], [0, 0, 1, 1], [], []>} : vector<200x256xbf16>, vector<256x256xbf16>, vector<200x256xf32> -> vector<200x256xf32>
    %7 = arith.addf %3, %6 : vector<200x256xf32>
    %c0_6 = arith.constant 0 : index
    %c0_7 = arith.constant 0 : index
    %8 = vector.load %arg7[%c0_6, %c0_7] : memref<200x256xf32, #tpu.memory_space<vmem>>, vector<200x256xf32>
    tpu.vector_store %arg7[%c0_6, %c0_7], %7 {strides = array<i32>} : memref<200x256xf32, #tpu.memory_space<vmem>>, vector<200x256xf32>,
    %c6_i32 = arith.constant 6 : i32
    %9 = arith.cmpi eq, %arg2, %c6_i32 : i32
    %10 = arith.extui %9 : i1 to i32
    %c0_i32_8 = arith.constant 0 : i32
    %11 = arith.cmpi ne, %10, %c0_i32_8 : i32
    scf.if %11 {
      %c0_9 = arith.constant 0 : index
      %c0_10 = arith.constant 0 : index
      %12 = vector.load %arg7[%c0_9, %c0_10] : memref<200x256xf32, #tpu.memory_space<vmem>>, vector<200x256xf32>
      %c0_11 = arith.constant 0 : index
      %c0_12 = arith.constant 0 : index
      %13 = vector.load %arg5[%c0_11, %c0_12] : memref<1x256xf32, #tpu.memory_space<vmem>>, vector<1x256xf32>
      %14 = vector.broadcast %13 : vector<1x256xf32> to vector<200x256xf32>
      %15 = arith.addf %12, %14 : vector<200x256xf32>
      %cst_13 = arith.constant 0.000000e+00 : f32
      %16 = vector.broadcast %cst_13 : f32 to vector<200x256xf32>
      %17 = arith.maximumf %15, %16 : vector<200x256xf32>
      %c0_14 = arith.constant 0 : index
      %c0_15 = arith.constant 0 : index
      %18 = vector.load %arg6[%c0_14, %c0_15] : memref<200x256xf32, #tpu.memory_space<vmem>>, vector<200x256xf32>
      tpu.vector_store %arg6[%c0_14, %c0_15], %17 {strides = array<i32>} : memref<200x256xf32, #tpu.memory_space<vmem>>, vector<200x256xf32>,
    } else {
    }
    return
  }
  func.func @transform_0(%arg0: i32, %arg1: i32, %arg2: i32) -> (i32, i32) {
    %c0_i32 = arith.constant 0 : i32
    return %arg0, %arg2 : i32, i32
  }
  func.func @transform_1(%arg0: i32, %arg1: i32, %arg2: i32) -> (i32, i32) {
    %c0_i32 = arith.constant 0 : i32
    return %arg2, %arg1 : i32, i32
  }
  func.func @transform_2(%arg0: i32, %arg1: i32, %arg2: i32) -> (i32, i32) {
    %c0_i32 = arith.constant 0 : i32
    %c0_i32_0 = arith.constant 0 : i32
    return %c0_i32, %arg1 : i32, i32
  }
  func.func @transform_3(%arg0: i32, %arg1: i32, %arg2: i32) -> (i32, i32) {
    %c0_i32 = arith.constant 0 : i32
    return %arg0, %arg1 : i32, i32
  }
}

module attributes {stable_mosaic.version = 11 : i64} {
  func.func @_matmul_bias_relu_kernel(%arg0: i32, %arg1: i32, %arg2: i32, %arg3: memref<40x256xbf16, #tpu.memory_space<vmem>>, %arg4: memref<256x128xbf16, #tpu.memory_space<vmem>>, %arg5: memref<1x128xf32, #tpu.memory_space<vmem>>, %arg6: memref<40x128xf32, #tpu.memory_space<vmem>>, %arg7: memref<40x128xf32, #tpu.memory_space<vmem>>) attributes {dimension_semantics = [#tpu.dimension_semantics<parallel>, #tpu.dimension_semantics<parallel>, #tpu.dimension_semantics<arbitrary>], iteration_bounds = array<i64: 1, 3, 7>, scalar_prefetch = 0 : i64, scratch_operands = 1 : i64, tpu.core_type = #tpu.core_type<tc>, window_params = [{transform_indices = @transform_0, window_bounds = array<i64: 40, 256>}, {transform_indices = @transform_1, window_bounds = array<i64: 256, 128>}, {transform_indices = @transform_2, window_bounds = array<i64: 1, 128>}, {transform_indices = @transform_3, window_bounds = array<i64: 40, 128>}]} {
    %c0_i32 = arith.constant 0 : i32
    %0 = arith.cmpi eq, %arg2, %c0_i32 : i32
    %1 = arith.extui %0 : i1 to i32
    %c0_i32_0 = arith.constant 0 : i32
    %2 = arith.cmpi ne, %1, %c0_i32_0 : i32
    scf.if %2 {
      %cst_9 = arith.constant 0.000000e+00 : f32
      %12 = vector.broadcast %cst_9 : f32 to vector<40x128xf32>
      %c0_10 = arith.constant 0 : index
      %c0_11 = arith.constant 0 : index
      %13 = vector.load %arg7[%c0_10, %c0_11] : memref<40x128xf32, #tpu.memory_space<vmem>>, vector<40x128xf32>
      tpu.vector_store %arg7[%c0_10, %c0_11], %12 {strides = array<i32>} : memref<40x128xf32, #tpu.memory_space<vmem>>, vector<40x128xf32>,
    } else {
    }
    %c0 = arith.constant 0 : index
    %c0_1 = arith.constant 0 : index
    %3 = vector.load %arg7[%c0, %c0_1] : memref<40x128xf32, #tpu.memory_space<vmem>>, vector<40x128xf32>
    %c0_2 = arith.constant 0 : index
    %c0_3 = arith.constant 0 : index
    %4 = vector.load %arg3[%c0_2, %c0_3] : memref<40x256xbf16, #tpu.memory_space<vmem>>, vector<40x256xbf16>
    %c0_4 = arith.constant 0 : index
    %c0_5 = arith.constant 0 : index
    %5 = vector.load %arg4[%c0_4, %c0_5] : memref<256x128xbf16, #tpu.memory_space<vmem>>, vector<256x128xbf16>
    %cst = arith.constant dense<0.000000e+00> : vector<40x128xf32>
    %6 = tpu.matmul %4, %5, %cst {dimension_numbers = #tpu.dot_dimension_numbers<[1], [0], [0], [1], [0, 0, 1, 1], [], []>} : vector<40x256xbf16>, vector<256x128xbf16>, vector<40x128xf32> -> vector<40x128xf32>
    %7 = arith.addf %3, %6 : vector<40x128xf32>
    %c0_6 = arith.constant 0 : index
    %c0_7 = arith.constant 0 : index
    %8 = vector.load %arg7[%c0_6, %c0_7] : memref<40x128xf32, #tpu.memory_space<vmem>>, vector<40x128xf32>
    tpu.vector_store %arg7[%c0_6, %c0_7], %7 {strides = array<i32>} : memref<40x128xf32, #tpu.memory_space<vmem>>, vector<40x128xf32>,
    %c6_i32 = arith.constant 6 : i32
    %9 = arith.cmpi eq, %arg2, %c6_i32 : i32
    %10 = arith.extui %9 : i1 to i32
    %c0_i32_8 = arith.constant 0 : i32
    %11 = arith.cmpi ne, %10, %c0_i32_8 : i32
    scf.if %11 {
      %c0_9 = arith.constant 0 : index
      %c0_10 = arith.constant 0 : index
      %12 = vector.load %arg7[%c0_9, %c0_10] : memref<40x128xf32, #tpu.memory_space<vmem>>, vector<40x128xf32>
      %c0_11 = arith.constant 0 : index
      %c0_12 = arith.constant 0 : index
      %13 = vector.load %arg5[%c0_11, %c0_12] : memref<1x128xf32, #tpu.memory_space<vmem>>, vector<1x128xf32>
      %14 = vector.broadcast %13 : vector<1x128xf32> to vector<40x128xf32>
      %15 = arith.addf %12, %14 : vector<40x128xf32>
      %cst_13 = arith.constant 0.000000e+00 : f32
      %16 = vector.broadcast %cst_13 : f32 to vector<40x128xf32>
      %17 = arith.maximumf %15, %16 : vector<40x128xf32>
      %c0_14 = arith.constant 0 : index
      %c0_15 = arith.constant 0 : index
      %18 = vector.load %arg6[%c0_14, %c0_15] : memref<40x128xf32, #tpu.memory_space<vmem>>, vector<40x128xf32>
      tpu.vector_store %arg6[%c0_14, %c0_15], %17 {strides = array<i32>} : memref<40x128xf32, #tpu.memory_space<vmem>>, vector<40x128xf32>,
    } else {
    }
    return
  }
  func.func @transform_0(%arg0: i32, %arg1: i32, %arg2: i32) -> (i32, i32) {
    %c0_i32 = arith.constant 0 : i32
    return %arg0, %arg2 : i32, i32
  }
  func.func @transform_1(%arg0: i32, %arg1: i32, %arg2: i32) -> (i32, i32) {
    %c0_i32 = arith.constant 0 : i32
    return %arg2, %arg1 : i32, i32
  }
  func.func @transform_2(%arg0: i32, %arg1: i32, %arg2: i32) -> (i32, i32) {
    %c0_i32 = arith.constant 0 : i32
    %c0_i32_0 = arith.constant 0 : i32
    return %c0_i32, %arg1 : i32, i32
  }
  func.func @transform_3(%arg0: i32, %arg1: i32, %arg2: i32) -> (i32, i32) {
    %c0_i32 = arith.constant 0 : i32
    return %arg0, %arg1 : i32, i32
  }
}

module attributes {stable_mosaic.version = 11 : i64} {
  func.func @_matmul_bias_relu_kernel(%arg0: i32, %arg1: i32, %arg2: i32, %arg3: memref<40x256xbf16, #tpu.memory_space<vmem>>, %arg4: memref<256x256xbf16, #tpu.memory_space<vmem>>, %arg5: memref<1x256xf32, #tpu.memory_space<vmem>>, %arg6: memref<40x256xf32, #tpu.memory_space<vmem>>, %arg7: memref<40x256xf32, #tpu.memory_space<vmem>>) attributes {dimension_semantics = [#tpu.dimension_semantics<parallel>, #tpu.dimension_semantics<parallel>, #tpu.dimension_semantics<arbitrary>], iteration_bounds = array<i64: 1, 1, 14>, scalar_prefetch = 0 : i64, scratch_operands = 1 : i64, tpu.core_type = #tpu.core_type<tc>, window_params = [{transform_indices = @transform_0, window_bounds = array<i64: 40, 256>}, {transform_indices = @transform_1, window_bounds = array<i64: 256, 256>}, {transform_indices = @transform_2, window_bounds = array<i64: 1, 256>}, {transform_indices = @transform_3, window_bounds = array<i64: 40, 256>}]} {
    %c0_i32 = arith.constant 0 : i32
    %0 = arith.cmpi eq, %arg2, %c0_i32 : i32
    %1 = arith.extui %0 : i1 to i32
    %c0_i32_0 = arith.constant 0 : i32
    %2 = arith.cmpi ne, %1, %c0_i32_0 : i32
    scf.if %2 {
      %cst_9 = arith.constant 0.000000e+00 : f32
      %12 = vector.broadcast %cst_9 : f32 to vector<40x256xf32>
      %c0_10 = arith.constant 0 : index
      %c0_11 = arith.constant 0 : index
      %13 = vector.load %arg7[%c0_10, %c0_11] : memref<40x256xf32, #tpu.memory_space<vmem>>, vector<40x256xf32>
      tpu.vector_store %arg7[%c0_10, %c0_11], %12 {strides = array<i32>} : memref<40x256xf32, #tpu.memory_space<vmem>>, vector<40x256xf32>,
    } else {
    }
    %c0 = arith.constant 0 : index
    %c0_1 = arith.constant 0 : index
    %3 = vector.load %arg7[%c0, %c0_1] : memref<40x256xf32, #tpu.memory_space<vmem>>, vector<40x256xf32>
    %c0_2 = arith.constant 0 : index
    %c0_3 = arith.constant 0 : index
    %4 = vector.load %arg3[%c0_2, %c0_3] : memref<40x256xbf16, #tpu.memory_space<vmem>>, vector<40x256xbf16>
    %c0_4 = arith.constant 0 : index
    %c0_5 = arith.constant 0 : index
    %5 = vector.load %arg4[%c0_4, %c0_5] : memref<256x256xbf16, #tpu.memory_space<vmem>>, vector<256x256xbf16>
    %cst = arith.constant dense<0.000000e+00> : vector<40x256xf32>
    %6 = tpu.matmul %4, %5, %cst {dimension_numbers = #tpu.dot_dimension_numbers<[1], [0], [0], [1], [0, 0, 1, 1], [], []>} : vector<40x256xbf16>, vector<256x256xbf16>, vector<40x256xf32> -> vector<40x256xf32>
    %7 = arith.addf %3, %6 : vector<40x256xf32>
    %c0_6 = arith.constant 0 : index
    %c0_7 = arith.constant 0 : index
    %8 = vector.load %arg7[%c0_6, %c0_7] : memref<40x256xf32, #tpu.memory_space<vmem>>, vector<40x256xf32>
    tpu.vector_store %arg7[%c0_6, %c0_7], %7 {strides = array<i32>} : memref<40x256xf32, #tpu.memory_space<vmem>>, vector<40x256xf32>,
    %c13_i32 = arith.constant 13 : i32
    %9 = arith.cmpi eq, %arg2, %c13_i32 : i32
    %10 = arith.extui %9 : i1 to i32
    %c0_i32_8 = arith.constant 0 : i32
    %11 = arith.cmpi ne, %10, %c0_i32_8 : i32
    scf.if %11 {
      %c0_9 = arith.constant 0 : index
      %c0_10 = arith.constant 0 : index
      %12 = vector.load %arg7[%c0_9, %c0_10] : memref<40x256xf32, #tpu.memory_space<vmem>>, vector<40x256xf32>
      %c0_11 = arith.constant 0 : index
      %c0_12 = arith.constant 0 : index
      %13 = vector.load %arg5[%c0_11, %c0_12] : memref<1x256xf32, #tpu.memory_space<vmem>>, vector<1x256xf32>
      %14 = vector.broadcast %13 : vector<1x256xf32> to vector<40x256xf32>
      %15 = arith.addf %12, %14 : vector<40x256xf32>
      %cst_13 = arith.constant 0.000000e+00 : f32
      %16 = vector.broadcast %cst_13 : f32 to vector<40x256xf32>
      %17 = arith.maximumf %15, %16 : vector<40x256xf32>
      %c0_14 = arith.constant 0 : index
      %c0_15 = arith.constant 0 : index
      %18 = vector.load %arg6[%c0_14, %c0_15] : memref<40x256xf32, #tpu.memory_space<vmem>>, vector<40x256xf32>
      tpu.vector_store %arg6[%c0_14, %c0_15], %17 {strides = array<i32>} : memref<40x256xf32, #tpu.memory_space<vmem>>, vector<40x256xf32>,
    } else {
    }
    return
  }
  func.func @transform_0(%arg0: i32, %arg1: i32, %arg2: i32) -> (i32, i32) {
    %c0_i32 = arith.constant 0 : i32
    return %arg0, %arg2 : i32, i32
  }
  func.func @transform_1(%arg0: i32, %arg1: i32, %arg2: i32) -> (i32, i32) {
    %c0_i32 = arith.constant 0 : i32
    return %arg2, %arg1 : i32, i32
  }
  func.func @transform_2(%arg0: i32, %arg1: i32, %arg2: i32) -> (i32, i32) {
    %c0_i32 = arith.constant 0 : i32
    %c0_i32_0 = arith.constant 0 : i32
    return %c0_i32, %arg1 : i32, i32
  }
  func.func @transform_3(%arg0: i32, %arg1: i32, %arg2: i32) -> (i32, i32) {
    %c0_i32 = arith.constant 0 : i32
    return %arg0, %arg1 : i32, i32
  }
}

module attributes {stable_mosaic.version = 11 : i64} {
  func.func @_matmul_bias_relu_kernel(%arg0: i32, %arg1: i32, %arg2: i32, %arg3: memref<40x256xbf16, #tpu.memory_space<vmem>>, %arg4: memref<256x256xbf16, #tpu.memory_space<vmem>>, %arg5: memref<1x256xf32, #tpu.memory_space<vmem>>, %arg6: memref<40x256xf32, #tpu.memory_space<vmem>>, %arg7: memref<40x256xf32, #tpu.memory_space<vmem>>) attributes {dimension_semantics = [#tpu.dimension_semantics<parallel>, #tpu.dimension_semantics<parallel>, #tpu.dimension_semantics<arbitrary>], iteration_bounds = array<i64: 1, 1, 9>, scalar_prefetch = 0 : i64, scratch_operands = 1 : i64, tpu.core_type = #tpu.core_type<tc>, window_params = [{transform_indices = @transform_0, window_bounds = array<i64: 40, 256>}, {transform_indices = @transform_1, window_bounds = array<i64: 256, 256>}, {transform_indices = @transform_2, window_bounds = array<i64: 1, 256>}, {transform_indices = @transform_3, window_bounds = array<i64: 40, 256>}]} {
    %c0_i32 = arith.constant 0 : i32
    %0 = arith.cmpi eq, %arg2, %c0_i32 : i32
    %1 = arith.extui %0 : i1 to i32
    %c0_i32_0 = arith.constant 0 : i32
    %2 = arith.cmpi ne, %1, %c0_i32_0 : i32
    scf.if %2 {
      %cst_9 = arith.constant 0.000000e+00 : f32
      %12 = vector.broadcast %cst_9 : f32 to vector<40x256xf32>
      %c0_10 = arith.constant 0 : index
      %c0_11 = arith.constant 0 : index
      %13 = vector.load %arg7[%c0_10, %c0_11] : memref<40x256xf32, #tpu.memory_space<vmem>>, vector<40x256xf32>
      tpu.vector_store %arg7[%c0_10, %c0_11], %12 {strides = array<i32>} : memref<40x256xf32, #tpu.memory_space<vmem>>, vector<40x256xf32>,
    } else {
    }
    %c0 = arith.constant 0 : index
    %c0_1 = arith.constant 0 : index
    %3 = vector.load %arg7[%c0, %c0_1] : memref<40x256xf32, #tpu.memory_space<vmem>>, vector<40x256xf32>
    %c0_2 = arith.constant 0 : index
    %c0_3 = arith.constant 0 : index
    %4 = vector.load %arg3[%c0_2, %c0_3] : memref<40x256xbf16, #tpu.memory_space<vmem>>, vector<40x256xbf16>
    %c0_4 = arith.constant 0 : index
    %c0_5 = arith.constant 0 : index
    %5 = vector.load %arg4[%c0_4, %c0_5] : memref<256x256xbf16, #tpu.memory_space<vmem>>, vector<256x256xbf16>
    %cst = arith.constant dense<0.000000e+00> : vector<40x256xf32>
    %6 = tpu.matmul %4, %5, %cst {dimension_numbers = #tpu.dot_dimension_numbers<[1], [0], [0], [1], [0, 0, 1, 1], [], []>} : vector<40x256xbf16>, vector<256x256xbf16>, vector<40x256xf32> -> vector<40x256xf32>
    %7 = arith.addf %3, %6 : vector<40x256xf32>
    %c0_6 = arith.constant 0 : index
    %c0_7 = arith.constant 0 : index
    %8 = vector.load %arg7[%c0_6, %c0_7] : memref<40x256xf32, #tpu.memory_space<vmem>>, vector<40x256xf32>
    tpu.vector_store %arg7[%c0_6, %c0_7], %7 {strides = array<i32>} : memref<40x256xf32, #tpu.memory_space<vmem>>, vector<40x256xf32>,
    %c8_i32 = arith.constant 8 : i32
    %9 = arith.cmpi eq, %arg2, %c8_i32 : i32
    %10 = arith.extui %9 : i1 to i32
    %c0_i32_8 = arith.constant 0 : i32
    %11 = arith.cmpi ne, %10, %c0_i32_8 : i32
    scf.if %11 {
      %c0_9 = arith.constant 0 : index
      %c0_10 = arith.constant 0 : index
      %12 = vector.load %arg7[%c0_9, %c0_10] : memref<40x256xf32, #tpu.memory_space<vmem>>, vector<40x256xf32>
      %c0_11 = arith.constant 0 : index
      %c0_12 = arith.constant 0 : index
      %13 = vector.load %arg5[%c0_11, %c0_12] : memref<1x256xf32, #tpu.memory_space<vmem>>, vector<1x256xf32>
      %14 = vector.broadcast %13 : vector<1x256xf32> to vector<40x256xf32>
      %15 = arith.addf %12, %14 : vector<40x256xf32>
      %cst_13 = arith.constant 0.000000e+00 : f32
      %16 = vector.broadcast %cst_13 : f32 to vector<40x256xf32>
      %17 = arith.maximumf %15, %16 : vector<40x256xf32>
      %c0_14 = arith.constant 0 : index
      %c0_15 = arith.constant 0 : index
      %18 = vector.load %arg6[%c0_14, %c0_15] : memref<40x256xf32, #tpu.memory_space<vmem>>, vector<40x256xf32>
      tpu.vector_store %arg6[%c0_14, %c0_15], %17 {strides = array<i32>} : memref<40x256xf32, #tpu.memory_space<vmem>>, vector<40x256xf32>,
    } else {
    }
    return
  }
  func.func @transform_0(%arg0: i32, %arg1: i32, %arg2: i32) -> (i32, i32) {
    %c0_i32 = arith.constant 0 : i32
    return %arg0, %arg2 : i32, i32
  }
  func.func @transform_1(%arg0: i32, %arg1: i32, %arg2: i32) -> (i32, i32) {
    %c0_i32 = arith.constant 0 : i32
    return %arg2, %arg1 : i32, i32
  }
  func.func @transform_2(%arg0: i32, %arg1: i32, %arg2: i32) -> (i32, i32) {
    %c0_i32 = arith.constant 0 : i32
    %c0_i32_0 = arith.constant 0 : i32
    return %c0_i32, %arg1 : i32, i32
  }
  func.func @transform_3(%arg0: i32, %arg1: i32, %arg2: i32) -> (i32, i32) {
    %c0_i32 = arith.constant 0 : i32
    return %arg0, %arg1 : i32, i32
  }
}

module attributes {stable_mosaic.version = 11 : i64} {
  func.func @_attn_head_kernel(%arg0: memref<4x256xf32, #tpu.memory_space<vmem>>, %arg1: memref<1x256xf32, #tpu.memory_space<vmem>>, %arg2: memref<1x1xf32, #tpu.memory_space<vmem>>, %arg3: memref<1x256xf32, #tpu.memory_space<vmem>>, %arg4: memref<1x1xf32, #tpu.memory_space<vmem>>, %arg5: memref<1x1xf32, #tpu.memory_space<vmem>>) attributes {dimension_semantics = [], scalar_prefetch = 0 : i64, scratch_operands = 0 : i64, tpu.core_type = #tpu.core_type<tc>} {
    %c0 = arith.constant 0 : index
    %c0_0 = arith.constant 0 : index
    %0 = vector.load %arg0[%c0, %c0_0] : memref<4x256xf32, #tpu.memory_space<vmem>>, vector<4x256xf32>
    %c0_1 = arith.constant 0 : index
    %c0_2 = arith.constant 0 : index
    %1 = vector.load %arg1[%c0_1, %c0_2] : memref<1x256xf32, #tpu.memory_space<vmem>>, vector<1x256xf32>
    %2 = vector.broadcast %1 : vector<1x256xf32> to vector<4x256xf32>
    %3 = arith.mulf %0, %2 : vector<4x256xf32>
    %cst = arith.constant dense<0.000000e+00> : vector<4xf32>
    %4 = vector.multi_reduction <add>, %3, %cst [1] : vector<4x256xf32> to vector<4xf32>
    %5 = vector.shape_cast %4 : vector<4xf32> to vector<4x1xf32>
    %c0_3 = arith.constant 0 : index
    %c0_4 = arith.constant 0 : index
    %6 = vector.load %arg2[%c0_3, %c0_4] : memref<1x1xf32, #tpu.memory_space<vmem>>, vector<1x1xf32>
    %7 = vector.broadcast %6 : vector<1x1xf32> to vector<4x1xf32>
    %8 = arith.addf %5, %7 : vector<4x1xf32>
    %cst_5 = arith.constant dense<0xFF800000> : vector<1xf32>
    %9 = vector.multi_reduction <maximumf>, %8, %cst_5 [0] : vector<4x1xf32> to vector<1xf32>
    %10 = vector.shape_cast %9 : vector<1xf32> to vector<1x1xf32>
    %11 = vector.broadcast %10 : vector<1x1xf32> to vector<4x1xf32>
    %12 = arith.subf %8, %11 : vector<4x1xf32>
    %13 = math.exp %12 : vector<4x1xf32>
    %cst_6 = arith.constant dense<0.000000e+00> : vector<1xf32>
    %14 = vector.multi_reduction <add>, %13, %cst_6 [0] : vector<4x1xf32> to vector<1xf32>
    %15 = vector.shape_cast %14 : vector<1xf32> to vector<1x1xf32>
    %16 = vector.broadcast %15 : vector<1x1xf32> to vector<4x1xf32>
    %17 = arith.divf %13, %16 : vector<4x1xf32>
    %18 = vector.broadcast %17 : vector<4x1xf32> to vector<4x256xf32>
    %19 = arith.mulf %18, %0 : vector<4x256xf32>
    %cst_7 = arith.constant dense<0.000000e+00> : vector<256xf32>
    %20 = vector.multi_reduction <add>, %19, %cst_7 [0] : vector<4x256xf32> to vector<256xf32>
    %21 = vector.shape_cast %20 : vector<256xf32> to vector<1x256xf32>
    %c0_8 = arith.constant 0 : index
    %c0_9 = arith.constant 0 : index
    %22 = vector.load %arg3[%c0_8, %c0_9] : memref<1x256xf32, #tpu.memory_space<vmem>>, vector<1x256xf32>
    %23 = arith.mulf %21, %22 : vector<1x256xf32>
    %cst_10 = arith.constant dense<0.000000e+00> : vector<1xf32>
    %24 = vector.multi_reduction <add>, %23, %cst_10 [1] : vector<1x256xf32> to vector<1xf32>
    %25 = vector.shape_cast %24 : vector<1xf32> to vector<1x1xf32>
    %c0_11 = arith.constant 0 : index
    %c0_12 = arith.constant 0 : index
    %26 = vector.load %arg4[%c0_11, %c0_12] : memref<1x1xf32, #tpu.memory_space<vmem>>, vector<1x1xf32>
    %27 = arith.addf %25, %26 : vector<1x1xf32>
    %c0_13 = arith.constant 0 : index
    %c0_14 = arith.constant 0 : index
    %28 = vector.load %arg5[%c0_13, %c0_14] : memref<1x1xf32, #tpu.memory_space<vmem>>, vector<1x1xf32>
    tpu.vector_store %arg5[%c0_13, %c0_14], %27 {strides = array<i32>} : memref<1x1xf32, #tpu.memory_space<vmem>>, vector<1x1xf32>,
    return
  }
}

</mosaic_0001>

<llo_original>
// kernel: mrnet_attention_forward.6
$region0: #{mrnet_attention_forward.6}
  #allocation0 [shape = 'u32[]', space=smem, size = 0x4, offset = 0x4, fixed_abs, tag = 'smem constant byte address 0x4 - core index']
  #allocation1 [shape = 'u32[72,128]{1,0:T(1,128)}', space=vmem, size = 0x9000, scoped, tag = 'internal scratch']
  #allocation2 [shape = 'f32[256,128]{1,0:T(8,128)}', space=vmem, size = 0x20000, scoped, tag = 'scratch operand']
  %s0 = inlined_call_operand.vmem [shape: bf16[1024,512], index: 0, kind: input, shape index: {}]
  %s1 = inlined_call_operand.vmem [shape: bf16[512,128], index: 1, kind: input, shape index: {}]
  %s2 = inlined_call_operand.vmem [shape: f32[1,128], index: 2, kind: input, shape index: {}]
  %s3 = inlined_call_operand.vmem [shape: f32[1024,128], index: 3, kind: output, shape index: {}]
  %s4 = sld [smem:[#allocation0]]
  $region91: #{mrnet_attention_forward.6} parent=0
    _
  %s6 = ssub.s32 1, %s4
  %s7 = scalar_select 0, %s6, %s4
  $region1: #{mrnet_attention_forward.6} parent=0
    #allocation3 [shape = 'u8[262144]{0}', space=vmem, size = 0x40000, scoped, tag = 'input window, operand 0']
    loop: start=0, step=1, limit=10
    $region2: #{mrnet_attention_forward.6} parent=1 // loop_pre_header
      _
    $region3: #{mrnet_attention_forward.6} parent=1 // loop_header
      %s9 = sphi 0, %s13
      %p10 = scmp.ge.s32.totalorder %s9, 10
      %s16 = sphi 0, %s35
      %s17 = sphi 0, %s31
      %s18 = sphi 0, %s27
      %s19 = sphi 0, %s16
      %s20 = sphi 0, %s17
      %s21 = sphi 0, %s18
      %s22 = sphi 0, %s19
      %s23 = sphi 0, %s20
      %s24 = sphi 0, %s21
      %s40 = sphi 0, %s42
      %s43 = sphi 0, %s40
      %s44 = sphi 0, %s43
      %s60 = sphi 0, %s44
      %s68 = sphi 0, %s70
      %s71 = sphi 0, %s68
      %s72 = sphi 0, %s71
      %s88 = sphi 0, %s72
      %s94 = sphi 0, %s96
      %s97 = sphi 0, %s94
      %s98 = sphi 0, %s97
      %s114 = sphi 0, %s98
      %s122 = sphi 0, %s124
      %s125 = sphi 0, %s122
      %s126 = sphi 0, %s125
      %s142 = sphi 0, %s126
    $region4: #{mrnet_attention_forward.6} parent=1 // loop_header_branch
      %12 = sbr.rel (%p10) target = $region8
    $region5: #{mrnet_attention_forward.6} parent=1 // loop_body
      %s14 = ssub.s32 %s9, 1
      %s15 = ssub.s32 %s9, 2
      %s25 = sadd.s32 1, %s18
      %p26 = scmp.ge.s32.totalorder %s25, 2
      %s27 = scalar_select %p26, 0, %s25
      %s28 = sadd.s32 1, %s17
      %s29 = scalar_select %p26, %s28, %s17
      %p30 = scmp.ge.s32.totalorder %s29, 1
      %s31 = scalar_select %p30, 0, %s29
      %s32 = sadd.s32 1, %s16
      %s33 = scalar_select %p30, %s32, %s16
      %p34 = scmp.ge.s32.totalorder %s33, 4
      %s35 = scalar_select %p34, 0, %s33
      %s36 = ssub.s32 %s16, %s35
      %s37 = ssub.s32 %s18, %s27
      %s38 = sor.u32 %s36, %s37
      %p39 = scmp.eq.s32.totalorder %s38, 0
      %s41 = sadd.s32 %s40, 1
      %s42 = scalar_select %p39, %s40, %s41
      %p45 = pneg %p39
      %p46 = scmp.eq.s32.totalorder %s9, 7
      %p47 = por %p45, %p46
      %p48 = scmp.ne.s32.totalorder %s40, %s43
      %p49 = scmp.eq.s32.totalorder %s9, 0
      %p50 = por %p48, %p49
      %p51 = scmp.ne.s32.totalorder %s40, %s43
      %p52 = scmp.eq.s32.totalorder %s14, 7
      %p53 = por %p51, %p52
      %p54 = scmp.ne.s32.totalorder %s43, %s44
      %p55 = scmp.eq.s32.totalorder %s14, 0
      %p56 = por %p54, %p55
      %p57 = scmp.ne.s32.totalorder %s43, %s44
      %p58 = scmp.eq.s32.totalorder %s15, 7
      %p59 = por %p57, %p58
      %p61 = scmp.ne.s32.totalorder %s44, %s60
      %p62 = scmp.eq.s32.totalorder %s15, 0
      %p63 = por %p61, %p62
      %s64 = ssub.s32 %s18, %s27
      %s65 = ssub.s32 %s17, %s31
      %s66 = sor.u32 %s64, %s65
      %p67 = scmp.eq.s32.totalorder %s66, 0
      %s69 = sadd.s32 %s68, 1
      %s70 = scalar_select %p67, %s68, %s69
      %p73 = pneg %p67
      %p74 = scmp.eq.s32.totalorder %s9, 7
      %p75 = por %p73, %p74
      %p76 = scmp.ne.s32.totalorder %s68, %s71
      %p77 = scmp.eq.s32.totalorder %s9, 0
      %p78 = por %p76, %p77
      %p79 = scmp.ne.s32.totalorder %s68, %s71
      %p80 = scmp.eq.s32.totalorder %s14, 7
      %p81 = por %p79, %p80
      %p82 = scmp.ne.s32.totalorder %s71, %s72
      %p83 = scmp.eq.s32.totalorder %s14, 0
      %p84 = por %p82, %p83
      %p85 = scmp.ne.s32.totalorder %s71, %s72
      %p86 = scmp.eq.s32.totalorder %s15, 7
      %p87 = por %p85, %p86
      %p89 = scmp.ne.s32.totalorder %s72, %s88
      %p90 = scmp.eq.s32.totalorder %s15, 0
      %p91 = por %p89, %p90
      %s92 = ssub.s32 %s17, %s31
      %p93 = scmp.eq.s32.totalorder %s92, 0
      %s95 = sadd.s32 %s94, 1
      %s96 = scalar_select %p93, %s94, %s95
      %p99 = pneg %p93
      %p100 = scmp.eq.s32.totalorder %s9, 7
      %p101 = por %p99, %p100
      %p102 = scmp.ne.s32.totalorder %s94, %s97
      %p103 = scmp.eq.s32.totalorder %s9, 0
      %p104 = por %p102, %p103
      %p105 = scmp.ne.s32.totalorder %s94, %s97
      %p106 = scmp.eq.s32.totalorder %s14, 7
      %p107 = por %p105, %p106
      %p108 = scmp.ne.s32.totalorder %s97, %s98
      %p109 = scmp.eq.s32.totalorder %s14, 0
      %p110 = por %p108, %p109
      %p111 = scmp.ne.s32.totalorder %s97, %s98
      %p112 = scmp.eq.s32.totalorder %s15, 7
      %p113 = por %p111, %p112
      %p115 = scmp.ne.s32.totalorder %s98, %s114
      %p116 = scmp.eq.s32.totalorder %s15, 0
      %p117 = por %p115, %p116
      %s118 = ssub.s32 %s16, %s35
      %s119 = ssub.s32 %s17, %s31
      %s120 = sor.u32 %s118, %s119
      %p121 = scmp.eq.s32.totalorder %s120, 0
      %s123 = sadd.s32 %s122, 1
      %s124 = scalar_select %p121, %s122, %s123
      %p127 = pneg %p121
      %p128 = scmp.eq.s32.totalorder %s9, 7
      %p129 = por %p127, %p128
      %p130 = scmp.ne.s32.totalorder %s122, %s125
      %p131 = scmp.eq.s32.totalorder %s9, 0
      %p132 = por %p130, %p131
      %p133 = scmp.ne.s32.totalorder %s122, %s125
      %p134 = scmp.eq.s32.totalorder %s14, 7
      %p135 = por %p133, %p134
      %p136 = scmp.ne.s32.totalorder %s125, %s126
      %p137 = scmp.eq.s32.totalorder %s14, 0
      %p138 = por %p136, %p137
      %p139 = scmp.ne.s32.totalorder %s125, %s126
      %p140 = scmp.eq.s32.totalorder %s15, 7
      %p141 = por %p139, %p140
      %p143 = scmp.ne.s32.totalorder %s126, %s142
      %p144 = scmp.eq.s32.totalorder %s15, 0
      %p145 = por %p143, %p144
      %p146 = scmp.le.s32.totalorder 1, %s9
      %p147 = scmp.lt.s32.totalorder %s9, 9
      %p148 = pnand %p146, %p147
      %p149 = pneg %p148
      // Predicated region
      $region9: #{mrnet_attention_forward.6} parent=5 // pred_check
        _
      $region10: #{mrnet_attention_forward.6} parent=5 // pred_check_branch
        %151 = sbr.rel (%p148) target = $region12
      $region11: #{mrnet_attention_forward.6} parent=5 // pred_region
        %s152 = ssub.s32 %s9, 1
        // Predicated region
        $region13: #{mrnet_attention_forward.6} parent=11 // pred_check
          %p153 = pneg %p110
        $region14: #{mrnet_attention_forward.6} parent=11 // pred_check_branch
          %155 = sbr.rel (%p153) target = $region16
        $region15: #{mrnet_attention_forward.6} parent=11 // pred_region
          %p156 = scmp.lt.s32.totalorder %s20, 0
          %s157 = scalar_select %p156, %s20, 0
          %s158 = scalar_lea.vmem %s2, %s157
        $region16: #{mrnet_attention_forward.6} parent=11 // pred_fallthru
          _
      $region12: #{mrnet_attention_forward.6} parent=5 // pred_fallthru
        _
      %p159 = scmp.lt.s32.totalorder %s9, 8
      // Predicated region
      $region17: #{mrnet_attention_forward.6} parent=5 // pred_check
        %p160 = pneg %p159
      $region18: #{mrnet_attention_forward.6} parent=5 // pred_check_branch
        %162 = sbr.rel (%p160) target = $region20
      $region19: #{mrnet_attention_forward.6} parent=5 // pred_region
        // Predicated region
        $region21: #{mrnet_attention_forward.6} parent=19 // pred_check
          %p163 = pneg %p50
        $region22: #{mrnet_attention_forward.6} parent=19 // pred_check_branch
          %165 = sbr.rel (%p163) target = $region24
        $region23: #{mrnet_attention_forward.6} parent=19 // pred_region
          %s166 = sand.u32 %s40, 1
          %s167 = sand.u32 %s40, 1
          %s168 = smul.addr %s167, 256
          %s169 = scalar_lea.vmem [#allocation3], %s168
          %s170 = smul.u32 32, %s16
          %s171 = smul.u32 2, %s18
          %s172 = smul.addr %s170, 4
          %s173 = sadd.s32 %s171, %s172
          %s174 = smul.addr %s173, 4
          %s175 = scalar_lea.vmem %s0, %s174
          // Predicated region
          $region25: #{mrnet_attention_forward.6} parent=23 // pred_check
            _
          $region26: #{mrnet_attention_forward.6} parent=23 // pred_check_branch
            %177 = sbr.rel (0) target = $region28
          $region27: #{mrnet_attention_forward.6} parent=23 // pred_region
            // Predicated region
            $region29: #{mrnet_attention_forward.6} parent=27 // pred_check
              _
            $region30: #{mrnet_attention_forward.6} parent=27 // pred_check_branch
              %179 = sbr.rel (0) target = $region32
            $region31: #{mrnet_attention_forward.6} parent=27 // pred_region
              // Predicated region
              $region44: #{mrnet_attention_forward.6} parent=31 // pred_check
                _
              $region45: #{mrnet_attention_forward.6} parent=31 // pred_check_branch
                %257 = sbr.rel (0) target = $region47
              $region46: #{mrnet_attention_forward.6} parent=31 // pred_region
                loop: start=0, step=1, limit=1
                $region48: #{mrnet_attention_forward.6} parent=46 // loop_pre_header
                  _
                $region49: #{mrnet_attention_forward.6} parent=46 // loop_header
                  %s259 = sphi 0, %s263
                  %p260 = scmp.ge.s32.totalorder %s259, 1
                  %s264 = sphi %s175, %s175
                  %s265 = sphi %s169, %s169
                $region50: #{mrnet_attention_forward.6} parent=46 // loop_header_branch
                  %262 = sbr.rel (%p260) target = $region54
                $region51: #{mrnet_attention_forward.6} parent=46 // loop_body
                  %v266 = vld [vmem:[%s264] sm:$0xff]
                  %267 = vst [vmem:[%s265] sm:$0xff] %v266
                  %v268 = vld [vmem:[%s264 + $0x10] sm:$0xff]
                  %269 = vst [vmem:[%s265 + $0x8] sm:$0xff] %v268
                  %v270 = vld [vmem:[%s264 + $0x20] sm:$0xff]
                  %271 = vst [vmem:[%s265 + $0x10] sm:$0xff] %v270
                  %v272 = vld [vmem:[%s264 + $0x30] sm:$0xff]
                  %273 = vst [vmem:[%s265 + $0x18] sm:$0xff] %v272
                  %v274 = vld [vmem:[%s264 + $0x40] sm:$0xff]
                  %275 = vst [vmem:[%s265 + $0x20] sm:$0xff] %v274
                  %v276 = vld [vmem:[%s264 + $0x50] sm:$0xff]
                  %277 = vst [vmem:[%s265 + $0x28] sm:$0xff] %v276
                  %v278 = vld [vmem:[%s264 + $0x60] sm:$0xff]
                  %279 = vst [vmem:[%s265 + $0x30] sm:$0xff] %v278
                  %v280 = vld [vmem:[%s264 + $0x70] sm:$0xff]
                  %281 = vst [vmem:[%s265 + $0x38] sm:$0xff] %v280
                  %v282 = vld [vmem:[%s264 + $0x80] sm:$0xff]
                  %283 = vst [vmem:[%s265 + $0x40] sm:$0xff] %v282
                  %v284 = vld [vmem:[%s264 + $0x90] sm:$0xff]
                  %285 = vst [vmem:[%s265 + $0x48] sm:$0xff] %v284
                  %v286 = vld [vmem:[%s264 + $0xa0] sm:$0xff]
                  %287 = vst [vmem:[%s265 + $0x50] sm:$0xff] %v286
                  %v288 = vld [vmem:[%s264 + $0xb0] sm:$0xff]
                  %289 = vst [vmem:[%s265 + $0x58] sm:$0xff] %v288
                  %v290 = vld [vmem:[%s264 + $0xc0] sm:$0xff]
                  %291 = vst [vmem:[%s265 + $0x60] sm:$0xff] %v290
                  %v292 = vld [vmem:[%s264 + $0xd0] sm:$0xff]
                  %293 = vst [vmem:[%s265 + $0x68] sm:$0xff] %v292
                  %v294 = vld [vmem:[%s264 + $0xe0] sm:$0xff]
                  %295 = vst [vmem:[%s265 + $0x70] sm:$0xff] %v294
                  %v296 = vld [vmem:[%s264 + $0xf0] sm:$0xff]
                  %297 = vst [vmem:[%s265 + $0x78] sm:$0xff] %v296
                  %v298 = vld [vmem:[%s264 + $0x100] sm:$0xff]
                  %299 = vst [vmem:[%s265 + $0x80] sm:$0xff] %v298
                  %v300 = vld [vmem:[%s264 + $0x110] sm:$0xff]
                  %301 = vst [vmem:[%s265 + $0x88] sm:$0xff] %v300
                  %v302 = vld [vmem:[%s264 + $0x120] sm:$0xff]
                  %303 = vst [vmem:[%s265 + $0x90] sm:$0xff] %v302
                  %v304 = vld [vmem:[%s264 + $0x130] sm:$0xff]
                  %305 = vst [vmem:[%s265 + $0x98] sm:$0xff] %v304
                  %v306 = vld [vmem:[%s264 + $0x140] sm:$0xff]
                  %307 = vst [vmem:[%s265 + $0xa0] sm:$0xff] %v306
                  %v308 = vld [vmem:[%s264 + $0x150] sm:$0xff]
                  %309 = vst [vmem:[%s265 + $0xa8] sm:$0xff] %v308
                  %v310 = vld [vmem:[%s264 + $0x160] sm:$0xff]
                  %311 = vst [vmem:[%s265 + $0xb0] sm:$0xff] %v310
                  %v312 = vld [vmem:[%s264 + $0x170] sm:$0xff]
                  %313 = vst [vmem:[%s265 + $0xb8] sm:$0xff] %v312
                  %v314 = vld [vmem:[%s264 + $0x180] sm:$0xff]
                  %315 = vst [vmem:[%s265 + $0xc0] sm:$0xff] %v314
                  %v316 = vld [vmem:[%s264 + $0x190] sm:$0xff]
                  %317 = vst [vmem:[%s265 + $0xc8] sm:$0xff] %v316
                  %v318 = vld [vmem:[%s264 + $0x1a0] sm:$0xff]
                  %319 = vst [vmem:[%s265 + $0xd0] sm:$0xff] %v318
                  %v320 = vld [vmem:[%s264 + $0x1b0] sm:$0xff]
                  %321 = vst [vmem:[%s265 + $0xd8] sm:$0xff] %v320
                  %v322 = vld [vmem:[%s264 + $0x1c0] sm:$0xff]
                  %323 = vst [vmem:[%s265 + $0xe0] sm:$0xff] %v322
                  %v324 = vld [vmem:[%s264 + $0x1d0] sm:$0xff]
                  %325 = vst [vmem:[%s265 + $0xe8] sm:$0xff] %v324
                  %v326 = vld [vmem:[%s264 + $0x1e0] sm:$0xff]
                  %327 = vst [vmem:[%s265 + $0xf0] sm:$0xff] %v326
                  %v328 = vld [vmem:[%s264 + $0x1f0] sm:$0xff]
                  %329 = vst [vmem:[%s265 + $0xf8] sm:$0xff] %v328
                $region52: #{mrnet_attention_forward.6} parent=46 // loop_footer
                  %s263 = sadd.s32 1, %s259
                $region53: #{mrnet_attention_forward.6} parent=46 // loop_footer_branch
                  %258 = sbr.rel target = $region49
                $region54: #{mrnet_attention_forward.6} parent=46 // loop_exit
                  _
              $region47: #{mrnet_attention_forward.6} parent=31 // pred_fallthru
                _
              // Predicated region
              $region55: #{mrnet_attention_forward.6} parent=31 // pred_check
                _
              $region56: #{mrnet_attention_forward.6} parent=31 // pred_check_branch
                %331 = sbr.rel target = $region58
              $region57: #{mrnet_attention_forward.6} parent=31 // pred_region
                _
              $region58: #{mrnet_attention_forward.6} parent=31 // pred_fallthru
                _
            $region32: #{mrnet_attention_forward.6} parent=27 // pred_fallthru
              _
            // Predicated region
            $region33: #{mrnet_attention_forward.6} parent=27 // pred_check
              _
            $region34: #{mrnet_attention_forward.6} parent=27 // pred_check_branch
              %181 = sbr.rel target = $region36
            $region35: #{mrnet_attention_forward.6} parent=27 // pred_region
              %s183 = ssub.s32 256, 1
              loop: start=0, step=1, limit=1
              $region37: #{mrnet_attention_forward.6} parent=35 // loop_pre_header
                _
              $region38: #{mrnet_attention_forward.6} parent=35 // loop_header
                %s185 = sphi 0, %s189
                %p186 = scmp.ge.s32.totalorder %s185, 1
                %s190 = sphi %s175, %s175
                %s191 = sphi %s169, %s169
              $region39: #{mrnet_attention_forward.6} parent=35 // loop_header_branch
                %188 = sbr.rel (%p186) target = $region43
              $region40: #{mrnet_attention_forward.6} parent=35 // loop_body
                %v192 = vld [vmem:[%s190] sm:%s183]
                %193 = vst [vmem:[%s191] sm:%s183] %v192
                %v194 = vld [vmem:[%s190 + $0x10] sm:%s183]
                %195 = vst [vmem:[%s191 + $0x8] sm:%s183] %v194
                %v196 = vld [vmem:[%s190 + $0x20] sm:%s183]
                %197 = vst [vmem:[%s191 + $0x10] sm:%s183] %v196
                %v198 = vld [vmem:[%s190 + $0x30] sm:%s183]
                %199 = vst [vmem:[%s191 + $0x18] sm:%s183] %v198
                %v200 = vld [vmem:[%s190 + $0x40] sm:%s183]
                %201 = vst [vmem:[%s191 + $0x20] sm:%s183] %v200
                %v202 = vld [vmem:[%s190 + $0x50] sm:%s183]
                %203 = vst [vmem:[%s191 + $0x28] sm:%s183] %v202
                %v204 = vld [vmem:[%s190 + $0x60] sm:%s183]
                %205 = vst [vmem:[%s191 + $0x30] sm:%s183] %v204
                %v206 = vld [vmem:[%s190 + $0x70] sm:%s183]
                %207 = vst [vmem:[%s191 + $0x38] sm:%s183] %v206
                %v208 = vld [vmem:[%s190 + $0x80] sm:%s183]
                %209 = vst [vmem:[%s191 + $0x40] sm:%s183] %v208
                %v210 = vld [vmem:[%s190 + $0x90] sm:%s183]
                %211 = vst [vmem:[%s191 + $0x48] sm:%s183] %v210
                %v212 = vld [vmem:[%s190 + $0xa0] sm:%s183]
                %213 = vst [vmem:[%s191 + $0x50] sm:%s183] %v212
                %v214 = vld [vmem:[%s190 + $0xb0] sm:%s183]
                %215 = vst [vmem:[%s191 + $0x58] sm:%s183] %v214
                %v216 = vld [vmem:[%s190 + $0xc0] sm:%s183]
                %217 = vst [vmem:[%s191 + $0x60] sm:%s183] %v216
                %v218 = vld [vmem:[%s190 + $0xd0] sm:%s183]
                %219 = vst [vmem:[%s191 + $0x68] sm:%s183] %v218
                %v220 = vld [vmem:[%s190 + $0xe0] sm:%s183]
                %221 = vst [vmem:[%s191 + $0x70] sm:%s183] %v220
                %v222 = vld [vmem:[%s190 + $0xf0] sm:%s183]
                %223 = vst [vmem:[%s191 + $0x78] sm:%s183] %v222
                %v224 = vld [vmem:[%s190 + $0x100] sm:%s183]
                %225 = vst [vmem:[%s191 + $0x80] sm:%s183] %v224
                %v226 = vld [vmem:[%s190 + $0x110] sm:%s183]
                %227 = vst [vmem:[%s191 + $0x88] sm:%s183] %v226
                %v228 = vld [vmem:[%s190 + $0x120] sm:%s183]
                %229 = vst [vmem:[%s191 + $0x90] sm:%s183] %v228
                %v230 = vld [vmem:[%s190 + $0x130] sm:%s183]
                %231 = vst [vmem:[%s191 + $0x98] sm:%s183] %v230
                %v232 = vld [vmem:[%s190 + $0x140] sm:%s183]
                %233 = vst [vmem:[%s191 + $0xa0] sm:%s183] %v232
                %v234 = vld [vmem:[%s190 + $0x150] sm:%s183]
                %235 = vst [vmem:[%s191 + $0xa8] sm:%s183] %v234
                %v236 = vld [vmem:[%s190 + $0x160] sm:%s183]
                %237 = vst [vmem:[%s191 + $0xb0] sm:%s183] %v236
                %v238 = vld [vmem:[%s190 + $0x170] sm:%s183]
                %239 = vst [vmem:[%s191 + $0xb8] sm:%s183] %v238
                %v240 = vld [vmem:[%s190 + $0x180] sm:%s183]
                %241 = vst [vmem:[%s191 + $0xc0] sm:%s183] %v240
                %v242 = vld [vmem:[%s190 + $0x190] sm:%s183]
                %243 = vst [vmem:[%s191 + $0xc8] sm:%s183] %v242
                %v244 = vld [vmem:[%s190 + $0x1a0] sm:%s183]
                %245 = vst [vmem:[%s191 + $0xd0] sm:%s183] %v244
                %v246 = vld [vmem:[%s190 + $0x1b0] sm:%s183]
                %247 = vst [vmem:[%s191 + $0xd8] sm:%s183] %v246
                %v248 = vld [vmem:[%s190 + $0x1c0] sm:%s183]
                %249 = vst [vmem:[%s191 + $0xe0] sm:%s183] %v248
                %v250 = vld [vmem:[%s190 + $0x1d0] sm:%s183]
                %251 = vst [vmem:[%s191 + $0xe8] sm:%s183] %v250
                %v252 = vld [vmem:[%s190 + $0x1e0] sm:%s183]
                %253 = vst [vmem:[%s191 + $0xf0] sm:%s183] %v252
                %v254 = vld [vmem:[%s190 + $0x1f0] sm:%s183]
                %255 = vst [vmem:[%s191 + $0xf8] sm:%s183] %v254
              $region41: #{mrnet_attention_forward.6} parent=35 // loop_footer
                %s189 = sadd.s32 1, %s185
              $region42: #{mrnet_attention_forward.6} parent=35 // loop_footer_branch
                %184 = sbr.rel target = $region38
              $region43: #{mrnet_attention_forward.6} parent=35 // loop_exit
                _
            $region36: #{mrnet_attention_forward.6} parent=27 // pred_fallthru
              _
          $region28: #{mrnet_attention_forward.6} parent=23 // pred_fallthru
            _
          %332 = vnop
        $region24: #{mrnet_attention_forward.6} parent=19 // pred_fallthru
          _
        // Predicated region
        $region59: #{mrnet_attention_forward.6} parent=19 // pred_check
          %p333 = pneg %p78
        $region60: #{mrnet_attention_forward.6} parent=19 // pred_check_branch
          %335 = sbr.rel (%p333) target = $region62
        $region61: #{mrnet_attention_forward.6} parent=19 // pred_region
          %s336 = smul.u32 32, %s18
          %p337 = scmp.lt.s32.totalorder %s336, 63
          %s338 = scalar_select %p337, %s336, 63
          %p339 = scmp.lt.s32.totalorder %s17, 0
          %s340 = scalar_select %p339, %s17, 0
          %s341 = sadd.s32 %s340, %s338
          %s342 = smul.addr %s341, 4
          %s343 = scalar_lea.vmem %s1, %s342
          %s344 = smul.u32 32, %s18
        $region62: #{mrnet_attention_forward.6} parent=19 // pred_fallthru
          _
      $region20: #{mrnet_attention_forward.6} parent=5 // pred_fallthru
        _
      %p345 = scmp.le.s32.totalorder 1, %s9
      %p346 = scmp.lt.s32.totalorder %s9, 9
      %p347 = pnand %p345, %p346
      %p348 = pneg %p347
      // Predicated region
      $region63: #{mrnet_attention_forward.6} parent=5 // pred_check
        _
      $region64: #{mrnet_attention_forward.6} parent=5 // pred_check_branch
        %350 = sbr.rel (%p347) target = $region66
      $region65: #{mrnet_attention_forward.6} parent=5 // pred_region
        %s351 = ssub.s32 %s9, 1
        %s352 = sand.u32 %s43, 1
        %s353 = sand.u32 %s43, 1
        %s354 = smul.addr %s353, 256
        %s355 = scalar_lea.vmem [#allocation3], %s354
        // Predicated region
        $region67: #{mrnet_attention_forward.6} parent=65 // pred_check
          %p356 = pneg %p56
        $region68: #{mrnet_attention_forward.6} parent=65 // pred_check_branch
          %358 = sbr.rel (%p356) target = $region70
        $region69: #{mrnet_attention_forward.6} parent=65 // pred_region
          _
        $region70: #{mrnet_attention_forward.6} parent=65 // pred_fallthru
          _
        %s359 = sand.u32 %s43, 1
        %s360 = sand.u32 %s43, 1
        %s361 = smul.addr %s360, 256
        %s362 = scalar_lea.vmem [#allocation3], %s361
        %p363 = pneg %p56
        %p364 = pneg %p53
        %s365 = smul.u32 32, %s21
        %p366 = scmp.lt.s32.totalorder %s365, 63
        %s367 = scalar_select %p366, %s365, 63
        %p368 = scmp.lt.s32.totalorder %s20, 0
        %s369 = scalar_select %p368, %s20, 0
        %s370 = sadd.s32 %s369, %s367
        %s371 = smul.addr %s370, 4
        %s372 = scalar_lea.vmem %s1, %s371
        %p373 = pneg %p84
        %p374 = pneg %p81
        %p375 = scmp.lt.s32.totalorder %s20, 0
        %s376 = scalar_select %p375, %s20, 0
        %s377 = scalar_lea.vmem %s2, %s376
        %p378 = pneg %p110
        %p379 = pneg %p107
        %p380 = pneg %p138
        %p381 = pneg %p135
        %s382 = smul.u32 32, %s19
        %p383 = scmp.lt.s32.totalorder %s382, 127
        %s384 = scalar_select %p383, %s382, 127
        %p385 = scmp.lt.s32.totalorder %s20, 0
        %s386 = scalar_select %p385, %s20, 0
        %s387 = sadd.s32 %s386, %s384
        %s388 = smul.addr %s387, 8
        %s389 = scalar_lea.vmem %s3, %s388
        %s390 = smul.u32 32, %s19
        %s391 = smul.u32 2, %s21
        %s392 = smul.u32 32, %s21
        %p393 = scmp.lt.s32.totalorder %s392, 63
        %s394 = scalar_select %p393, %s392, 63
        %p395 = scmp.lt.s32.totalorder %s20, 0
        %s396 = scalar_select %p395, %s20, 0
        %s397 = sadd.s32 %s396, %s394
        %s398 = smul.addr %s397, 4
        %s399 = scalar_lea.vmem %s1, %s398
        %s400 = smul.u32 32, %s21
        %p401 = scmp.lt.s32.totalorder %s20, 0
        %s402 = scalar_select %p401, %s20, 0
        %s403 = scalar_lea.vmem %s2, %s402
        %s404 = smul.u32 32, %s19
        %p405 = scmp.lt.s32.totalorder %s404, 127
        %s406 = scalar_select %p405, %s404, 127
        %p407 = scmp.lt.s32.totalorder %s20, 0
        %s408 = scalar_select %p407, %s20, 0
        %s409 = sadd.s32 %s408, %s406
        %s410 = smul.addr %s409, 8
        %s411 = scalar_lea.vmem %s3, %s410
        %s412 = smul.u32 32, %s19
        %p413 = scmp.eq.s32.totalorder %s21, 0
        // Predicated region
        $region71: #{mrnet_attention_forward.6} parent=65 // pred_check
          %p414 = pneg %p413
        $region72: #{mrnet_attention_forward.6} parent=65 // pred_check_branch
          %416 = sbr.rel (%p414) target = $region74
        $region73: #{mrnet_attention_forward.6} parent=65 // pred_region
          %417 = vst [vmem:[#allocation2] sm:$0xff] 0.0
          %418 = vst [vmem:[#allocation2 + $0x8] sm:$0xff] 0.0
          %419 = vst [vmem:[#allocation2 + $0x10] sm:$0xff] 0.0
          %420 = vst [vmem:[#allocation2 + $0x18] sm:$0xff] 0.0
          %421 = vst [vmem:[#allocation2 + $0x20] sm:$0xff] 0.0
          %422 = vst [vmem:[#allocation2 + $0x28] sm:$0xff] 0.0
          %423 = vst [vmem:[#allocation2 + $0x30] sm:$0xff] 0.0
          %424 = vst [vmem:[#allocation2 + $0x38] sm:$0xff] 0.0
          %425 = vst [vmem:[#allocation2 + $0x40] sm:$0xff] 0.0
          %426 = vst [vmem:[#allocation2 + $0x48] sm:$0xff] 0.0
          %427 = vst [vmem:[#allocation2 + $0x50] sm:$0xff] 0.0
          %428 = vst [vmem:[#allocation2 + $0x58] sm:$0xff] 0.0
          %429 = vst [vmem:[#allocation2 + $0x60] sm:$0xff] 0.0
          %430 = vst [vmem:[#allocation2 + $0x68] sm:$0xff] 0.0
          %431 = vst [vmem:[#allocation2 + $0x70] sm:$0xff] 0.0
          %432 = vst [vmem:[#allocation2 + $0x78] sm:$0xff] 0.0
          %433 = vst [vmem:[#allocation2 + $0x80] sm:$0xff] 0.0
          %434 = vst [vmem:[#allocation2 + $0x88] sm:$0xff] 0.0
          %435 = vst [vmem:[#allocation2 + $0x90] sm:$0xff] 0.0
          %436 = vst [vmem:[#allocation2 + $0x98] sm:$0xff] 0.0
          %437 = vst [vmem:[#allocation2 + $0xa0] sm:$0xff] 0.0
          %438 = vst [vmem:[#allocation2 + $0xa8] sm:$0xff] 0.0
          %439 = vst [vmem:[#allocation2 + $0xb0] sm:$0xff] 0.0
          %440 = vst [vmem:[#allocation2 + $0xb8] sm:$0xff] 0.0
          %441 = vst [vmem:[#allocation2 + $0xc0] sm:$0xff] 0.0
          %442 = vst [vmem:[#allocation2 + $0xc8] sm:$0xff] 0.0
          %443 = vst [vmem:[#allocation2 + $0xd0] sm:$0xff] 0.0
          %444 = vst [vmem:[#allocation2 + $0xd8] sm:$0xff] 0.0
          %445 = vst [vmem:[#allocation2 + $0xe0] sm:$0xff] 0.0
          %446 = vst [vmem:[#allocation2 + $0xe8] sm:$0xff] 0.0
          %447 = vst [vmem:[#allocation2 + $0xf0] sm:$0xff] 0.0
          %448 = vst [vmem:[#allocation2 + $0xf8] sm:$0xff] 0.0
        $region74: #{mrnet_attention_forward.6} parent=65 // pred_fallthru
          _
        %v449 = vld [vmem:[#allocation2] sm:$0xff]
        %v450 = vld [vmem:[#allocation2 + $0x8] sm:$0xff]
        %v451 = vld [vmem:[#allocation2 + $0x10] sm:$0xff]
        %v452 = vld [vmem:[#allocation2 + $0x18] sm:$0xff]
        %v453 = vld [vmem:[#allocation2 + $0x20] sm:$0xff]
        %v454 = vld [vmem:[#allocation2 + $0x28] sm:$0xff]
        %v455 = vld [vmem:[#allocation2 + $0x30] sm:$0xff]
        %v456 = vld [vmem:[#allocation2 + $0x38] sm:$0xff]
        %v457 = vld [vmem:[#allocation2 + $0x40] sm:$0xff]
        %v458 = vld [vmem:[#allocation2 + $0x48] sm:$0xff]
        %v459 = vld [vmem:[#allocation2 + $0x50] sm:$0xff]
        %v460 = vld [vmem:[#allocation2 + $0x58] sm:$0xff]
        %v461 = vld [vmem:[#allocation2 + $0x60] sm:$0xff]
        %v462 = vld [vmem:[#allocation2 + $0x68] sm:$0xff]
        %v463 = vld [vmem:[#allocation2 + $0x70] sm:$0xff]
        %v464 = vld [vmem:[#allocation2 + $0x78] sm:$0xff]
        %v465 = vld [vmem:[#allocation2 + $0x80] sm:$0xff]
        %v466 = vld [vmem:[#allocation2 + $0x88] sm:$0xff]
        %v467 = vld [vmem:[#allocation2 + $0x90] sm:$0xff]
        %v468 = vld [vmem:[#allocation2 + $0x98] sm:$0xff]
        %v469 = vld [vmem:[#allocation2 + $0xa0] sm:$0xff]
        %v470 = vld [vmem:[#allocation2 + $0xa8] sm:$0xff]
        %v471 = vld [vmem:[#allocation2 + $0xb0] sm:$0xff]
        %v472 = vld [vmem:[#allocation2 + $0xb8] sm:$0xff]
        %v473 = vld [vmem:[#allocation2 + $0xc0] sm:$0xff]
        %v474 = vld [vmem:[#allocation2 + $0xc8] sm:$0xff]
        %v475 = vld [vmem:[#allocation2 + $0xd0] sm:$0xff]
        %v476 = vld [vmem:[#allocation2 + $0xd8] sm:$0xff]
        %v477 = vld [vmem:[#allocation2 + $0xe0] sm:$0xff]
        %v478 = vld [vmem:[#allocation2 + $0xe8] sm:$0xff]
        %v479 = vld [vmem:[#allocation2 + $0xf0] sm:$0xff]
        %v480 = vld [vmem:[#allocation2 + $0xf8] sm:$0xff]
        %v481 = vld [vmem:[%s355] sm:$0xff]
        %v482 = vld [vmem:[%s355 + $0x8] sm:$0xff]
        %v483 = vld [vmem:[%s355 + $0x10] sm:$0xff]
        %v484 = vld [vmem:[%s355 + $0x18] sm:$0xff]
        %v485 = vld [vmem:[%s355 + $0x20] sm:$0xff]
        %v486 = vld [vmem:[%s355 + $0x28] sm:$0xff]
        %v487 = vld [vmem:[%s355 + $0x30] sm:$0xff]
        %v488 = vld [vmem:[%s355 + $0x38] sm:$0xff]
        %v489 = vld [vmem:[%s355 + $0x40] sm:$0xff]
        %v490 = vld [vmem:[%s355 + $0x48] sm:$0xff]
        %v491 = vld [vmem:[%s355 + $0x50] sm:$0xff]
        %v492 = vld [vmem:[%s355 + $0x58] sm:$0xff]
        %v493 = vld [vmem:[%s355 + $0x60] sm:$0xff]
        %v494 = vld [vmem:[%s355 + $0x68] sm:$0xff]
        %v495 = vld [vmem:[%s355 + $0x70] sm:$0xff]
        %v496 = vld [vmem:[%s355 + $0x78] sm:$0xff]
        %v497 = vld [vmem:[%s355 + $0x80] sm:$0xff]
        %v498 = vld [vmem:[%s355 + $0x88] sm:$0xff]
        %v499 = vld [vmem:[%s355 + $0x90] sm:$0xff]
        %v500 = vld [vmem:[%s355 + $0x98] sm:$0xff]
        %v501 = vld [vmem:[%s355 + $0xa0] sm:$0xff]
        %v502 = vld [vmem:[%s355 + $0xa8] sm:$0xff]
        %v503 = vld [vmem:[%s355 + $0xb0] sm:$0xff]
        %v504 = vld [vmem:[%s355 + $0xb8] sm:$0xff]
        %v505 = vld [vmem:[%s355 + $0xc0] sm:$0xff]
        %v506 = vld [vmem:[%s355 + $0xc8] sm:$0xff]
        %v507 = vld [vmem:[%s355 + $0xd0] sm:$0xff]
        %v508 = vld [vmem:[%s355 + $0xd8] sm:$0xff]
        %v509 = vld [vmem:[%s355 + $0xe0] sm:$0xff]
        %v510 = vld [vmem:[%s355 + $0xe8] sm:$0xff]
        %v511 = vld [vmem:[%s355 + $0xf0] sm:$0xff]
        %v512 = vld [vmem:[%s355 + $0xf8] sm:$0xff]
        %v513 = vld [vmem:[%s399] sm:$0xf]
        %v514 = vld [vmem:[%s399 + $0x4] sm:$0xf]
        %v515 = vld [vmem:[%s399 + $0x8] sm:$0xf]
        %v516 = vld [vmem:[%s399 + $0xc] sm:$0xf]
        %v517 = vld [vmem:[%s399 + $0x10] sm:$0xf]
        %v518 = vld [vmem:[%s399 + $0x14] sm:$0xf]
        %v519 = vld [vmem:[%s399 + $0x18] sm:$0xf]
        %v520 = vld [vmem:[%s399 + $0x1c] sm:$0xf]
        %v521 = vld [vmem:[%s399 + $0x20] sm:$0xf]
        %v522 = vld [vmem:[%s399 + $0x24] sm:$0xf]
        %v523 = vld [vmem:[%s399 + $0x28] sm:$0xf]
        %v524 = vld [vmem:[%s399 + $0x2c] sm:$0xf]
        %v525 = vld [vmem:[%s399 + $0x30] sm:$0xf]
        %v526 = vld [vmem:[%s399 + $0x34] sm:$0xf]
        %v527 = vld [vmem:[%s399 + $0x38] sm:$0xf]
        %v528 = vld [vmem:[%s399 + $0x3c] sm:$0xf]
        %v529 = vld [vmem:[%s399 + $0x40] sm:$0xf]
        %v530 = vld [vmem:[%s399 + $0x44] sm:$0xf]
        %v531 = vld [vmem:[%s399 + $0x48] sm:$0xf]
        %v532 = vld [vmem:[%s399 + $0x4c] sm:$0xf]
        %v533 = vld [vmem:[%s399 + $0x50] sm:$0xf]
        %v534 = vld [vmem:[%s399 + $0x54] sm:$0xf]
        %v535 = vld [vmem:[%s399 + $0x58] sm:$0xf]
        %v536 = vld [vmem:[%s399 + $0x5c] sm:$0xf]
        %v537 = vld [vmem:[%s399 + $0x60] sm:$0xf]
        %v538 = vld [vmem:[%s399 + $0x64] sm:$0xf]
        %v539 = vld [vmem:[%s399 + $0x68] sm:$0xf]
        %v540 = vld [vmem:[%s399 + $0x6c] sm:$0xf]
        %v541 = vld [vmem:[%s399 + $0x70] sm:$0xf]
        %v542 = vld [vmem:[%s399 + $0x74] sm:$0xf]
        %v543 = vld [vmem:[%s399 + $0x78] sm:$0xf]
        %v544 = vld [vmem:[%s399 + $0x7c] sm:$0xf]
        %v577 = vunpack.c.l.b16 %v481
        %v578 = vunpack.c.h.b16 %v481
        %v579 = vunpack.c.l.b16 %v482
        %v580 = vunpack.c.h.b16 %v482
        %v581 = vunpack.c.l.b16 %v483
        %v582 = vunpack.c.h.b16 %v483
        %v583 = vunpack.c.l.b16 %v484
        %v584 = vunpack.c.h.b16 %v484
        %v585 = vunpack.c.l.b16 %v485
        %v586 = vunpack.c.h.b16 %v485
        %v587 = vunpack.c.l.b16 %v486
        %v588 = vunpack.c.h.b16 %v486
        %v589 = vunpack.c.l.b16 %v487
        %v590 = vunpack.c.h.b16 %v487
        %v591 = vunpack.c.l.b16 %v488
        %v592 = vunpack.c.h.b16 %v488
        %v593 = vunpack.c.l.b16 %v489
        %v594 = vunpack.c.h.b16 %v489
        %v595 = vunpack.c.l.b16 %v490
        %v596 = vunpack.c.h.b16 %v490
        %v597 = vunpack.c.l.b16 %v491
        %v598 = vunpack.c.h.b16 %v491
        %v599 = vunpack.c.l.b16 %v492
        %v600 = vunpack.c.h.b16 %v492
        %v601 = vunpack.c.l.b16 %v493
        %v602 = vunpack.c.h.b16 %v493
        %v603 = vunpack.c.l.b16 %v494
        %v604 = vunpack.c.h.b16 %v494
        %v605 = vunpack.c.l.b16 %v495
        %v606 = vunpack.c.h.b16 %v495
        %v607 = vunpack.c.l.b16 %v496
        %v608 = vunpack.c.h.b16 %v496
        %v609 = vunpack.c.l.b16 %v497
        %v610 = vunpack.c.h.b16 %v497
        %v611 = vunpack.c.l.b16 %v498
        %v612 = vunpack.c.h.b16 %v498
        %v613 = vunpack.c.l.b16 %v499
        %v614 = vunpack.c.h.b16 %v499
        %v615 = vunpack.c.l.b16 %v500
        %v616 = vunpack.c.h.b16 %v500
        %v617 = vunpack.c.l.b16 %v501
        %v618 = vunpack.c.h.b16 %v501
        %v619 = vunpack.c.l.b16 %v502
        %v620 = vunpack.c.h.b16 %v502
        %v621 = vunpack.c.l.b16 %v503
        %v622 = vunpack.c.h.b16 %v503
        %v623 = vunpack.c.l.b16 %v504
        %v624 = vunpack.c.h.b16 %v504
        %v625 = vunpack.c.l.b16 %v505
        %v626 = vunpack.c.h.b16 %v505
        %v627 = vunpack.c.l.b16 %v506
        %v628 = vunpack.c.h.b16 %v506
        %v629 = vunpack.c.l.b16 %v507
        %v630 = vunpack.c.h.b16 %v507
        %v631 = vunpack.c.l.b16 %v508
        %v632 = vunpack.c.h.b16 %v508
        %v633 = vunpack.c.l.b16 %v509
        %v634 = vunpack.c.h.b16 %v509
        %v635 = vunpack.c.l.b16 %v510
        %v636 = vunpack.c.h.b16 %v510
        %v637 = vunpack.c.l.b16 %v511
        %v638 = vunpack.c.h.b16 %v511
        %v639 = vunpack.c.l.b16 %v512
        %v640 = vunpack.c.h.b16 %v512
        %v641 = vpack.c.b16 %v579, %v577
        %v642 = vpack.c.b16 %v580, %v578
        %v643 = vpack.c.b16 %v583, %v581
        %v644 = vpack.c.b16 %v584, %v582
        %v645 = vpack.c.b16 %v587, %v585
        %v646 = vpack.c.b16 %v588, %v586
        %v647 = vpack.c.b16 %v591, %v589
        %v648 = vpack.c.b16 %v592, %v590
        %v649 = vpack.c.b16 %v595, %v593
        %v650 = vpack.c.b16 %v596, %v594
        %v651 = vpack.c.b16 %v599, %v597
        %v652 = vpack.c.b16 %v600, %v598
        %v653 = vpack.c.b16 %v603, %v601
        %v654 = vpack.c.b16 %v604, %v602
        %v655 = vpack.c.b16 %v607, %v605
        %v656 = vpack.c.b16 %v608, %v606
        %v657 = vpack.c.b16 %v611, %v609
        %v658 = vpack.c.b16 %v612, %v610
        %v659 = vpack.c.b16 %v615, %v613
        %v660 = vpack.c.b16 %v616, %v614
        %v661 = vpack.c.b16 %v619, %v617
        %v662 = vpack.c.b16 %v620, %v618
        %v663 = vpack.c.b16 %v623, %v621
        %v664 = vpack.c.b16 %v624, %v622
        %v665 = vpack.c.b16 %v627, %v625
        %v666 = vpack.c.b16 %v628, %v626
        %v667 = vpack.c.b16 %v631, %v629
        %v668 = vpack.c.b16 %v632, %v630
        %v669 = vpack.c.b16 %v635, %v633
        %v670 = vpack.c.b16 %v636, %v634
        %v671 = vpack.c.b16 %v639, %v637
        %v672 = vpack.c.b16 %v640, %v638
        %v737 = vunpack.c.l.b16 %v513
        %v738 = vunpack.c.l.b16 %v514
        %v739 = vunpack.c.l.b16 %v515
        %v740 = vunpack.c.l.b16 %v516
        %v741 = vunpack.c.l.b16 %v517
        %v742 = vunpack.c.l.b16 %v518
        %v743 = vunpack.c.l.b16 %v519
        %v744 = vunpack.c.l.b16 %v520
        %v745 = vunpack.c.l.b16 %v521
        %v746 = vunpack.c.l.b16 %v522
        %v747 = vunpack.c.l.b16 %v523
        %v748 = vunpack.c.l.b16 %v524
        %v749 = vunpack.c.l.b16 %v525
        %v750 = vunpack.c.l.b16 %v526
        %v751 = vunpack.c.l.b16 %v527
        %v752 = vunpack.c.l.b16 %v528
        %v753 = vunpack.c.l.b16 %v529
        %v754 = vunpack.c.l.b16 %v530
        %v755 = vunpack.c.l.b16 %v531
        %v756 = vunpack.c.l.b16 %v532
        %v757 = vunpack.c.l.b16 %v533
        %v758 = vunpack.c.l.b16 %v534
        %v759 = vunpack.c.l.b16 %v535
        %v760 = vunpack.c.l.b16 %v536
        %v761 = vunpack.c.l.b16 %v537
        %v762 = vunpack.c.l.b16 %v538
        %v763 = vunpack.c.l.b16 %v539
        %v764 = vunpack.c.l.b16 %v540
        %v765 = vunpack.c.l.b16 %v541
        %v766 = vunpack.c.l.b16 %v542
        %v767 = vunpack.c.l.b16 %v543
        %v768 = vunpack.c.l.b16 %v544
        %v769 = vpack.c.b16 %v738, %v737
        %v770 = vpack.c.b16 %v740, %v739
        %v771 = vpack.c.b16 %v742, %v741
        %v772 = vpack.c.b16 %v744, %v743
        %v773 = vpack.c.b16 %v746, %v745
        %v774 = vpack.c.b16 %v748, %v747
        %v775 = vpack.c.b16 %v750, %v749
        %v776 = vpack.c.b16 %v752, %v751
        %v777 = vpack.c.b16 %v754, %v753
        %v778 = vpack.c.b16 %v756, %v755
        %v779 = vpack.c.b16 %v758, %v757
        %v780 = vpack.c.b16 %v760, %v759
        %v781 = vpack.c.b16 %v762, %v761
        %v782 = vpack.c.b16 %v764, %v763
        %v783 = vpack.c.b16 %v766, %v765
        %v784 = vpack.c.b16 %v768, %v767
        %801 = vmatpush.bf16.msra.mxu0 %v776
        %802 = vmatpush.bf16.msra.mxu0 %v775
        %803 = vmatpush.bf16.msra.mxu0 %v774
        %804 = vmatpush.bf16.msra.mxu0 %v773
        %805 = vmatpush.bf16.msra.mxu0 %v772
        %806 = vmatpush.bf16.msra.mxu0 %v771
        %807 = vmatpush.bf16.msra.mxu0 %v770
        %808 = vmatpush.bf16.msra.mxu0 %v769
        %809 = vmatmul.bf16.gmra.mxu0 %v641
        %v810 = vpop.f32.mrf.mxu0
        %v811 = vadd.f32 0.0, %v810
        %v812 = vpop.f32.mrf.mxu0
        %v813 = vadd.f32 0.0, %v812
        %814 = vmatmul.bf16.gmra.mxu0 %v643
        %v815 = vpop.f32.mrf.mxu0
        %v816 = vadd.f32 0.0, %v815
        %v817 = vpop.f32.mrf.mxu0
        %v818 = vadd.f32 0.0, %v817
        %819 = vmatmul.bf16.gmra.mxu0 %v645
        %v820 = vpop.f32.mrf.mxu0
        %v821 = vadd.f32 0.0, %v820
        %v822 = vpop.f32.mrf.mxu0
        %v823 = vadd.f32 0.0, %v822
        %824 = vmatmul.bf16.gmra.mxu0 %v647
        %v825 = vpop.f32.mrf.mxu0
        %v826 = vadd.f32 0.0, %v825
        %v827 = vpop.f32.mrf.mxu0
        %v828 = vadd.f32 0.0, %v827
        %829 = vmatmul.bf16.gmra.mxu0 %v649
        %v830 = vpop.f32.mrf.mxu0
        %v831 = vadd.f32 0.0, %v830
        %v832 = vpop.f32.mrf.mxu0
        %v833 = vadd.f32 0.0, %v832
        %834 = vmatmul.bf16.gmra.mxu0 %v651
        %v835 = vpop.f32.mrf.mxu0
        %v836 = vadd.f32 0.0, %v835
        %v837 = vpop.f32.mrf.mxu0
        %v838 = vadd.f32 0.0, %v837
        %839 = vmatmul.bf16.gmra.mxu0 %v653
        %v840 = vpop.f32.mrf.mxu0
        %v841 = vadd.f32 0.0, %v840
        %v842 = vpop.f32.mrf.mxu0
        %v843 = vadd.f32 0.0, %v842
        %844 = vmatmul.bf16.gmra.mxu0 %v655
        %v845 = vpop.f32.mrf.mxu0
        %v846 = vadd.f32 0.0, %v845
        %v847 = vpop.f32.mrf.mxu0
        %v848 = vadd.f32 0.0, %v847
        %849 = vmatmul.bf16.gmra.mxu0 %v657
        %v850 = vpop.f32.mrf.mxu0
        %v851 = vadd.f32 0.0, %v850
        %v852 = vpop.f32.mrf.mxu0
        %v853 = vadd.f32 0.0, %v852
        %854 = vmatmul.bf16.gmra.mxu0 %v659
        %v855 = vpop.f32.mrf.mxu0
        %v856 = vadd.f32 0.0, %v855
        %v857 = vpop.f32.mrf.mxu0
        %v858 = vadd.f32 0.0, %v857
        %859 = vmatmul.bf16.gmra.mxu0 %v661
        %v860 = vpop.f32.mrf.mxu0
        %v861 = vadd.f32 0.0, %v860
        %v862 = vpop.f32.mrf.mxu0
        %v863 = vadd.f32 0.0, %v862
        %864 = vmatmul.bf16.gmra.mxu0 %v663
        %v865 = vpop.f32.mrf.mxu0
        %v866 = vadd.f32 0.0, %v865
        %v867 = vpop.f32.mrf.mxu0
        %v868 = vadd.f32 0.0, %v867
        %869 = vmatmul.bf16.gmra.mxu0 %v665
        %v870 = vpop.f32.mrf.mxu0
        %v871 = vadd.f32 0.0, %v870
        %v872 = vpop.f32.mrf.mxu0
        %v873 = vadd.f32 0.0, %v872
        %874 = vmatmul.bf16.gmra.mxu0 %v667
        %v875 = vpop.f32.mrf.mxu0
        %v876 = vadd.f32 0.0, %v875
        %v877 = vpop.f32.mrf.mxu0
        %v878 = vadd.f32 0.0, %v877
        %879 = vmatmul.bf16.gmra.mxu0 %v669
        %v880 = vpop.f32.mrf.mxu0
        %v881 = vadd.f32 0.0, %v880
        %v882 = vpop.f32.mrf.mxu0
        %v883 = vadd.f32 0.0, %v882
        %884 = vmatmul.bf16.gmra.mxu0 %v671
        %v885 = vpop.f32.mrf.mxu0
        %v886 = vadd.f32 0.0, %v885
        %v887 = vpop.f32.mrf.mxu0
        %v888 = vadd.f32 0.0, %v887
        %889 = vdwg.mxu0
        %890 = vmatpush.bf16.msra.mxu0 %v784
        %891 = vmatpush.bf16.msra.mxu0 %v783
        %892 = vmatpush.bf16.msra.mxu0 %v782
        %893 = vmatpush.bf16.msra.mxu0 %v781
        %894 = vmatpush.bf16.msra.mxu0 %v780
        %895 = vmatpush.bf16.msra.mxu0 %v779
        %896 = vmatpush.bf16.msra.mxu0 %v778
        %897 = vmatpush.bf16.msra.mxu0 %v777
        %898 = vmatmul.bf16.gmra.mxu0 %v642
        %v899 = vpop.f32.mrf.mxu0
        %v900 = vadd.f32 %v811, %v899
        %v901 = vpop.f32.mrf.mxu0
        %v902 = vadd.f32 %v813, %v901
        %903 = vmatmul.bf16.gmra.mxu0 %v644
        %v904 = vpop.f32.mrf.mxu0
        %v905 = vadd.f32 %v816, %v904
        %v906 = vpop.f32.mrf.mxu0
        %v907 = vadd.f32 %v818, %v906
        %908 = vmatmul.bf16.gmra.mxu0 %v646
        %v909 = vpop.f32.mrf.mxu0
        %v910 = vadd.f32 %v821, %v909
        %v911 = vpop.f32.mrf.mxu0
        %v912 = vadd.f32 %v823, %v911
        %913 = vmatmul.bf16.gmra.mxu0 %v648
        %v914 = vpop.f32.mrf.mxu0
        %v915 = vadd.f32 %v826, %v914
        %v916 = vpop.f32.mrf.mxu0
        %v917 = vadd.f32 %v828, %v916
        %918 = vmatmul.bf16.gmra.mxu0 %v650
        %v919 = vpop.f32.mrf.mxu0
        %v920 = vadd.f32 %v831, %v919
        %v921 = vpop.f32.mrf.mxu0
        %v922 = vadd.f32 %v833, %v921
        %923 = vmatmul.bf16.gmra.mxu0 %v652
        %v924 = vpop.f32.mrf.mxu0
        %v925 = vadd.f32 %v836, %v924
        %v926 = vpop.f32.mrf.mxu0
        %v927 = vadd.f32 %v838, %v926
        %928 = vmatmul.bf16.gmra.mxu0 %v654
        %v929 = vpop.f32.mrf.mxu0
        %v930 = vadd.f32 %v841, %v929
        %v931 = vpop.f32.mrf.mxu0
        %v932 = vadd.f32 %v843, %v931
        %933 = vmatmul.bf16.gmra.mxu0 %v656
        %v934 = vpop.f32.mrf.mxu0
        %v935 = vadd.f32 %v846, %v934
        %v936 = vpop.f32.mrf.mxu0
        %v937 = vadd.f32 %v848, %v936
        %938 = vmatmul.bf16.gmra.mxu0 %v658
        %v939 = vpop.f32.mrf.mxu0
        %v940 = vadd.f32 %v851, %v939
        %v941 = vpop.f32.mrf.mxu0
        %v942 = vadd.f32 %v853, %v941
        %943 = vmatmul.bf16.gmra.mxu0 %v660
        %v944 = vpop.f32.mrf.mxu0
        %v945 = vadd.f32 %v856, %v944
        %v946 = vpop.f32.mrf.mxu0
        %v947 = vadd.f32 %v858, %v946
        %948 = vmatmul.bf16.gmra.mxu0 %v662
        %v949 = vpop.f32.mrf.mxu0
        %v950 = vadd.f32 %v861, %v949
        %v951 = vpop.f32.mrf.mxu0
        %v952 = vadd.f32 %v863, %v951
        %953 = vmatmul.bf16.gmra.mxu0 %v664
        %v954 = vpop.f32.mrf.mxu0
        %v955 = vadd.f32 %v866, %v954
        %v956 = vpop.f32.mrf.mxu0
        %v957 = vadd.f32 %v868, %v956
        %958 = vmatmul.bf16.gmra.mxu0 %v666
        %v959 = vpop.f32.mrf.mxu0
        %v960 = vadd.f32 %v871, %v959
        %v961 = vpop.f32.mrf.mxu0
        %v962 = vadd.f32 %v873, %v961
        %963 = vmatmul.bf16.gmra.mxu0 %v668
        %v964 = vpop.f32.mrf.mxu0
        %v965 = vadd.f32 %v876, %v964
        %v966 = vpop.f32.mrf.mxu0
        %v967 = vadd.f32 %v878, %v966
        %968 = vmatmul.bf16.gmra.mxu0 %v670
        %v969 = vpop.f32.mrf.mxu0
        %v970 = vadd.f32 %v881, %v969
        %v971 = vpop.f32.mrf.mxu0
        %v972 = vadd.f32 %v883, %v971
        %973 = vmatmul.bf16.gmra.mxu0 %v672
        %v974 = vpop.f32.mrf.mxu0
        %v975 = vadd.f32 %v886, %v974
        %v976 = vpop.f32.mrf.mxu0
        %v977 = vadd.f32 %v888, %v976
        %978 = vdwg.mxu0
        %v979 = vadd.f32 %v449, %v900
        %v980 = vadd.f32 %v450, %v902
        %v981 = vadd.f32 %v451, %v905
        %v982 = vadd.f32 %v452, %v907
        %v983 = vadd.f32 %v453, %v910
        %v984 = vadd.f32 %v454, %v912
        %v985 = vadd.f32 %v455, %v915
        %v986 = vadd.f32 %v456, %v917
        %v987 = vadd.f32 %v457, %v920
        %v988 = vadd.f32 %v458, %v922
        %v989 = vadd.f32 %v459, %v925
        %v990 = vadd.f32 %v460, %v927
        %v991 = vadd.f32 %v461, %v930
        %v992 = vadd.f32 %v462, %v932
        %v993 = vadd.f32 %v463, %v935
        %v994 = vadd.f32 %v464, %v937
        %v995 = vadd.f32 %v465, %v940
        %v996 = vadd.f32 %v466, %v942
        %v997 = vadd.f32 %v467, %v945
        %v998 = vadd.f32 %v468, %v947
        %v999 = vadd.f32 %v469, %v950
        %v1000 = vadd.f32 %v470, %v952
        %v1001 = vadd.f32 %v471, %v955
        %v1002 = vadd.f32 %v472, %v957
        %v1003 = vadd.f32 %v473, %v960
        %v1004 = vadd.f32 %v474, %v962
        %v1005 = vadd.f32 %v475, %v965
        %v1006 = vadd.f32 %v476, %v967
        %v1007 = vadd.f32 %v477, %v970
        %v1008 = vadd.f32 %v478, %v972
        %v1009 = vadd.f32 %v479, %v975
        %v1010 = vadd.f32 %v480, %v977
        %1011 = vst [vmem:[#allocation2] sm:$0xff] %v979
        %1012 = vst [vmem:[#allocation2 + $0x8] sm:$0xff] %v980
        %1013 = vst [vmem:[#allocation2 + $0x10] sm:$0xff] %v981
        %1014 = vst [vmem:[#allocation2 + $0x18] sm:$0xff] %v982
        %1015 = vst [vmem:[#allocation2 + $0x20] sm:$0xff] %v983
        %1016 = vst [vmem:[#allocation2 + $0x28] sm:$0xff] %v984
        %1017 = vst [vmem:[#allocation2 + $0x30] sm:$0xff] %v985
        %1018 = vst [vmem:[#allocation2 + $0x38] sm:$0xff] %v986
        %1019 = vst [vmem:[#allocation2 + $0x40] sm:$0xff] %v987
        %1020 = vst [vmem:[#allocation2 + $0x48] sm:$0xff] %v988
        %1021 = vst [vmem:[#allocation2 + $0x50] sm:$0xff] %v989
        %1022 = vst [vmem:[#allocation2 + $0x58] sm:$0xff] %v990
        %1023 = vst [vmem:[#allocation2 + $0x60] sm:$0xff] %v991
        %1024 = vst [vmem:[#allocation2 + $0x68] sm:$0xff] %v992
        %1025 = vst [vmem:[#allocation2 + $0x70] sm:$0xff] %v993
        %1026 = vst [vmem:[#allocation2 + $0x78] sm:$0xff] %v994
        %1027 = vst [vmem:[#allocation2 + $0x80] sm:$0xff] %v995
        %1028 = vst [vmem:[#allocation2 + $0x88] sm:$0xff] %v996
        %1029 = vst [vmem:[#allocation2 + $0x90] sm:$0xff] %v997
        %1030 = vst [vmem:[#allocation2 + $0x98] sm:$0xff] %v998
        %1031 = vst [vmem:[#allocation2 + $0xa0] sm:$0xff] %v999
        %1032 = vst [vmem:[#allocation2 + $0xa8] sm:$0xff] %v1000
        %1033 = vst [vmem:[#allocation2 + $0xb0] sm:$0xff] %v1001
        %1034 = vst [vmem:[#allocation2 + $0xb8] sm:$0xff] %v1002
        %1035 = vst [vmem:[#allocation2 + $0xc0] sm:$0xff] %v1003
        %1036 = vst [vmem:[#allocation2 + $0xc8] sm:$0xff] %v1004
        %1037 = vst [vmem:[#allocation2 + $0xd0] sm:$0xff] %v1005
        %1038 = vst [vmem:[#allocation2 + $0xd8] sm:$0xff] %v1006
        %1039 = vst [vmem:[#allocation2 + $0xe0] sm:$0xff] %v1007
        %1040 = vst [vmem:[#allocation2 + $0xe8] sm:$0xff] %v1008
        %1041 = vst [vmem:[#allocation2 + $0xf0] sm:$0xff] %v1009
        %1042 = vst [vmem:[#allocation2 + $0xf8] sm:$0xff] %v1010
        %p1043 = scmp.eq.s32.totalorder %s21, 1
        // Predicated region
        $region75: #{mrnet_attention_forward.6} parent=65 // pred_check
          %p1044 = pneg %p1043
        $region76: #{mrnet_attention_forward.6} parent=65 // pred_check_branch
          %1046 = sbr.rel (%p1044) target = $region78
        $region77: #{mrnet_attention_forward.6} parent=65 // pred_region
          %v1047 = vld [vmem:[#allocation2] sm:$0xff]
          %v1048 = vld [vmem:[#allocation2 + $0x8] sm:$0xff]
          %v1049 = vld [vmem:[#allocation2 + $0x10] sm:$0xff]
          %v1050 = vld [vmem:[#allocation2 + $0x18] sm:$0xff]
          %v1051 = vld [vmem:[#allocation2 + $0x20] sm:$0xff]
          %v1052 = vld [vmem:[#allocation2 + $0x28] sm:$0xff]
          %v1053 = vld [vmem:[#allocation2 + $0x30] sm:$0xff]
          %v1054 = vld [vmem:[#allocation2 + $0x38] sm:$0xff]
          %v1055 = vld [vmem:[#allocation2 + $0x40] sm:$0xff]
          %v1056 = vld [vmem:[#allocation2 + $0x48] sm:$0xff]
          %v1057 = vld [vmem:[#allocation2 + $0x50] sm:$0xff]
          %v1058 = vld [vmem:[#allocation2 + $0x58] sm:$0xff]
          %v1059 = vld [vmem:[#allocation2 + $0x60] sm:$0xff]
          %v1060 = vld [vmem:[#allocation2 + $0x68] sm:$0xff]
          %v1061 = vld [vmem:[#allocation2 + $0x70] sm:$0xff]
          %v1062 = vld [vmem:[#allocation2 + $0x78] sm:$0xff]
          %v1063 = vld [vmem:[#allocation2 + $0x80] sm:$0xff]
          %v1064 = vld [vmem:[#allocation2 + $0x88] sm:$0xff]
          %v1065 = vld [vmem:[#allocation2 + $0x90] sm:$0xff]
          %v1066 = vld [vmem:[#allocation2 + $0x98] sm:$0xff]
          %v1067 = vld [vmem:[#allocation2 + $0xa0] sm:$0xff]
          %v1068 = vld [vmem:[#allocation2 + $0xa8] sm:$0xff]
          %v1069 = vld [vmem:[#allocation2 + $0xb0] sm:$0xff]
          %v1070 = vld [vmem:[#allocation2 + $0xb8] sm:$0xff]
          %v1071 = vld [vmem:[#allocation2 + $0xc0] sm:$0xff]
          %v1072 = vld [vmem:[#allocation2 + $0xc8] sm:$0xff]
          %v1073 = vld [vmem:[#allocation2 + $0xd0] sm:$0xff]
          %v1074 = vld [vmem:[#allocation2 + $0xd8] sm:$0xff]
          %v1075 = vld [vmem:[#allocation2 + $0xe0] sm:$0xff]
          %v1076 = vld [vmem:[#allocation2 + $0xe8] sm:$0xff]
          %v1077 = vld [vmem:[#allocation2 + $0xf0] sm:$0xff]
          %v1078 = vld [vmem:[#allocation2 + $0xf8] sm:$0xff]
          %v1079 = vld [vmem:[%s403] sm:$0x1]
          %v1081 = vperm.slane %v1079, 0
          %v1083 = vadd.f32 %v1047, %v1081
          %v1084 = vadd.f32 %v1048, %v1081
          %v1085 = vadd.f32 %v1049, %v1081
          %v1086 = vadd.f32 %v1050, %v1081
          %v1087 = vadd.f32 %v1051, %v1081
          %v1088 = vadd.f32 %v1052, %v1081
          %v1089 = vadd.f32 %v1053, %v1081
          %v1090 = vadd.f32 %v1054, %v1081
          %v1091 = vadd.f32 %v1055, %v1081
          %v1092 = vadd.f32 %v1056, %v1081
          %v1093 = vadd.f32 %v1057, %v1081
          %v1094 = vadd.f32 %v1058, %v1081
          %v1095 = vadd.f32 %v1059, %v1081
          %v1096 = vadd.f32 %v1060, %v1081
          %v1097 = vadd.f32 %v1061, %v1081
          %v1098 = vadd.f32 %v1062, %v1081
          %v1099 = vadd.f32 %v1063, %v1081
          %v1100 = vadd.f32 %v1064, %v1081
          %v1101 = vadd.f32 %v1065, %v1081
          %v1102 = vadd.f32 %v1066, %v1081
          %v1103 = vadd.f32 %v1067, %v1081
          %v1104 = vadd.f32 %v1068, %v1081
          %v1105 = vadd.f32 %v1069, %v1081
          %v1106 = vadd.f32 %v1070, %v1081
          %v1107 = vadd.f32 %v1071, %v1081
          %v1108 = vadd.f32 %v1072, %v1081
          %v1109 = vadd.f32 %v1073, %v1081
          %v1110 = vadd.f32 %v1074, %v1081
          %v1111 = vadd.f32 %v1075, %v1081
          %v1112 = vadd.f32 %v1076, %v1081
          %v1113 = vadd.f32 %v1077, %v1081
          %v1114 = vadd.f32 %v1078, %v1081
          %v1115 = vmax.f32 %v1083, 0.0
          %v1116 = vmax.f32 %v1084, 0.0
          %v1117 = vmax.f32 %v1085, 0.0
          %v1118 = vmax.f32 %v1086, 0.0
          %v1119 = vmax.f32 %v1087, 0.0
          %v1120 = vmax.f32 %v1088, 0.0
          %v1121 = vmax.f32 %v1089, 0.0
          %v1122 = vmax.f32 %v1090, 0.0
          %v1123 = vmax.f32 %v1091, 0.0
          %v1124 = vmax.f32 %v1092, 0.0
          %v1125 = vmax.f32 %v1093, 0.0
          %v1126 = vmax.f32 %v1094, 0.0
          %v1127 = vmax.f32 %v1095, 0.0
          %v1128 = vmax.f32 %v1096, 0.0
          %v1129 = vmax.f32 %v1097, 0.0
          %v1130 = vmax.f32 %v1098, 0.0
          %v1131 = vmax.f32 %v1099, 0.0
          %v1132 = vmax.f32 %v1100, 0.0
          %v1133 = vmax.f32 %v1101, 0.0
          %v1134 = vmax.f32 %v1102, 0.0
          %v1135 = vmax.f32 %v1103, 0.0
          %v1136 = vmax.f32 %v1104, 0.0
          %v1137 = vmax.f32 %v1105, 0.0
          %v1138 = vmax.f32 %v1106, 0.0
          %v1139 = vmax.f32 %v1107, 0.0
          %v1140 = vmax.f32 %v1108, 0.0
          %v1141 = vmax.f32 %v1109, 0.0
          %v1142 = vmax.f32 %v1110, 0.0
          %v1143 = vmax.f32 %v1111, 0.0
          %v1144 = vmax.f32 %v1112, 0.0
          %v1145 = vmax.f32 %v1113, 0.0
          %v1146 = vmax.f32 %v1114, 0.0
          %1147 = vst [vmem:[%s411] sm:$0xff] %v1115
          %1148 = vst [vmem:[%s411 + $0x8] sm:$0xff] %v1116
          %1149 = vst [vmem:[%s411 + $0x10] sm:$0xff] %v1117
          %1150 = vst [vmem:[%s411 + $0x18] sm:$0xff] %v1118
          %1151 = vst [vmem:[%s411 + $0x20] sm:$0xff] %v1119
          %1152 = vst [vmem:[%s411 + $0x28] sm:$0xff] %v1120
          %1153 = vst [vmem:[%s411 + $0x30] sm:$0xff] %v1121
          %1154 = vst [vmem:[%s411 + $0x38] sm:$0xff] %v1122
          %1155 = vst [vmem:[%s411 + $0x40] sm:$0xff] %v1123
          %1156 = vst [vmem:[%s411 + $0x48] sm:$0xff] %v1124
          %1157 = vst [vmem:[%s411 + $0x50] sm:$0xff] %v1125
          %1158 = vst [vmem:[%s411 + $0x58] sm:$0xff] %v1126
          %1159 = vst [vmem:[%s411 + $0x60] sm:$0xff] %v1127
          %1160 = vst [vmem:[%s411 + $0x68] sm:$0xff] %v1128
          %1161 = vst [vmem:[%s411 + $0x70] sm:$0xff] %v1129
          %1162 = vst [vmem:[%s411 + $0x78] sm:$0xff] %v1130
          %1163 = vst [vmem:[%s411 + $0x80] sm:$0xff] %v1131
          %1164 = vst [vmem:[%s411 + $0x88] sm:$0xff] %v1132
          %1165 = vst [vmem:[%s411 + $0x90] sm:$0xff] %v1133
          %1166 = vst [vmem:[%s411 + $0x98] sm:$0xff] %v1134
          %1167 = vst [vmem:[%s411 + $0xa0] sm:$0xff] %v1135
          %1168 = vst [vmem:[%s411 + $0xa8] sm:$0xff] %v1136
          %1169 = vst [vmem:[%s411 + $0xb0] sm:$0xff] %v1137
          %1170 = vst [vmem:[%s411 + $0xb8] sm:$0xff] %v1138
          %1171 = vst [vmem:[%s411 + $0xc0] sm:$0xff] %v1139
          %1172 = vst [vmem:[%s411 + $0xc8] sm:$0xff] %v1140
          %1173 = vst [vmem:[%s411 + $0xd0] sm:$0xff] %v1141
          %1174 = vst [vmem:[%s411 + $0xd8] sm:$0xff] %v1142
          %1175 = vst [vmem:[%s411 + $0xe0] sm:$0xff] %v1143
          %1176 = vst [vmem:[%s411 + $0xe8] sm:$0xff] %v1144
          %1177 = vst [vmem:[%s411 + $0xf0] sm:$0xff] %v1145
          %1178 = vst [vmem:[%s411 + $0xf8] sm:$0xff] %v1146
        $region78: #{mrnet_attention_forward.6} parent=65 // pred_fallthru
          _
        %s1179 = smul.u32 32, %s19
        %p1180 = scmp.lt.s32.totalorder %s1179, 127
        %s1181 = scalar_select %p1180, %s1179, 127
        %p1182 = scmp.lt.s32.totalorder %s20, 0
        %s1183 = scalar_select %p1182, %s20, 0
        %s1184 = sadd.s32 %s1183, %s1181
        %s1185 = smul.addr %s1184, 8
        %s1186 = scalar_lea.vmem %s3, %s1185
        // Predicated region
        $region79: #{mrnet_attention_forward.6} parent=65 // pred_check
          %p1187 = pneg %p135
        $region80: #{mrnet_attention_forward.6} parent=65 // pred_check_branch
          %1189 = sbr.rel (%p1187) target = $region82
        $region81: #{mrnet_attention_forward.6} parent=65 // pred_region
          %s1190 = smul.u32 32, %s19
        $region82: #{mrnet_attention_forward.6} parent=65 // pred_fallthru
          _
      $region66: #{mrnet_attention_forward.6} parent=5 // pred_fallthru
        _
      %p1191 = scmp.le.s32.totalorder 2, %s9
      // Predicated region
      $region83: #{mrnet_attention_forward.6} parent=5 // pred_check
        %p1192 = pneg %p1191
      $region84: #{mrnet_attention_forward.6} parent=5 // pred_check_branch
        %1194 = sbr.rel (%p1192) target = $region86
      $region85: #{mrnet_attention_forward.6} parent=5 // pred_region
        %s1195 = ssub.s32 %s9, 2
        // Predicated region
        $region87: #{mrnet_attention_forward.6} parent=85 // pred_check
          %p1196 = pneg %p141
        $region88: #{mrnet_attention_forward.6} parent=85 // pred_check_branch
          %1198 = sbr.rel (%p1196) target = $region90
        $region89: #{mrnet_attention_forward.6} parent=85 // pred_region
          %s1199 = smul.u32 32, %s22
          %p1200 = scmp.lt.s32.totalorder %s1199, 127
          %s1201 = scalar_select %p1200, %s1199, 127
          %p1202 = scmp.lt.s32.totalorder %s23, 0
          %s1203 = scalar_select %p1202, %s23, 0
          %s1204 = sadd.s32 %s1203, %s1201
          %s1205 = smul.addr %s1204, 8
          %s1206 = scalar_lea.vmem %s3, %s1205
        $region90: #{mrnet_attention_forward.6} parent=85 // pred_fallthru
          _
      $region86: #{mrnet_attention_forward.6} parent=5 // pred_fallthru
        _
    $region6: #{mrnet_attention_forward.6} parent=1 // loop_footer
      %s13 = sadd.s32 1, %s9
    $region7: #{mrnet_attention_forward.6} parent=1 // loop_footer_branch
      %8 = sbr.rel target = $region3
    $region8: #{mrnet_attention_forward.6} parent=1 // loop_exit
      _

// kernel: mrnet_attention_forward.7
$region0: #{mrnet_attention_forward.7}
  #allocation0 [shape = 'u32[]', space=smem, size = 0x4, offset = 0x4, fixed_abs, tag = 'smem constant byte address 0x4 - core index']
  #allocation1 [shape = 'u32[72,128]{1,0:T(1,128)}', space=vmem, size = 0x9000, scoped, tag = 'internal scratch']
  #allocation2 [shape = 'f32[200,256]{1,0:T(8,128)}', space=vmem, size = 0x32000, scoped, tag = 'scratch operand']
  %s0 = inlined_call_operand.vmem [shape: bf16[200,1792], index: 0, kind: input, shape index: {}]
  %s1 = inlined_call_operand.vmem [shape: bf16[1792,256], index: 1, kind: input, shape index: {}]
  %s2 = inlined_call_operand.vmem [shape: f32[1,256], index: 2, kind: input, shape index: {}]
  %s3 = inlined_call_operand.vmem [shape: f32[200,256], index: 3, kind: output, shape index: {}]
  %s4 = sld [smem:[#allocation0]]
  $region91: #{mrnet_attention_forward.7} parent=0
    _
  %s6 = ssub.s32 1, %s4
  %s7 = scalar_select 0, %s6, %s4
  $region1: #{mrnet_attention_forward.7} parent=0
    #allocation3 [shape = 'u8[204800]{0}', space=vmem, size = 0x32000, scoped, tag = 'input window, operand 0']
    loop: start=0, step=1, limit=9
    $region2: #{mrnet_attention_forward.7} parent=1 // loop_pre_header
      _
    $region3: #{mrnet_attention_forward.7} parent=1 // loop_header
      %s9 = sphi 0, %s13
      %p10 = scmp.ge.s32.totalorder %s9, 9
      %s16 = sphi 0, %s35
      %s17 = sphi 0, %s31
      %s18 = sphi 0, %s27
      %s19 = sphi 0, %s16
      %s20 = sphi 0, %s17
      %s21 = sphi 0, %s18
      %s22 = sphi 0, %s19
      %s23 = sphi 0, %s20
      %s24 = sphi 0, %s21
      %s40 = sphi 0, %s42
      %s43 = sphi 0, %s40
      %s44 = sphi 0, %s43
      %s60 = sphi 0, %s44
      %s68 = sphi 0, %s70
      %s71 = sphi 0, %s68
      %s72 = sphi 0, %s71
      %s88 = sphi 0, %s72
      %s94 = sphi 0, %s96
      %s97 = sphi 0, %s94
      %s98 = sphi 0, %s97
      %s114 = sphi 0, %s98
      %s122 = sphi 0, %s124
      %s125 = sphi 0, %s122
      %s126 = sphi 0, %s125
      %s142 = sphi 0, %s126
    $region4: #{mrnet_attention_forward.7} parent=1 // loop_header_branch
      %12 = sbr.rel (%p10) target = $region8
    $region5: #{mrnet_attention_forward.7} parent=1 // loop_body
      %s14 = ssub.s32 %s9, 1
      %s15 = ssub.s32 %s9, 2
      %s25 = sadd.s32 1, %s18
      %p26 = scmp.ge.s32.totalorder %s25, 7
      %s27 = scalar_select %p26, 0, %s25
      %s28 = sadd.s32 1, %s17
      %s29 = scalar_select %p26, %s28, %s17
      %p30 = scmp.ge.s32.totalorder %s29, 1
      %s31 = scalar_select %p30, 0, %s29
      %s32 = sadd.s32 1, %s16
      %s33 = scalar_select %p30, %s32, %s16
      %p34 = scmp.ge.s32.totalorder %s33, 1
      %s35 = scalar_select %p34, 0, %s33
      %s36 = ssub.s32 %s16, %s35
      %s37 = ssub.s32 %s18, %s27
      %s38 = sor.u32 %s36, %s37
      %p39 = scmp.eq.s32.totalorder %s38, 0
      %s41 = sadd.s32 %s40, 1
      %s42 = scalar_select %p39, %s40, %s41
      %p45 = pneg %p39
      %p46 = scmp.eq.s32.totalorder %s9, 6
      %p47 = por %p45, %p46
      %p48 = scmp.ne.s32.totalorder %s40, %s43
      %p49 = scmp.eq.s32.totalorder %s9, 0
      %p50 = por %p48, %p49
      %p51 = scmp.ne.s32.totalorder %s40, %s43
      %p52 = scmp.eq.s32.totalorder %s14, 6
      %p53 = por %p51, %p52
      %p54 = scmp.ne.s32.totalorder %s43, %s44
      %p55 = scmp.eq.s32.totalorder %s14, 0
      %p56 = por %p54, %p55
      %p57 = scmp.ne.s32.totalorder %s43, %s44
      %p58 = scmp.eq.s32.totalorder %s15, 6
      %p59 = por %p57, %p58
      %p61 = scmp.ne.s32.totalorder %s44, %s60
      %p62 = scmp.eq.s32.totalorder %s15, 0
      %p63 = por %p61, %p62
      %s64 = ssub.s32 %s18, %s27
      %s65 = ssub.s32 %s17, %s31
      %s66 = sor.u32 %s64, %s65
      %p67 = scmp.eq.s32.totalorder %s66, 0
      %s69 = sadd.s32 %s68, 1
      %s70 = scalar_select %p67, %s68, %s69
      %p73 = pneg %p67
      %p74 = scmp.eq.s32.totalorder %s9, 6
      %p75 = por %p73, %p74
      %p76 = scmp.ne.s32.totalorder %s68, %s71
      %p77 = scmp.eq.s32.totalorder %s9, 0
      %p78 = por %p76, %p77
      %p79 = scmp.ne.s32.totalorder %s68, %s71
      %p80 = scmp.eq.s32.totalorder %s14, 6
      %p81 = por %p79, %p80
      %p82 = scmp.ne.s32.totalorder %s71, %s72
      %p83 = scmp.eq.s32.totalorder %s14, 0
      %p84 = por %p82, %p83
      %p85 = scmp.ne.s32.totalorder %s71, %s72
      %p86 = scmp.eq.s32.totalorder %s15, 6
      %p87 = por %p85, %p86
      %p89 = scmp.ne.s32.totalorder %s72, %s88
      %p90 = scmp.eq.s32.totalorder %s15, 0
      %p91 = por %p89, %p90
      %s92 = ssub.s32 %s17, %s31
      %p93 = scmp.eq.s32.totalorder %s92, 0
      %s95 = sadd.s32 %s94, 1
      %s96 = scalar_select %p93, %s94, %s95
      %p99 = pneg %p93
      %p100 = scmp.eq.s32.totalorder %s9, 6
      %p101 = por %p99, %p100
      %p102 = scmp.ne.s32.totalorder %s94, %s97
      %p103 = scmp.eq.s32.totalorder %s9, 0
      %p104 = por %p102, %p103
      %p105 = scmp.ne.s32.totalorder %s94, %s97
      %p106 = scmp.eq.s32.totalorder %s14, 6
      %p107 = por %p105, %p106
      %p108 = scmp.ne.s32.totalorder %s97, %s98
      %p109 = scmp.eq.s32.totalorder %s14, 0
      %p110 = por %p108, %p109
      %p111 = scmp.ne.s32.totalorder %s97, %s98
      %p112 = scmp.eq.s32.totalorder %s15, 6
      %p113 = por %p111, %p112
      %p115 = scmp.ne.s32.totalorder %s98, %s114
      %p116 = scmp.eq.s32.totalorder %s15, 0
      %p117 = por %p115, %p116
      %s118 = ssub.s32 %s16, %s35
      %s119 = ssub.s32 %s17, %s31
      %s120 = sor.u32 %s118, %s119
      %p121 = scmp.eq.s32.totalorder %s120, 0
      %s123 = sadd.s32 %s122, 1
      %s124 = scalar_select %p121, %s122, %s123
      %p127 = pneg %p121
      %p128 = scmp.eq.s32.totalorder %s9, 6
      %p129 = por %p127, %p128
      %p130 = scmp.ne.s32.totalorder %s122, %s125
      %p131 = scmp.eq.s32.totalorder %s9, 0
      %p132 = por %p130, %p131
      %p133 = scmp.ne.s32.totalorder %s122, %s125
      %p134 = scmp.eq.s32.totalorder %s14, 6
      %p135 = por %p133, %p134
      %p136 = scmp.ne.s32.totalorder %s125, %s126
      %p137 = scmp.eq.s32.totalorder %s14, 0
      %p138 = por %p136, %p137
      %p139 = scmp.ne.s32.totalorder %s125, %s126
      %p140 = scmp.eq.s32.totalorder %s15, 6
      %p141 = por %p139, %p140
      %p143 = scmp.ne.s32.totalorder %s126, %s142
      %p144 = scmp.eq.s32.totalorder %s15, 0
      %p145 = por %p143, %p144
      %p146 = scmp.le.s32.totalorder 1, %s9
      %p147 = scmp.lt.s32.totalorder %s9, 8
      %p148 = pnand %p146, %p147
      %p149 = pneg %p148
      // Predicated region
      $region9: #{mrnet_attention_forward.7} parent=5 // pred_check
        _
      $region10: #{mrnet_attention_forward.7} parent=5 // pred_check_branch
        %151 = sbr.rel (%p148) target = $region12
      $region11: #{mrnet_attention_forward.7} parent=5 // pred_region
        %s152 = ssub.s32 %s9, 1
        // Predicated region
        $region13: #{mrnet_attention_forward.7} parent=11 // pred_check
          %p153 = pneg %p110
        $region14: #{mrnet_attention_forward.7} parent=11 // pred_check_branch
          %155 = sbr.rel (%p153) target = $region16
        $region15: #{mrnet_attention_forward.7} parent=11 // pred_region
          %s156 = smul.u32 2, %s20
          %p157 = scmp.lt.s32.totalorder %s156, 1
          %s158 = scalar_select %p157, %s156, 1
          %s159 = scalar_lea.vmem %s2, %s158
          %s160 = smul.u32 2, %s20
        $region16: #{mrnet_attention_forward.7} parent=11 // pred_fallthru
          _
      $region12: #{mrnet_attention_forward.7} parent=5 // pred_fallthru
        _
      %p161 = scmp.lt.s32.totalorder %s9, 7
      // Predicated region
      $region17: #{mrnet_attention_forward.7} parent=5 // pred_check
        %p162 = pneg %p161
      $region18: #{mrnet_attention_forward.7} parent=5 // pred_check_branch
        %164 = sbr.rel (%p162) target = $region20
      $region19: #{mrnet_attention_forward.7} parent=5 // pred_region
        // Predicated region
        $region21: #{mrnet_attention_forward.7} parent=19 // pred_check
          %p165 = pneg %p50
        $region22: #{mrnet_attention_forward.7} parent=19 // pred_check_branch
          %167 = sbr.rel (%p165) target = $region24
        $region23: #{mrnet_attention_forward.7} parent=19 // pred_region
          %s168 = sand.u32 %s40, 1
          %s169 = sand.u32 %s40, 1
          %s170 = smul.addr %s169, 200
          %s171 = scalar_lea.vmem [#allocation3], %s170
          %s172 = smul.u32 25, %s16
          %s173 = smul.u32 2, %s18
          %s174 = smul.addr %s172, 14
          %s175 = sadd.s32 %s173, %s174
          %s176 = smul.addr %s175, 4
          %s177 = scalar_lea.vmem %s0, %s176
          // Predicated region
          $region25: #{mrnet_attention_forward.7} parent=23 // pred_check
            _
          $region26: #{mrnet_attention_forward.7} parent=23 // pred_check_branch
            %179 = sbr.rel (0) target = $region28
          $region27: #{mrnet_attention_forward.7} parent=23 // pred_region
            // Predicated region
            $region29: #{mrnet_attention_forward.7} parent=27 // pred_check
              _
            $region30: #{mrnet_attention_forward.7} parent=27 // pred_check_branch
              %181 = sbr.rel (0) target = $region32
            $region31: #{mrnet_attention_forward.7} parent=27 // pred_region
              // Predicated region
              $region44: #{mrnet_attention_forward.7} parent=31 // pred_check
                _
              $region45: #{mrnet_attention_forward.7} parent=31 // pred_check_branch
                %245 = sbr.rel (0) target = $region47
              $region46: #{mrnet_attention_forward.7} parent=31 // pred_region
                loop: start=0, step=1, limit=1
                $region48: #{mrnet_attention_forward.7} parent=46 // loop_pre_header
                  _
                $region49: #{mrnet_attention_forward.7} parent=46 // loop_header
                  %s247 = sphi 0, %s251
                  %p248 = scmp.ge.s32.totalorder %s247, 1
                  %s252 = sphi %s177, %s177
                  %s253 = sphi %s171, %s171
                $region50: #{mrnet_attention_forward.7} parent=46 // loop_header_branch
                  %250 = sbr.rel (%p248) target = $region54
                $region51: #{mrnet_attention_forward.7} parent=46 // loop_body
                  %v254 = vld [vmem:[%s252] sm:$0xff]
                  %255 = vst [vmem:[%s253] sm:$0xff] %v254
                  %v256 = vld [vmem:[%s252 + $0x38] sm:$0xff]
                  %257 = vst [vmem:[%s253 + $0x8] sm:$0xff] %v256
                  %v258 = vld [vmem:[%s252 + $0x70] sm:$0xff]
                  %259 = vst [vmem:[%s253 + $0x10] sm:$0xff] %v258
                  %v260 = vld [vmem:[%s252 + $0xa8] sm:$0xff]
                  %261 = vst [vmem:[%s253 + $0x18] sm:$0xff] %v260
                  %v262 = vld [vmem:[%s252 + $0xe0] sm:$0xff]
                  %263 = vst [vmem:[%s253 + $0x20] sm:$0xff] %v262
                  %v264 = vld [vmem:[%s252 + $0x118] sm:$0xff]
                  %265 = vst [vmem:[%s253 + $0x28] sm:$0xff] %v264
                  %v266 = vld [vmem:[%s252 + $0x150] sm:$0xff]
                  %267 = vst [vmem:[%s253 + $0x30] sm:$0xff] %v266
                  %v268 = vld [vmem:[%s252 + $0x188] sm:$0xff]
                  %269 = vst [vmem:[%s253 + $0x38] sm:$0xff] %v268
                  %v270 = vld [vmem:[%s252 + $0x1c0] sm:$0xff]
                  %271 = vst [vmem:[%s253 + $0x40] sm:$0xff] %v270
                  %v272 = vld [vmem:[%s252 + $0x1f8] sm:$0xff]
                  %273 = vst [vmem:[%s253 + $0x48] sm:$0xff] %v272
                  %v274 = vld [vmem:[%s252 + $0x230] sm:$0xff]
                  %275 = vst [vmem:[%s253 + $0x50] sm:$0xff] %v274
                  %v276 = vld [vmem:[%s252 + $0x268] sm:$0xff]
                  %277 = vst [vmem:[%s253 + $0x58] sm:$0xff] %v276
                  %v278 = vld [vmem:[%s252 + $0x2a0] sm:$0xff]
                  %279 = vst [vmem:[%s253 + $0x60] sm:$0xff] %v278
                  %v280 = vld [vmem:[%s252 + $0x2d8] sm:$0xff]
                  %281 = vst [vmem:[%s253 + $0x68] sm:$0xff] %v280
                  %v282 = vld [vmem:[%s252 + $0x310] sm:$0xff]
                  %283 = vst [vmem:[%s253 + $0x70] sm:$0xff] %v282
                  %v284 = vld [vmem:[%s252 + $0x348] sm:$0xff]
                  %285 = vst [vmem:[%s253 + $0x78] sm:$0xff] %v284
                  %v286 = vld [vmem:[%s252 + $0x380] sm:$0xff]
                  %287 = vst [vmem:[%s253 + $0x80] sm:$0xff] %v286
                  %v288 = vld [vmem:[%s252 + $0x3b8] sm:$0xff]
                  %289 = vst [vmem:[%s253 + $0x88] sm:$0xff] %v288
                  %v290 = vld [vmem:[%s252 + $0x3f0] sm:$0xff]
                  %291 = vst [vmem:[%s253 + $0x90] sm:$0xff] %v290
                  %v292 = vld [vmem:[%s252 + $0x428] sm:$0xff]
                  %293 = vst [vmem:[%s253 + $0x98] sm:$0xff] %v292
                  %v294 = vld [vmem:[%s252 + $0x460] sm:$0xff]
                  %295 = vst [vmem:[%s253 + $0xa0] sm:$0xff] %v294
                  %v296 = vld [vmem:[%s252 + $0x498] sm:$0xff]
                  %297 = vst [vmem:[%s253 + $0xa8] sm:$0xff] %v296
                  %v298 = vld [vmem:[%s252 + $0x4d0] sm:$0xff]
                  %299 = vst [vmem:[%s253 + $0xb0] sm:$0xff] %v298
                  %v300 = vld [vmem:[%s252 + $0x508] sm:$0xff]
                  %301 = vst [vmem:[%s253 + $0xb8] sm:$0xff] %v300
                  %v302 = vld [vmem:[%s252 + $0x540] sm:$0xff]
                  %303 = vst [vmem:[%s253 + $0xc0] sm:$0xff] %v302
                $region52: #{mrnet_attention_forward.7} parent=46 // loop_footer
                  %s251 = sadd.s32 1, %s247
                $region53: #{mrnet_attention_forward.7} parent=46 // loop_footer_branch
                  %246 = sbr.rel target = $region49
                $region54: #{mrnet_attention_forward.7} parent=46 // loop_exit
                  _
              $region47: #{mrnet_attention_forward.7} parent=31 // pred_fallthru
                _
              // Predicated region
              $region55: #{mrnet_attention_forward.7} parent=31 // pred_check
                _
              $region56: #{mrnet_attention_forward.7} parent=31 // pred_check_branch
                %305 = sbr.rel target = $region58
              $region57: #{mrnet_attention_forward.7} parent=31 // pred_region
                _
              $region58: #{mrnet_attention_forward.7} parent=31 // pred_fallthru
                _
            $region32: #{mrnet_attention_forward.7} parent=27 // pred_fallthru
              _
            // Predicated region
            $region33: #{mrnet_attention_forward.7} parent=27 // pred_check
              _
            $region34: #{mrnet_attention_forward.7} parent=27 // pred_check_branch
              %183 = sbr.rel target = $region36
            $region35: #{mrnet_attention_forward.7} parent=27 // pred_region
              %s185 = ssub.s32 256, 1
              loop: start=0, step=1, limit=1
              $region37: #{mrnet_attention_forward.7} parent=35 // loop_pre_header
                _
              $region38: #{mrnet_attention_forward.7} parent=35 // loop_header
                %s187 = sphi 0, %s191
                %p188 = scmp.ge.s32.totalorder %s187, 1
                %s192 = sphi %s177, %s177
                %s193 = sphi %s171, %s171
              $region39: #{mrnet_attention_forward.7} parent=35 // loop_header_branch
                %190 = sbr.rel (%p188) target = $region43
              $region40: #{mrnet_attention_forward.7} parent=35 // loop_body
                %v194 = vld [vmem:[%s192] sm:%s185]
                %195 = vst [vmem:[%s193] sm:%s185] %v194
                %v196 = vld [vmem:[%s192 + $0x38] sm:%s185]
                %197 = vst [vmem:[%s193 + $0x8] sm:%s185] %v196
                %v198 = vld [vmem:[%s192 + $0x70] sm:%s185]
                %199 = vst [vmem:[%s193 + $0x10] sm:%s185] %v198
                %v200 = vld [vmem:[%s192 + $0xa8] sm:%s185]
                %201 = vst [vmem:[%s193 + $0x18] sm:%s185] %v200
                %v202 = vld [vmem:[%s192 + $0xe0] sm:%s185]
                %203 = vst [vmem:[%s193 + $0x20] sm:%s185] %v202
                %v204 = vld [vmem:[%s192 + $0x118] sm:%s185]
                %205 = vst [vmem:[%s193 + $0x28] sm:%s185] %v204
                %v206 = vld [vmem:[%s192 + $0x150] sm:%s185]
                %207 = vst [vmem:[%s193 + $0x30] sm:%s185] %v206
                %v208 = vld [vmem:[%s192 + $0x188] sm:%s185]
                %209 = vst [vmem:[%s193 + $0x38] sm:%s185] %v208
                %v210 = vld [vmem:[%s192 + $0x1c0] sm:%s185]
                %211 = vst [vmem:[%s193 + $0x40] sm:%s185] %v210
                %v212 = vld [vmem:[%s192 + $0x1f8] sm:%s185]
                %213 = vst [vmem:[%s193 + $0x48] sm:%s185] %v212
                %v214 = vld [vmem:[%s192 + $0x230] sm:%s185]
                %215 = vst [vmem:[%s193 + $0x50] sm:%s185] %v214
                %v216 = vld [vmem:[%s192 + $0x268] sm:%s185]
                %217 = vst [vmem:[%s193 + $0x58] sm:%s185] %v216
                %v218 = vld [vmem:[%s192 + $0x2a0] sm:%s185]
                %219 = vst [vmem:[%s193 + $0x60] sm:%s185] %v218
                %v220 = vld [vmem:[%s192 + $0x2d8] sm:%s185]
                %221 = vst [vmem:[%s193 + $0x68] sm:%s185] %v220
                %v222 = vld [vmem:[%s192 + $0x310] sm:%s185]
                %223 = vst [vmem:[%s193 + $0x70] sm:%s185] %v222
                %v224 = vld [vmem:[%s192 + $0x348] sm:%s185]
                %225 = vst [vmem:[%s193 + $0x78] sm:%s185] %v224
                %v226 = vld [vmem:[%s192 + $0x380] sm:%s185]
                %227 = vst [vmem:[%s193 + $0x80] sm:%s185] %v226
                %v228 = vld [vmem:[%s192 + $0x3b8] sm:%s185]
                %229 = vst [vmem:[%s193 + $0x88] sm:%s185] %v228
                %v230 = vld [vmem:[%s192 + $0x3f0] sm:%s185]
                %231 = vst [vmem:[%s193 + $0x90] sm:%s185] %v230
                %v232 = vld [vmem:[%s192 + $0x428] sm:%s185]
                %233 = vst [vmem:[%s193 + $0x98] sm:%s185] %v232
                %v234 = vld [vmem:[%s192 + $0x460] sm:%s185]
                %235 = vst [vmem:[%s193 + $0xa0] sm:%s185] %v234
                %v236 = vld [vmem:[%s192 + $0x498] sm:%s185]
                %237 = vst [vmem:[%s193 + $0xa8] sm:%s185] %v236
                %v238 = vld [vmem:[%s192 + $0x4d0] sm:%s185]
                %239 = vst [vmem:[%s193 + $0xb0] sm:%s185] %v238
                %v240 = vld [vmem:[%s192 + $0x508] sm:%s185]
                %241 = vst [vmem:[%s193 + $0xb8] sm:%s185] %v240
                %v242 = vld [vmem:[%s192 + $0x540] sm:%s185]
                %243 = vst [vmem:[%s193 + $0xc0] sm:%s185] %v242
              $region41: #{mrnet_attention_forward.7} parent=35 // loop_footer
                %s191 = sadd.s32 1, %s187
              $region42: #{mrnet_attention_forward.7} parent=35 // loop_footer_branch
                %186 = sbr.rel target = $region38
              $region43: #{mrnet_attention_forward.7} parent=35 // loop_exit
                _
            $region36: #{mrnet_attention_forward.7} parent=27 // pred_fallthru
              _
          $region28: #{mrnet_attention_forward.7} parent=23 // pred_fallthru
            _
          %306 = vnop
        $region24: #{mrnet_attention_forward.7} parent=19 // pred_fallthru
          _
        // Predicated region
        $region59: #{mrnet_attention_forward.7} parent=19 // pred_check
          %p307 = pneg %p78
        $region60: #{mrnet_attention_forward.7} parent=19 // pred_check_branch
          %309 = sbr.rel (%p307) target = $region62
        $region61: #{mrnet_attention_forward.7} parent=19 // pred_region
          %s310 = smul.u32 32, %s18
          %s311 = smul.u32 2, %s17
          %p312 = scmp.lt.s32.totalorder %s310, 223
          %s313 = scalar_select %p312, %s310, 223
          %p314 = scmp.lt.s32.totalorder %s311, 1
          %s315 = scalar_select %p314, %s311, 1
          %s316 = smul.addr %s313, 2
          %s317 = sadd.s32 %s315, %s316
          %s318 = smul.addr %s317, 4
          %s319 = scalar_lea.vmem %s1, %s318
          %s320 = smul.u32 32, %s18
          %s321 = smul.u32 2, %s17
        $region62: #{mrnet_attention_forward.7} parent=19 // pred_fallthru
          _
      $region20: #{mrnet_attention_forward.7} parent=5 // pred_fallthru
        _
      %p322 = scmp.le.s32.totalorder 1, %s9
      %p323 = scmp.lt.s32.totalorder %s9, 8
      %p324 = pnand %p322, %p323
      %p325 = pneg %p324
      // Predicated region
      $region63: #{mrnet_attention_forward.7} parent=5 // pred_check
        _
      $region64: #{mrnet_attention_forward.7} parent=5 // pred_check_branch
        %327 = sbr.rel (%p324) target = $region66
      $region65: #{mrnet_attention_forward.7} parent=5 // pred_region
        %s328 = ssub.s32 %s9, 1
        %s329 = sand.u32 %s43, 1
        %s330 = sand.u32 %s43, 1
        %s331 = smul.addr %s330, 200
        %s332 = scalar_lea.vmem [#allocation3], %s331
        // Predicated region
        $region67: #{mrnet_attention_forward.7} parent=65 // pred_check
          %p333 = pneg %p56
        $region68: #{mrnet_attention_forward.7} parent=65 // pred_check_branch
          %335 = sbr.rel (%p333) target = $region70
        $region69: #{mrnet_attention_forward.7} parent=65 // pred_region
          _
        $region70: #{mrnet_attention_forward.7} parent=65 // pred_fallthru
          _
        %s336 = sand.u32 %s43, 1
        %s337 = sand.u32 %s43, 1
        %s338 = smul.addr %s337, 200
        %s339 = scalar_lea.vmem [#allocation3], %s338
        %p340 = pneg %p56
        %p341 = pneg %p53
        %s342 = smul.u32 32, %s21
        %s343 = smul.u32 2, %s20
        %p344 = scmp.lt.s32.totalorder %s342, 223
        %s345 = scalar_select %p344, %s342, 223
        %p346 = scmp.lt.s32.totalorder %s343, 1
        %s347 = scalar_select %p346, %s343, 1
        %s348 = smul.addr %s345, 2
        %s349 = sadd.s32 %s347, %s348
        %s350 = smul.addr %s349, 4
        %s351 = scalar_lea.vmem %s1, %s350
        %p352 = pneg %p84
        %p353 = pneg %p81
        %s354 = smul.u32 2, %s20
        %p355 = scmp.lt.s32.totalorder %s354, 1
        %s356 = scalar_select %p355, %s354, 1
        %s357 = scalar_lea.vmem %s2, %s356
        %p358 = pneg %p110
        %p359 = pneg %p107
        %p360 = pneg %p138
        %p361 = pneg %p135
        %s362 = smul.u32 25, %s19
        %s363 = smul.u32 2, %s20
        %p364 = scmp.lt.s32.totalorder %s362, 24
        %s365 = scalar_select %p364, %s362, 24
        %p366 = scmp.lt.s32.totalorder %s363, 1
        %s367 = scalar_select %p366, %s363, 1
        %s368 = smul.addr %s365, 2
        %s369 = sadd.s32 %s367, %s368
        %s370 = smul.addr %s369, 8
        %s371 = scalar_lea.vmem %s3, %s370
        %s372 = smul.u32 25, %s19
        %s373 = smul.u32 2, %s21
        %s374 = smul.u32 32, %s21
        %s375 = smul.u32 2, %s20
        %p376 = scmp.lt.s32.totalorder %s374, 223
        %s377 = scalar_select %p376, %s374, 223
        %p378 = scmp.lt.s32.totalorder %s375, 1
        %s379 = scalar_select %p378, %s375, 1
        %s380 = smul.addr %s377, 2
        %s381 = sadd.s32 %s379, %s380
        %s382 = smul.addr %s381, 4
        %s383 = scalar_lea.vmem %s1, %s382
        %s384 = smul.u32 32, %s21
        %s385 = smul.u32 2, %s20
        %s386 = smul.u32 2, %s20
        %p387 = scmp.lt.s32.totalorder %s386, 1
        %s388 = scalar_select %p387, %s386, 1
        %s389 = scalar_lea.vmem %s2, %s388
        %s390 = smul.u32 2, %s20
        %s391 = smul.u32 25, %s19
        %s392 = smul.u32 2, %s20
        %p393 = scmp.lt.s32.totalorder %s391, 24
        %s394 = scalar_select %p393, %s391, 24
        %p395 = scmp.lt.s32.totalorder %s392, 1
        %s396 = scalar_select %p395, %s392, 1
        %s397 = smul.addr %s394, 2
        %s398 = sadd.s32 %s396, %s397
        %s399 = smul.addr %s398, 8
        %s400 = scalar_lea.vmem %s3, %s399
        %s401 = smul.u32 25, %s19
        %s402 = smul.u32 2, %s20
        %p403 = scmp.eq.s32.totalorder %s21, 0
        // Predicated region
        $region71: #{mrnet_attention_forward.7} parent=65 // pred_check
          %p404 = pneg %p403
        $region72: #{mrnet_attention_forward.7} parent=65 // pred_check_branch
          %406 = sbr.rel (%p404) target = $region74
        $region73: #{mrnet_attention_forward.7} parent=65 // pred_region
          %407 = vst [vmem:[#allocation2] sm:$0xff] 0.0
          %408 = vst [vmem:[#allocation2 + $0x8] sm:$0xff] 0.0
          %409 = vst [vmem:[#allocation2 + $0x10] sm:$0xff] 0.0
          %410 = vst [vmem:[#allocation2 + $0x18] sm:$0xff] 0.0
          %411 = vst [vmem:[#allocation2 + $0x20] sm:$0xff] 0.0
          %412 = vst [vmem:[#allocation2 + $0x28] sm:$0xff] 0.0
          %413 = vst [vmem:[#allocation2 + $0x30] sm:$0xff] 0.0
          %414 = vst [vmem:[#allocation2 + $0x38] sm:$0xff] 0.0
          %415 = vst [vmem:[#allocation2 + $0x40] sm:$0xff] 0.0
          %416 = vst [vmem:[#allocation2 + $0x48] sm:$0xff] 0.0
          %417 = vst [vmem:[#allocation2 + $0x50] sm:$0xff] 0.0
          %418 = vst [vmem:[#allocation2 + $0x58] sm:$0xff] 0.0
          %419 = vst [vmem:[#allocation2 + $0x60] sm:$0xff] 0.0
          %420 = vst [vmem:[#allocation2 + $0x68] sm:$0xff] 0.0
          %421 = vst [vmem:[#allocation2 + $0x70] sm:$0xff] 0.0
          %422 = vst [vmem:[#allocation2 + $0x78] sm:$0xff] 0.0
          %423 = vst [vmem:[#allocation2 + $0x80] sm:$0xff] 0.0
          %424 = vst [vmem:[#allocation2 + $0x88] sm:$0xff] 0.0
          %425 = vst [vmem:[#allocation2 + $0x90] sm:$0xff] 0.0
          %426 = vst [vmem:[#allocation2 + $0x98] sm:$0xff] 0.0
          %427 = vst [vmem:[#allocation2 + $0xa0] sm:$0xff] 0.0
          %428 = vst [vmem:[#allocation2 + $0xa8] sm:$0xff] 0.0
          %429 = vst [vmem:[#allocation2 + $0xb0] sm:$0xff] 0.0
          %430 = vst [vmem:[#allocation2 + $0xb8] sm:$0xff] 0.0
          %431 = vst [vmem:[#allocation2 + $0xc0] sm:$0xff] 0.0
          %432 = vst [vmem:[#allocation2 + $0xc8] sm:$0xff] 0.0
          %433 = vst [vmem:[#allocation2 + $0xd0] sm:$0xff] 0.0
          %434 = vst [vmem:[#allocation2 + $0xd8] sm:$0xff] 0.0
          %435 = vst [vmem:[#allocation2 + $0xe0] sm:$0xff] 0.0
          %436 = vst [vmem:[#allocation2 + $0xe8] sm:$0xff] 0.0
          %437 = vst [vmem:[#allocation2 + $0xf0] sm:$0xff] 0.0
          %438 = vst [vmem:[#allocation2 + $0xf8] sm:$0xff] 0.0
          %439 = vst [vmem:[#allocation2 + $0x100] sm:$0xff] 0.0
          %440 = vst [vmem:[#allocation2 + $0x108] sm:$0xff] 0.0
          %441 = vst [vmem:[#allocation2 + $0x110] sm:$0xff] 0.0
          %442 = vst [vmem:[#allocation2 + $0x118] sm:$0xff] 0.0
          %443 = vst [vmem:[#allocation2 + $0x120] sm:$0xff] 0.0
          %444 = vst [vmem:[#allocation2 + $0x128] sm:$0xff] 0.0
          %445 = vst [vmem:[#allocation2 + $0x130] sm:$0xff] 0.0
          %446 = vst [vmem:[#allocation2 + $0x138] sm:$0xff] 0.0
          %447 = vst [vmem:[#allocation2 + $0x140] sm:$0xff] 0.0
          %448 = vst [vmem:[#allocation2 + $0x148] sm:$0xff] 0.0
          %449 = vst [vmem:[#allocation2 + $0x150] sm:$0xff] 0.0
          %450 = vst [vmem:[#allocation2 + $0x158] sm:$0xff] 0.0
          %451 = vst [vmem:[#allocation2 + $0x160] sm:$0xff] 0.0
          %452 = vst [vmem:[#allocation2 + $0x168] sm:$0xff] 0.0
          %453 = vst [vmem:[#allocation2 + $0x170] sm:$0xff] 0.0
          %454 = vst [vmem:[#allocation2 + $0x178] sm:$0xff] 0.0
          %455 = vst [vmem:[#allocation2 + $0x180] sm:$0xff] 0.0
          %456 = vst [vmem:[#allocation2 + $0x188] sm:$0xff] 0.0
        $region74: #{mrnet_attention_forward.7} parent=65 // pred_fallthru
          _
        %v457 = vld [vmem:[#allocation2] sm:$0xff]
        %v458 = vld [vmem:[#allocation2 + $0x8] sm:$0xff]
        %v459 = vld [vmem:[#allocation2 + $0x10] sm:$0xff]
        %v460 = vld [vmem:[#allocation2 + $0x18] sm:$0xff]
        %v461 = vld [vmem:[#allocation2 + $0x20] sm:$0xff]
        %v462 = vld [vmem:[#allocation2 + $0x28] sm:$0xff]
        %v463 = vld [vmem:[#allocation2 + $0x30] sm:$0xff]
        %v464 = vld [vmem:[#allocation2 + $0x38] sm:$0xff]
        %v465 = vld [vmem:[#allocation2 + $0x40] sm:$0xff]
        %v466 = vld [vmem:[#allocation2 + $0x48] sm:$0xff]
        %v467 = vld [vmem:[#allocation2 + $0x50] sm:$0xff]
        %v468 = vld [vmem:[#allocation2 + $0x58] sm:$0xff]
        %v469 = vld [vmem:[#allocation2 + $0x60] sm:$0xff]
        %v470 = vld [vmem:[#allocation2 + $0x68] sm:$0xff]
        %v471 = vld [vmem:[#allocation2 + $0x70] sm:$0xff]
        %v472 = vld [vmem:[#allocation2 + $0x78] sm:$0xff]
        %v473 = vld [vmem:[#allocation2 + $0x80] sm:$0xff]
        %v474 = vld [vmem:[#allocation2 + $0x88] sm:$0xff]
        %v475 = vld [vmem:[#allocation2 + $0x90] sm:$0xff]
        %v476 = vld [vmem:[#allocation2 + $0x98] sm:$0xff]
        %v477 = vld [vmem:[#allocation2 + $0xa0] sm:$0xff]
        %v478 = vld [vmem:[#allocation2 + $0xa8] sm:$0xff]
        %v479 = vld [vmem:[#allocation2 + $0xb0] sm:$0xff]
        %v480 = vld [vmem:[#allocation2 + $0xb8] sm:$0xff]
        %v481 = vld [vmem:[#allocation2 + $0xc0] sm:$0xff]
        %v482 = vld [vmem:[#allocation2 + $0xc8] sm:$0xff]
        %v483 = vld [vmem:[#allocation2 + $0xd0] sm:$0xff]
        %v484 = vld [vmem:[#allocation2 + $0xd8] sm:$0xff]
        %v485 = vld [vmem:[#allocation2 + $0xe0] sm:$0xff]
        %v486 = vld [vmem:[#allocation2 + $0xe8] sm:$0xff]
        %v487 = vld [vmem:[#allocation2 + $0xf0] sm:$0xff]
        %v488 = vld [vmem:[#allocation2 + $0xf8] sm:$0xff]
        %v489 = vld [vmem:[#allocation2 + $0x100] sm:$0xff]
        %v490 = vld [vmem:[#allocation2 + $0x108] sm:$0xff]
        %v491 = vld [vmem:[#allocation2 + $0x110] sm:$0xff]
        %v492 = vld [vmem:[#allocation2 + $0x118] sm:$0xff]
        %v493 = vld [vmem:[#allocation2 + $0x120] sm:$0xff]
        %v494 = vld [vmem:[#allocation2 + $0x128] sm:$0xff]
        %v495 = vld [vmem:[#allocation2 + $0x130] sm:$0xff]
        %v496 = vld [vmem:[#allocation2 + $0x138] sm:$0xff]
        %v497 = vld [vmem:[#allocation2 + $0x140] sm:$0xff]
        %v498 = vld [vmem:[#allocation2 + $0x148] sm:$0xff]
        %v499 = vld [vmem:[#allocation2 + $0x150] sm:$0xff]
        %v500 = vld [vmem:[#allocation2 + $0x158] sm:$0xff]
        %v501 = vld [vmem:[#allocation2 + $0x160] sm:$0xff]
        %v502 = vld [vmem:[#allocation2 + $0x168] sm:$0xff]
        %v503 = vld [vmem:[#allocation2 + $0x170] sm:$0xff]
        %v504 = vld [vmem:[#allocation2 + $0x178] sm:$0xff]
        %v505 = vld [vmem:[#allocation2 + $0x180] sm:$0xff]
        %v506 = vld [vmem:[#allocation2 + $0x188] sm:$0xff]
        %v507 = vld [vmem:[%s332] sm:$0xff]
        %v508 = vld [vmem:[%s332 + $0x8] sm:$0xff]
        %v509 = vld [vmem:[%s332 + $0x10] sm:$0xff]
        %v510 = vld [vmem:[%s332 + $0x18] sm:$0xff]
        %v511 = vld [vmem:[%s332 + $0x20] sm:$0xff]
        %v512 = vld [vmem:[%s332 + $0x28] sm:$0xff]
        %v513 = vld [vmem:[%s332 + $0x30] sm:$0xff]
        %v514 = vld [vmem:[%s332 + $0x38] sm:$0xff]
        %v515 = vld [vmem:[%s332 + $0x40] sm:$0xff]
        %v516 = vld [vmem:[%s332 + $0x48] sm:$0xff]
        %v517 = vld [vmem:[%s332 + $0x50] sm:$0xff]
        %v518 = vld [vmem:[%s332 + $0x58] sm:$0xff]
        %v519 = vld [vmem:[%s332 + $0x60] sm:$0xff]
        %v520 = vld [vmem:[%s332 + $0x68] sm:$0xff]
        %v521 = vld [vmem:[%s332 + $0x70] sm:$0xff]
        %v522 = vld [vmem:[%s332 + $0x78] sm:$0xff]
        %v523 = vld [vmem:[%s332 + $0x80] sm:$0xff]
        %v524 = vld [vmem:[%s332 + $0x88] sm:$0xff]
        %v525 = vld [vmem:[%s332 + $0x90] sm:$0xff]
        %v526 = vld [vmem:[%s332 + $0x98] sm:$0xff]
        %v527 = vld [vmem:[%s332 + $0xa0] sm:$0xff]
        %v528 = vld [vmem:[%s332 + $0xa8] sm:$0xff]
        %v529 = vld [vmem:[%s332 + $0xb0] sm:$0xff]
        %v530 = vld [vmem:[%s332 + $0xb8] sm:$0xff]
        %v531 = vld [vmem:[%s332 + $0xc0] sm:$0xff]
        %v532 = vld [vmem:[%s383] sm:$0xff]
        %v533 = vld [vmem:[%s383 + $0x8] sm:$0xff]
        %v534 = vld [vmem:[%s383 + $0x10] sm:$0xff]
        %v535 = vld [vmem:[%s383 + $0x18] sm:$0xff]
        %v536 = vld [vmem:[%s383 + $0x20] sm:$0xff]
        %v537 = vld [vmem:[%s383 + $0x28] sm:$0xff]
        %v538 = vld [vmem:[%s383 + $0x30] sm:$0xff]
        %v539 = vld [vmem:[%s383 + $0x38] sm:$0xff]
        %v540 = vld [vmem:[%s383 + $0x40] sm:$0xff]
        %v541 = vld [vmem:[%s383 + $0x48] sm:$0xff]
        %v542 = vld [vmem:[%s383 + $0x50] sm:$0xff]
        %v543 = vld [vmem:[%s383 + $0x58] sm:$0xff]
        %v544 = vld [vmem:[%s383 + $0x60] sm:$0xff]
        %v545 = vld [vmem:[%s383 + $0x68] sm:$0xff]
        %v546 = vld [vmem:[%s383 + $0x70] sm:$0xff]
        %v547 = vld [vmem:[%s383 + $0x78] sm:$0xff]
        %v548 = vld [vmem:[%s383 + $0x80] sm:$0xff]
        %v549 = vld [vmem:[%s383 + $0x88] sm:$0xff]
        %v550 = vld [vmem:[%s383 + $0x90] sm:$0xff]
        %v551 = vld [vmem:[%s383 + $0x98] sm:$0xff]
        %v552 = vld [vmem:[%s383 + $0xa0] sm:$0xff]
        %v553 = vld [vmem:[%s383 + $0xa8] sm:$0xff]
        %v554 = vld [vmem:[%s383 + $0xb0] sm:$0xff]
        %v555 = vld [vmem:[%s383 + $0xb8] sm:$0xff]
        %v556 = vld [vmem:[%s383 + $0xc0] sm:$0xff]
        %v557 = vld [vmem:[%s383 + $0xc8] sm:$0xff]
        %v558 = vld [vmem:[%s383 + $0xd0] sm:$0xff]
        %v559 = vld [vmem:[%s383 + $0xd8] sm:$0xff]
        %v560 = vld [vmem:[%s383 + $0xe0] sm:$0xff]
        %v561 = vld [vmem:[%s383 + $0xe8] sm:$0xff]
        %v562 = vld [vmem:[%s383 + $0xf0] sm:$0xff]
        %v563 = vld [vmem:[%s383 + $0xf8] sm:$0xff]
        %v589 = vunpack.c.l.b16 %v507
        %v590 = vunpack.c.h.b16 %v507
        %v591 = vunpack.c.l.b16 %v508
        %v592 = vunpack.c.h.b16 %v508
        %v593 = vunpack.c.l.b16 %v509
        %v594 = vunpack.c.h.b16 %v509
        %v595 = vunpack.c.l.b16 %v510
        %v596 = vunpack.c.h.b16 %v510
        %v597 = vunpack.c.l.b16 %v511
        %v598 = vunpack.c.h.b16 %v511
        %v599 = vunpack.c.l.b16 %v512
        %v600 = vunpack.c.h.b16 %v512
        %v601 = vunpack.c.l.b16 %v513
        %v602 = vunpack.c.h.b16 %v513
        %v603 = vunpack.c.l.b16 %v514
        %v604 = vunpack.c.h.b16 %v514
        %v605 = vunpack.c.l.b16 %v515
        %v606 = vunpack.c.h.b16 %v515
        %v607 = vunpack.c.l.b16 %v516
        %v608 = vunpack.c.h.b16 %v516
        %v609 = vunpack.c.l.b16 %v517
        %v610 = vunpack.c.h.b16 %v517
        %v611 = vunpack.c.l.b16 %v518
        %v612 = vunpack.c.h.b16 %v518
        %v613 = vunpack.c.l.b16 %v519
        %v614 = vunpack.c.h.b16 %v519
        %v615 = vunpack.c.l.b16 %v520
        %v616 = vunpack.c.h.b16 %v520
        %v617 = vunpack.c.l.b16 %v521
        %v618 = vunpack.c.h.b16 %v521
        %v619 = vunpack.c.l.b16 %v522
        %v620 = vunpack.c.h.b16 %v522
        %v621 = vunpack.c.l.b16 %v523
        %v622 = vunpack.c.h.b16 %v523
        %v623 = vunpack.c.l.b16 %v524
        %v624 = vunpack.c.h.b16 %v524
        %v625 = vunpack.c.l.b16 %v525
        %v626 = vunpack.c.h.b16 %v525
        %v627 = vunpack.c.l.b16 %v526
        %v628 = vunpack.c.h.b16 %v526
        %v629 = vunpack.c.l.b16 %v527
        %v630 = vunpack.c.h.b16 %v527
        %v631 = vunpack.c.l.b16 %v528
        %v632 = vunpack.c.h.b16 %v528
        %v633 = vunpack.c.l.b16 %v529
        %v634 = vunpack.c.h.b16 %v529
        %v635 = vunpack.c.l.b16 %v530
        %v636 = vunpack.c.h.b16 %v530
        %v637 = vunpack.c.l.b16 %v531
        %v638 = vunpack.c.h.b16 %v531
        %v639 = vpack.c.b16 %v591, %v589
        %v640 = vpack.c.b16 %v592, %v590
        %v641 = vpack.c.b16 %v595, %v593
        %v642 = vpack.c.b16 %v596, %v594
        %v643 = vpack.c.b16 %v599, %v597
        %v644 = vpack.c.b16 %v600, %v598
        %v645 = vpack.c.b16 %v603, %v601
        %v646 = vpack.c.b16 %v604, %v602
        %v647 = vpack.c.b16 %v607, %v605
        %v648 = vpack.c.b16 %v608, %v606
        %v649 = vpack.c.b16 %v611, %v609
        %v650 = vpack.c.b16 %v612, %v610
        %v651 = vpack.c.b16 %v615, %v613
        %v652 = vpack.c.b16 %v616, %v614
        %v653 = vpack.c.b16 %v619, %v617
        %v654 = vpack.c.b16 %v620, %v618
        %v655 = vpack.c.b16 %v623, %v621
        %v656 = vpack.c.b16 %v624, %v622
        %v657 = vpack.c.b16 %v627, %v625
        %v658 = vpack.c.b16 %v628, %v626
        %v659 = vpack.c.b16 %v631, %v629
        %v660 = vpack.c.b16 %v632, %v630
        %v661 = vpack.c.b16 %v635, %v633
        %v662 = vpack.c.b16 %v636, %v634
        %v663 = vpack.c.b16 %v637, %v637
        %v664 = vpack.c.b16 %v638, %v638
        %v723 = vunpack.c.l.b16 %v532
        %v724 = vunpack.c.h.b16 %v532
        %v725 = vunpack.c.l.b16 %v533
        %v726 = vunpack.c.h.b16 %v533
        %v727 = vunpack.c.l.b16 %v534
        %v728 = vunpack.c.h.b16 %v534
        %v729 = vunpack.c.l.b16 %v535
        %v730 = vunpack.c.h.b16 %v535
        %v731 = vunpack.c.l.b16 %v536
        %v732 = vunpack.c.h.b16 %v536
        %v733 = vunpack.c.l.b16 %v537
        %v734 = vunpack.c.h.b16 %v537
        %v735 = vunpack.c.l.b16 %v538
        %v736 = vunpack.c.h.b16 %v538
        %v737 = vunpack.c.l.b16 %v539
        %v738 = vunpack.c.h.b16 %v539
        %v739 = vunpack.c.l.b16 %v540
        %v740 = vunpack.c.h.b16 %v540
        %v741 = vunpack.c.l.b16 %v541
        %v742 = vunpack.c.h.b16 %v541
        %v743 = vunpack.c.l.b16 %v542
        %v744 = vunpack.c.h.b16 %v542
        %v745 = vunpack.c.l.b16 %v543
        %v746 = vunpack.c.h.b16 %v543
        %v747 = vunpack.c.l.b16 %v544
        %v748 = vunpack.c.h.b16 %v544
        %v749 = vunpack.c.l.b16 %v545
        %v750 = vunpack.c.h.b16 %v545
        %v751 = vunpack.c.l.b16 %v546
        %v752 = vunpack.c.h.b16 %v546
        %v753 = vunpack.c.l.b16 %v547
        %v754 = vunpack.c.h.b16 %v547
        %v755 = vunpack.c.l.b16 %v548
        %v756 = vunpack.c.h.b16 %v548
        %v757 = vunpack.c.l.b16 %v549
        %v758 = vunpack.c.h.b16 %v549
        %v759 = vunpack.c.l.b16 %v550
        %v760 = vunpack.c.h.b16 %v550
        %v761 = vunpack.c.l.b16 %v551
        %v762 = vunpack.c.h.b16 %v551
        %v763 = vunpack.c.l.b16 %v552
        %v764 = vunpack.c.h.b16 %v552
        %v765 = vunpack.c.l.b16 %v553
        %v766 = vunpack.c.h.b16 %v553
        %v767 = vunpack.c.l.b16 %v554
        %v768 = vunpack.c.h.b16 %v554
        %v769 = vunpack.c.l.b16 %v555
        %v770 = vunpack.c.h.b16 %v555
        %v771 = vunpack.c.l.b16 %v556
        %v772 = vunpack.c.h.b16 %v556
        %v773 = vunpack.c.l.b16 %v557
        %v774 = vunpack.c.h.b16 %v557
        %v775 = vunpack.c.l.b16 %v558
        %v776 = vunpack.c.h.b16 %v558
        %v777 = vunpack.c.l.b16 %v559
        %v778 = vunpack.c.h.b16 %v559
        %v779 = vunpack.c.l.b16 %v560
        %v780 = vunpack.c.h.b16 %v560
        %v781 = vunpack.c.l.b16 %v561
        %v782 = vunpack.c.h.b16 %v561
        %v783 = vunpack.c.l.b16 %v562
        %v784 = vunpack.c.h.b16 %v562
        %v785 = vunpack.c.l.b16 %v563
        %v786 = vunpack.c.h.b16 %v563
        %v787 = vpack.c.b16 %v725, %v723
        %v788 = vpack.c.b16 %v726, %v724
        %v789 = vpack.c.b16 %v729, %v727
        %v790 = vpack.c.b16 %v730, %v728
        %v791 = vpack.c.b16 %v733, %v731
        %v792 = vpack.c.b16 %v734, %v732
        %v793 = vpack.c.b16 %v737, %v735
        %v794 = vpack.c.b16 %v738, %v736
        %v795 = vpack.c.b16 %v741, %v739
        %v796 = vpack.c.b16 %v742, %v740
        %v797 = vpack.c.b16 %v745, %v743
        %v798 = vpack.c.b16 %v746, %v744
        %v799 = vpack.c.b16 %v749, %v747
        %v800 = vpack.c.b16 %v750, %v748
        %v801 = vpack.c.b16 %v753, %v751
        %v802 = vpack.c.b16 %v754, %v752
        %v803 = vpack.c.b16 %v757, %v755
        %v804 = vpack.c.b16 %v758, %v756
        %v805 = vpack.c.b16 %v761, %v759
        %v806 = vpack.c.b16 %v762, %v760
        %v807 = vpack.c.b16 %v765, %v763
        %v808 = vpack.c.b16 %v766, %v764
        %v809 = vpack.c.b16 %v769, %v767
        %v810 = vpack.c.b16 %v770, %v768
        %v811 = vpack.c.b16 %v773, %v771
        %v812 = vpack.c.b16 %v774, %v772
        %v813 = vpack.c.b16 %v777, %v775
        %v814 = vpack.c.b16 %v778, %v776
        %v815 = vpack.c.b16 %v781, %v779
        %v816 = vpack.c.b16 %v782, %v780
        %v817 = vpack.c.b16 %v785, %v783
        %v818 = vpack.c.b16 %v786, %v784
        %851 = vmatpush.bf16.msra.mxu0 %v801
        %852 = vmatpush.bf16.msra.mxu0 %v799
        %853 = vmatpush.bf16.msra.mxu0 %v797
        %854 = vmatpush.bf16.msra.mxu0 %v795
        %855 = vmatpush.bf16.msra.mxu0 %v793
        %856 = vmatpush.bf16.msra.mxu0 %v791
        %857 = vmatpush.bf16.msra.mxu0 %v789
        %858 = vmatpush.bf16.msra.mxu0 %v787
        %859 = vmatmul.bf16.gmra.mxu0 %v639
        %v860 = vpop.f32.mrf.mxu0
        %v861 = vadd.f32 0.0, %v860
        %v862 = vpop.f32.mrf.mxu0
        %v863 = vadd.f32 0.0, %v862
        %864 = vmatmul.bf16.gmra.mxu0 %v641
        %v865 = vpop.f32.mrf.mxu0
        %v866 = vadd.f32 0.0, %v865
        %v867 = vpop.f32.mrf.mxu0
        %v868 = vadd.f32 0.0, %v867
        %869 = vmatmul.bf16.gmra.mxu0 %v643
        %v870 = vpop.f32.mrf.mxu0
        %v871 = vadd.f32 0.0, %v870
        %v872 = vpop.f32.mrf.mxu0
        %v873 = vadd.f32 0.0, %v872
        %874 = vmatmul.bf16.gmra.mxu0 %v645
        %v875 = vpop.f32.mrf.mxu0
        %v876 = vadd.f32 0.0, %v875
        %v877 = vpop.f32.mrf.mxu0
        %v878 = vadd.f32 0.0, %v877
        %879 = vmatmul.bf16.gmra.mxu0 %v647
        %v880 = vpop.f32.mrf.mxu0
        %v881 = vadd.f32 0.0, %v880
        %v882 = vpop.f32.mrf.mxu0
        %v883 = vadd.f32 0.0, %v882
        %884 = vmatmul.bf16.gmra.mxu0 %v649
        %v885 = vpop.f32.mrf.mxu0
        %v886 = vadd.f32 0.0, %v885
        %v887 = vpop.f32.mrf.mxu0
        %v888 = vadd.f32 0.0, %v887
        %889 = vmatmul.bf16.gmra.mxu0 %v651
        %v890 = vpop.f32.mrf.mxu0
        %v891 = vadd.f32 0.0, %v890
        %v892 = vpop.f32.mrf.mxu0
        %v893 = vadd.f32 0.0, %v892
        %894 = vmatmul.bf16.gmra.mxu0 %v653
        %v895 = vpop.f32.mrf.mxu0
        %v896 = vadd.f32 0.0, %v895
        %v897 = vpop.f32.mrf.mxu0
        %v898 = vadd.f32 0.0, %v897
        %899 = vmatmul.bf16.gmra.mxu0 %v655
        %v900 = vpop.f32.mrf.mxu0
        %v901 = vadd.f32 0.0, %v900
        %v902 = vpop.f32.mrf.mxu0
        %v903 = vadd.f32 0.0, %v902
        %904 = vmatmul.bf16.gmra.mxu0 %v657
        %v905 = vpop.f32.mrf.mxu0
        %v906 = vadd.f32 0.0, %v905
        %v907 = vpop.f32.mrf.mxu0
        %v908 = vadd.f32 0.0, %v907
        %909 = vmatmul.bf16.gmra.mxu0 %v659
        %v910 = vpop.f32.mrf.mxu0
        %v911 = vadd.f32 0.0, %v910
        %v912 = vpop.f32.mrf.mxu0
        %v913 = vadd.f32 0.0, %v912
        %914 = vmatmul.bf16.gmra.mxu0 %v661
        %v915 = vpop.f32.mrf.mxu0
        %v916 = vadd.f32 0.0, %v915
        %v917 = vpop.f32.mrf.mxu0
        %v918 = vadd.f32 0.0, %v917
        %919 = vmatmul.bf16.gmra.mxu0 %v663
        %v920 = vpop.f32.mrf.mxu0
        %v921 = vadd.f32 0.0, %v920
        %v922 = vpop.f32.mrf.mxu0
        %923 = vdwg.mxu0
        %924 = vmatpush.bf16.msra.mxu0 %v817
        %925 = vmatpush.bf16.msra.mxu0 %v815
        %926 = vmatpush.bf16.msra.mxu0 %v813
        %927 = vmatpush.bf16.msra.mxu0 %v811
        %928 = vmatpush.bf16.msra.mxu0 %v809
        %929 = vmatpush.bf16.msra.mxu0 %v807
        %930 = vmatpush.bf16.msra.mxu0 %v805
        %931 = vmatpush.bf16.msra.mxu0 %v803
        %932 = vmatmul.bf16.gmra.mxu0 %v640
        %v933 = vpop.f32.mrf.mxu0
        %v934 = vadd.f32 %v861, %v933
        %v935 = vpop.f32.mrf.mxu0
        %v936 = vadd.f32 %v863, %v935
        %937 = vmatmul.bf16.gmra.mxu0 %v642
        %v938 = vpop.f32.mrf.mxu0
        %v939 = vadd.f32 %v866, %v938
        %v940 = vpop.f32.mrf.mxu0
        %v941 = vadd.f32 %v868, %v940
        %942 = vmatmul.bf16.gmra.mxu0 %v644
        %v943 = vpop.f32.mrf.mxu0
        %v944 = vadd.f32 %v871, %v943
        %v945 = vpop.f32.mrf.mxu0
        %v946 = vadd.f32 %v873, %v945
        %947 = vmatmul.bf16.gmra.mxu0 %v646
        %v948 = vpop.f32.mrf.mxu0
        %v949 = vadd.f32 %v876, %v948
        %v950 = vpop.f32.mrf.mxu0
        %v951 = vadd.f32 %v878, %v950
        %952 = vmatmul.bf16.gmra.mxu0 %v648
        %v953 = vpop.f32.mrf.mxu0
        %v954 = vadd.f32 %v881, %v953
        %v955 = vpop.f32.mrf.mxu0
        %v956 = vadd.f32 %v883, %v955
        %957 = vmatmul.bf16.gmra.mxu0 %v650
        %v958 = vpop.f32.mrf.mxu0
        %v959 = vadd.f32 %v886, %v958
        %v960 = vpop.f32.mrf.mxu0
        %v961 = vadd.f32 %v888, %v960
        %962 = vmatmul.bf16.gmra.mxu0 %v652
        %v963 = vpop.f32.mrf.mxu0
        %v964 = vadd.f32 %v891, %v963
        %v965 = vpop.f32.mrf.mxu0
        %v966 = vadd.f32 %v893, %v965
        %967 = vmatmul.bf16.gmra.mxu0 %v654
        %v968 = vpop.f32.mrf.mxu0
        %v969 = vadd.f32 %v896, %v968
        %v970 = vpop.f32.mrf.mxu0
        %v971 = vadd.f32 %v898, %v970
        %972 = vmatmul.bf16.gmra.mxu0 %v656
        %v973 = vpop.f32.mrf.mxu0
        %v974 = vadd.f32 %v901, %v973
        %v975 = vpop.f32.mrf.mxu0
        %v976 = vadd.f32 %v903, %v975
        %977 = vmatmul.bf16.gmra.mxu0 %v658
        %v978 = vpop.f32.mrf.mxu0
        %v979 = vadd.f32 %v906, %v978
        %v980 = vpop.f32.mrf.mxu0
        %v981 = vadd.f32 %v908, %v980
        %982 = vmatmul.bf16.gmra.mxu0 %v660
        %v983 = vpop.f32.mrf.mxu0
        %v984 = vadd.f32 %v911, %v983
        %v985 = vpop.f32.mrf.mxu0
        %v986 = vadd.f32 %v913, %v985
        %987 = vmatmul.bf16.gmra.mxu0 %v662
        %v988 = vpop.f32.mrf.mxu0
        %v989 = vadd.f32 %v916, %v988
        %v990 = vpop.f32.mrf.mxu0
        %v991 = vadd.f32 %v918, %v990
        %992 = vmatmul.bf16.gmra.mxu0 %v664
        %v993 = vpop.f32.mrf.mxu0
        %v994 = vadd.f32 %v921, %v993
        %v995 = vpop.f32.mrf.mxu0
        %996 = vdwg.mxu0
        %997 = vmatpush.bf16.msra.mxu0 %v802
        %998 = vmatpush.bf16.msra.mxu0 %v800
        %999 = vmatpush.bf16.msra.mxu0 %v798
        %1000 = vmatpush.bf16.msra.mxu0 %v796
        %1001 = vmatpush.bf16.msra.mxu0 %v794
        %1002 = vmatpush.bf16.msra.mxu0 %v792
        %1003 = vmatpush.bf16.msra.mxu0 %v790
        %1004 = vmatpush.bf16.msra.mxu0 %v788
        %1005 = vmatmul.bf16.gmra.mxu0 %v639
        %v1006 = vpop.f32.mrf.mxu0
        %v1007 = vadd.f32 0.0, %v1006
        %v1008 = vpop.f32.mrf.mxu0
        %v1009 = vadd.f32 0.0, %v1008
        %1010 = vmatmul.bf16.gmra.mxu0 %v641
        %v1011 = vpop.f32.mrf.mxu0
        %v1012 = vadd.f32 0.0, %v1011
        %v1013 = vpop.f32.mrf.mxu0
        %v1014 = vadd.f32 0.0, %v1013
        %1015 = vmatmul.bf16.gmra.mxu0 %v643
        %v1016 = vpop.f32.mrf.mxu0
        %v1017 = vadd.f32 0.0, %v1016
        %v1018 = vpop.f32.mrf.mxu0
        %v1019 = vadd.f32 0.0, %v1018
        %1020 = vmatmul.bf16.gmra.mxu0 %v645
        %v1021 = vpop.f32.mrf.mxu0
        %v1022 = vadd.f32 0.0, %v1021
        %v1023 = vpop.f32.mrf.mxu0
        %v1024 = vadd.f32 0.0, %v1023
        %1025 = vmatmul.bf16.gmra.mxu0 %v647
        %v1026 = vpop.f32.mrf.mxu0
        %v1027 = vadd.f32 0.0, %v1026
        %v1028 = vpop.f32.mrf.mxu0
        %v1029 = vadd.f32 0.0, %v1028
        %1030 = vmatmul.bf16.gmra.mxu0 %v649
        %v1031 = vpop.f32.mrf.mxu0
        %v1032 = vadd.f32 0.0, %v1031
        %v1033 = vpop.f32.mrf.mxu0
        %v1034 = vadd.f32 0.0, %v1033
        %1035 = vmatmul.bf16.gmra.mxu0 %v651
        %v1036 = vpop.f32.mrf.mxu0
        %v1037 = vadd.f32 0.0, %v1036
        %v1038 = vpop.f32.mrf.mxu0
        %v1039 = vadd.f32 0.0, %v1038
        %1040 = vmatmul.bf16.gmra.mxu0 %v653
        %v1041 = vpop.f32.mrf.mxu0
        %v1042 = vadd.f32 0.0, %v1041
        %v1043 = vpop.f32.mrf.mxu0
        %v1044 = vadd.f32 0.0, %v1043
        %1045 = vmatmul.bf16.gmra.mxu0 %v655
        %v1046 = vpop.f32.mrf.mxu0
        %v1047 = vadd.f32 0.0, %v1046
        %v1048 = vpop.f32.mrf.mxu0
        %v1049 = vadd.f32 0.0, %v1048
        %1050 = vmatmul.bf16.gmra.mxu0 %v657
        %v1051 = vpop.f32.mrf.mxu0
        %v1052 = vadd.f32 0.0, %v1051
        %v1053 = vpop.f32.mrf.mxu0
        %v1054 = vadd.f32 0.0, %v1053
        %1055 = vmatmul.bf16.gmra.mxu0 %v659
        %v1056 = vpop.f32.mrf.mxu0
        %v1057 = vadd.f32 0.0, %v1056
        %v1058 = vpop.f32.mrf.mxu0
        %v1059 = vadd.f32 0.0, %v1058
        %1060 = vmatmul.bf16.gmra.mxu0 %v661
        %v1061 = vpop.f32.mrf.mxu0
        %v1062 = vadd.f32 0.0, %v1061
        %v1063 = vpop.f32.mrf.mxu0
        %v1064 = vadd.f32 0.0, %v1063
        %1065 = vmatmul.bf16.gmra.mxu0 %v663
        %v1066 = vpop.f32.mrf.mxu0
        %v1067 = vadd.f32 0.0, %v1066
        %v1068 = vpop.f32.mrf.mxu0
        %1069 = vdwg.mxu0
        %1070 = vmatpush.bf16.msra.mxu0 %v818
        %1071 = vmatpush.bf16.msra.mxu0 %v816
        %1072 = vmatpush.bf16.msra.mxu0 %v814
        %1073 = vmatpush.bf16.msra.mxu0 %v812
        %1074 = vmatpush.bf16.msra.mxu0 %v810
        %1075 = vmatpush.bf16.msra.mxu0 %v808
        %1076 = vmatpush.bf16.msra.mxu0 %v806
        %1077 = vmatpush.bf16.msra.mxu0 %v804
        %1078 = vmatmul.bf16.gmra.mxu0 %v640
        %v1079 = vpop.f32.mrf.mxu0
        %v1080 = vadd.f32 %v1007, %v1079
        %v1081 = vpop.f32.mrf.mxu0
        %v1082 = vadd.f32 %v1009, %v1081
        %1083 = vmatmul.bf16.gmra.mxu0 %v642
        %v1084 = vpop.f32.mrf.mxu0
        %v1085 = vadd.f32 %v1012, %v1084
        %v1086 = vpop.f32.mrf.mxu0
        %v1087 = vadd.f32 %v1014, %v1086
        %1088 = vmatmul.bf16.gmra.mxu0 %v644
        %v1089 = vpop.f32.mrf.mxu0
        %v1090 = vadd.f32 %v1017, %v1089
        %v1091 = vpop.f32.mrf.mxu0
        %v1092 = vadd.f32 %v1019, %v1091
        %1093 = vmatmul.bf16.gmra.mxu0 %v646
        %v1094 = vpop.f32.mrf.mxu0
        %v1095 = vadd.f32 %v1022, %v1094
        %v1096 = vpop.f32.mrf.mxu0
        %v1097 = vadd.f32 %v1024, %v1096
        %1098 = vmatmul.bf16.gmra.mxu0 %v648
        %v1099 = vpop.f32.mrf.mxu0
        %v1100 = vadd.f32 %v1027, %v1099
        %v1101 = vpop.f32.mrf.mxu0
        %v1102 = vadd.f32 %v1029, %v1101
        %1103 = vmatmul.bf16.gmra.mxu0 %v650
        %v1104 = vpop.f32.mrf.mxu0
        %v1105 = vadd.f32 %v1032, %v1104
        %v1106 = vpop.f32.mrf.mxu0
        %v1107 = vadd.f32 %v1034, %v1106
        %1108 = vmatmul.bf16.gmra.mxu0 %v652
        %v1109 = vpop.f32.mrf.mxu0
        %v1110 = vadd.f32 %v1037, %v1109
        %v1111 = vpop.f32.mrf.mxu0
        %v1112 = vadd.f32 %v1039, %v1111
        %1113 = vmatmul.bf16.gmra.mxu0 %v654
        %v1114 = vpop.f32.mrf.mxu0
        %v1115 = vadd.f32 %v1042, %v1114
        %v1116 = vpop.f32.mrf.mxu0
        %v1117 = vadd.f32 %v1044, %v1116
        %1118 = vmatmul.bf16.gmra.mxu0 %v656
        %v1119 = vpop.f32.mrf.mxu0
        %v1120 = vadd.f32 %v1047, %v1119
        %v1121 = vpop.f32.mrf.mxu0
        %v1122 = vadd.f32 %v1049, %v1121
        %1123 = vmatmul.bf16.gmra.mxu0 %v658
        %v1124 = vpop.f32.mrf.mxu0
        %v1125 = vadd.f32 %v1052, %v1124
        %v1126 = vpop.f32.mrf.mxu0
        %v1127 = vadd.f32 %v1054, %v1126
        %1128 = vmatmul.bf16.gmra.mxu0 %v660
        %v1129 = vpop.f32.mrf.mxu0
        %v1130 = vadd.f32 %v1057, %v1129
        %v1131 = vpop.f32.mrf.mxu0
        %v1132 = vadd.f32 %v1059, %v1131
        %1133 = vmatmul.bf16.gmra.mxu0 %v662
        %v1134 = vpop.f32.mrf.mxu0
        %v1135 = vadd.f32 %v1062, %v1134
        %v1136 = vpop.f32.mrf.mxu0
        %v1137 = vadd.f32 %v1064, %v1136
        %1138 = vmatmul.bf16.gmra.mxu0 %v664
        %v1139 = vpop.f32.mrf.mxu0
        %v1140 = vadd.f32 %v1067, %v1139
        %v1141 = vpop.f32.mrf.mxu0
        %1142 = vdwg.mxu0
        %v1143 = vadd.f32 %v457, %v934
        %v1144 = vadd.f32 %v458, %v1080
        %v1145 = vadd.f32 %v459, %v936
        %v1146 = vadd.f32 %v460, %v1082
        %v1147 = vadd.f32 %v461, %v939
        %v1148 = vadd.f32 %v462, %v1085
        %v1149 = vadd.f32 %v463, %v941
        %v1150 = vadd.f32 %v464, %v1087
        %v1151 = vadd.f32 %v465, %v944
        %v1152 = vadd.f32 %v466, %v1090
        %v1153 = vadd.f32 %v467, %v946
        %v1154 = vadd.f32 %v468, %v1092
        %v1155 = vadd.f32 %v469, %v949
        %v1156 = vadd.f32 %v470, %v1095
        %v1157 = vadd.f32 %v471, %v951
        %v1158 = vadd.f32 %v472, %v1097
        %v1159 = vadd.f32 %v473, %v954
        %v1160 = vadd.f32 %v474, %v1100
        %v1161 = vadd.f32 %v475, %v956
        %v1162 = vadd.f32 %v476, %v1102
        %v1163 = vadd.f32 %v477, %v959
        %v1164 = vadd.f32 %v478, %v1105
        %v1165 = vadd.f32 %v479, %v961
        %v1166 = vadd.f32 %v480, %v1107
        %v1167 = vadd.f32 %v481, %v964
        %v1168 = vadd.f32 %v482, %v1110
        %v1169 = vadd.f32 %v483, %v966
        %v1170 = vadd.f32 %v484, %v1112
        %v1171 = vadd.f32 %v485, %v969
        %v1172 = vadd.f32 %v486, %v1115
        %v1173 = vadd.f32 %v487, %v971
        %v1174 = vadd.f32 %v488, %v1117
        %v1175 = vadd.f32 %v489, %v974
        %v1176 = vadd.f32 %v490, %v1120
        %v1177 = vadd.f32 %v491, %v976
        %v1178 = vadd.f32 %v492, %v1122
        %v1179 = vadd.f32 %v493, %v979
        %v1180 = vadd.f32 %v494, %v1125
        %v1181 = vadd.f32 %v495, %v981
        %v1182 = vadd.f32 %v496, %v1127
        %v1183 = vadd.f32 %v497, %v984
        %v1184 = vadd.f32 %v498, %v1130
        %v1185 = vadd.f32 %v499, %v986
        %v1186 = vadd.f32 %v500, %v1132
        %v1187 = vadd.f32 %v501, %v989
        %v1188 = vadd.f32 %v502, %v1135
        %v1189 = vadd.f32 %v503, %v991
        %v1190 = vadd.f32 %v504, %v1137
        %v1191 = vadd.f32 %v505, %v994
        %v1192 = vadd.f32 %v506, %v1140
        %1193 = vst [vmem:[#allocation2] sm:$0xff] %v1143
        %1194 = vst [vmem:[#allocation2 + $0x8] sm:$0xff] %v1144
        %1195 = vst [vmem:[#allocation2 + $0x10] sm:$0xff] %v1145
        %1196 = vst [vmem:[#allocation2 + $0x18] sm:$0xff] %v1146
        %1197 = vst [vmem:[#allocation2 + $0x20] sm:$0xff] %v1147
        %1198 = vst [vmem:[#allocation2 + $0x28] sm:$0xff] %v1148
        %1199 = vst [vmem:[#allocation2 + $0x30] sm:$0xff] %v1149
        %1200 = vst [vmem:[#allocation2 + $0x38] sm:$0xff] %v1150
        %1201 = vst [vmem:[#allocation2 + $0x40] sm:$0xff] %v1151
        %1202 = vst [vmem:[#allocation2 + $0x48] sm:$0xff] %v1152
        %1203 = vst [vmem:[#allocation2 + $0x50] sm:$0xff] %v1153
        %1204 = vst [vmem:[#allocation2 + $0x58] sm:$0xff] %v1154
        %1205 = vst [vmem:[#allocation2 + $0x60] sm:$0xff] %v1155
        %1206 = vst [vmem:[#allocation2 + $0x68] sm:$0xff] %v1156
        %1207 = vst [vmem:[#allocation2 + $0x70] sm:$0xff] %v1157
        %1208 = vst [vmem:[#allocation2 + $0x78] sm:$0xff] %v1158
        %1209 = vst [vmem:[#allocation2 + $0x80] sm:$0xff] %v1159
        %1210 = vst [vmem:[#allocation2 + $0x88] sm:$0xff] %v1160
        %1211 = vst [vmem:[#allocation2 + $0x90] sm:$0xff] %v1161
        %1212 = vst [vmem:[#allocation2 + $0x98] sm:$0xff] %v1162
        %1213 = vst [vmem:[#allocation2 + $0xa0] sm:$0xff] %v1163
        %1214 = vst [vmem:[#allocation2 + $0xa8] sm:$0xff] %v1164
        %1215 = vst [vmem:[#allocation2 + $0xb0] sm:$0xff] %v1165
        %1216 = vst [vmem:[#allocation2 + $0xb8] sm:$0xff] %v1166
        %1217 = vst [vmem:[#allocation2 + $0xc0] sm:$0xff] %v1167
        %1218 = vst [vmem:[#allocation2 + $0xc8] sm:$0xff] %v1168
        %1219 = vst [vmem:[#allocation2 + $0xd0] sm:$0xff] %v1169
        %1220 = vst [vmem:[#allocation2 + $0xd8] sm:$0xff] %v1170
        %1221 = vst [vmem:[#allocation2 + $0xe0] sm:$0xff] %v1171
        %1222 = vst [vmem:[#allocation2 + $0xe8] sm:$0xff] %v1172
        %1223 = vst [vmem:[#allocation2 + $0xf0] sm:$0xff] %v1173
        %1224 = vst [vmem:[#allocation2 + $0xf8] sm:$0xff] %v1174
        %1225 = vst [vmem:[#allocation2 + $0x100] sm:$0xff] %v1175
        %1226 = vst [vmem:[#allocation2 + $0x108] sm:$0xff] %v1176
        %1227 = vst [vmem:[#allocation2 + $0x110] sm:$0xff] %v1177
        %1228 = vst [vmem:[#allocation2 + $0x118] sm:$0xff] %v1178
        %1229 = vst [vmem:[#allocation2 + $0x120] sm:$0xff] %v1179
        %1230 = vst [vmem:[#allocation2 + $0x128] sm:$0xff] %v1180
        %1231 = vst [vmem:[#allocation2 + $0x130] sm:$0xff] %v1181
        %1232 = vst [vmem:[#allocation2 + $0x138] sm:$0xff] %v1182
        %1233 = vst [vmem:[#allocation2 + $0x140] sm:$0xff] %v1183
        %1234 = vst [vmem:[#allocation2 + $0x148] sm:$0xff] %v1184
        %1235 = vst [vmem:[#allocation2 + $0x150] sm:$0xff] %v1185
        %1236 = vst [vmem:[#allocation2 + $0x158] sm:$0xff] %v1186
        %1237 = vst [vmem:[#allocation2 + $0x160] sm:$0xff] %v1187
        %1238 = vst [vmem:[#allocation2 + $0x168] sm:$0xff] %v1188
        %1239 = vst [vmem:[#allocation2 + $0x170] sm:$0xff] %v1189
        %1240 = vst [vmem:[#allocation2 + $0x178] sm:$0xff] %v1190
        %1241 = vst [vmem:[#allocation2 + $0x180] sm:$0xff] %v1191
        %1242 = vst [vmem:[#allocation2 + $0x188] sm:$0xff] %v1192
        %p1243 = scmp.eq.s32.totalorder %s21, 6
        // Predicated region
        $region75: #{mrnet_attention_forward.7} parent=65 // pred_check
          %p1244 = pneg %p1243
        $region76: #{mrnet_attention_forward.7} parent=65 // pred_check_branch
          %1246 = sbr.rel (%p1244) target = $region78
        $region77: #{mrnet_attention_forward.7} parent=65 // pred_region
          %v1247 = vld [vmem:[#allocation2] sm:$0xff]
          %v1248 = vld [vmem:[#allocation2 + $0x8] sm:$0xff]
          %v1249 = vld [vmem:[#allocation2 + $0x10] sm:$0xff]
          %v1250 = vld [vmem:[#allocation2 + $0x18] sm:$0xff]
          %v1251 = vld [vmem:[#allocation2 + $0x20] sm:$0xff]
          %v1252 = vld [vmem:[#allocation2 + $0x28] sm:$0xff]
          %v1253 = vld [vmem:[#allocation2 + $0x30] sm:$0xff]
          %v1254 = vld [vmem:[#allocation2 + $0x38] sm:$0xff]
          %v1255 = vld [vmem:[#allocation2 + $0x40] sm:$0xff]
          %v1256 = vld [vmem:[#allocation2 + $0x48] sm:$0xff]
          %v1257 = vld [vmem:[#allocation2 + $0x50] sm:$0xff]
          %v1258 = vld [vmem:[#allocation2 + $0x58] sm:$0xff]
          %v1259 = vld [vmem:[#allocation2 + $0x60] sm:$0xff]
          %v1260 = vld [vmem:[#allocation2 + $0x68] sm:$0xff]
          %v1261 = vld [vmem:[#allocation2 + $0x70] sm:$0xff]
          %v1262 = vld [vmem:[#allocation2 + $0x78] sm:$0xff]
          %v1263 = vld [vmem:[#allocation2 + $0x80] sm:$0xff]
          %v1264 = vld [vmem:[#allocation2 + $0x88] sm:$0xff]
          %v1265 = vld [vmem:[#allocation2 + $0x90] sm:$0xff]
          %v1266 = vld [vmem:[#allocation2 + $0x98] sm:$0xff]
          %v1267 = vld [vmem:[#allocation2 + $0xa0] sm:$0xff]
          %v1268 = vld [vmem:[#allocation2 + $0xa8] sm:$0xff]
          %v1269 = vld [vmem:[#allocation2 + $0xb0] sm:$0xff]
          %v1270 = vld [vmem:[#allocation2 + $0xb8] sm:$0xff]
          %v1271 = vld [vmem:[#allocation2 + $0xc0] sm:$0xff]
          %v1272 = vld [vmem:[#allocation2 + $0xc8] sm:$0xff]
          %v1273 = vld [vmem:[#allocation2 + $0xd0] sm:$0xff]
          %v1274 = vld [vmem:[#allocation2 + $0xd8] sm:$0xff]
          %v1275 = vld [vmem:[#allocation2 + $0xe0] sm:$0xff]
          %v1276 = vld [vmem:[#allocation2 + $0xe8] sm:$0xff]
          %v1277 = vld [vmem:[#allocation2 + $0xf0] sm:$0xff]
          %v1278 = vld [vmem:[#allocation2 + $0xf8] sm:$0xff]
          %v1279 = vld [vmem:[#allocation2 + $0x100] sm:$0xff]
          %v1280 = vld [vmem:[#allocation2 + $0x108] sm:$0xff]
          %v1281 = vld [vmem:[#allocation2 + $0x110] sm:$0xff]
          %v1282 = vld [vmem:[#allocation2 + $0x118] sm:$0xff]
          %v1283 = vld [vmem:[#allocation2 + $0x120] sm:$0xff]
          %v1284 = vld [vmem:[#allocation2 + $0x128] sm:$0xff]
          %v1285 = vld [vmem:[#allocation2 + $0x130] sm:$0xff]
          %v1286 = vld [vmem:[#allocation2 + $0x138] sm:$0xff]
          %v1287 = vld [vmem:[#allocation2 + $0x140] sm:$0xff]
          %v1288 = vld [vmem:[#allocation2 + $0x148] sm:$0xff]
          %v1289 = vld [vmem:[#allocation2 + $0x150] sm:$0xff]
          %v1290 = vld [vmem:[#allocation2 + $0x158] sm:$0xff]
          %v1291 = vld [vmem:[#allocation2 + $0x160] sm:$0xff]
          %v1292 = vld [vmem:[#allocation2 + $0x168] sm:$0xff]
          %v1293 = vld [vmem:[#allocation2 + $0x170] sm:$0xff]
          %v1294 = vld [vmem:[#allocation2 + $0x178] sm:$0xff]
          %v1295 = vld [vmem:[#allocation2 + $0x180] sm:$0xff]
          %v1296 = vld [vmem:[#allocation2 + $0x188] sm:$0xff]
          %v1297 = vld [vmem:[%s389] sm:$0x3]
          %v1299 = vperm.slane %v1297, 0
          %v1300 = vperm.slane %v1297, 1
          %v1303 = vadd.f32 %v1247, %v1299
          %v1304 = vadd.f32 %v1248, %v1300
          %v1305 = vadd.f32 %v1249, %v1299
          %v1306 = vadd.f32 %v1250, %v1300
          %v1307 = vadd.f32 %v1251, %v1299
          %v1308 = vadd.f32 %v1252, %v1300
          %v1309 = vadd.f32 %v1253, %v1299
          %v1310 = vadd.f32 %v1254, %v1300
          %v1311 = vadd.f32 %v1255, %v1299
          %v1312 = vadd.f32 %v1256, %v1300
          %v1313 = vadd.f32 %v1257, %v1299
          %v1314 = vadd.f32 %v1258, %v1300
          %v1315 = vadd.f32 %v1259, %v1299
          %v1316 = vadd.f32 %v1260, %v1300
          %v1317 = vadd.f32 %v1261, %v1299
          %v1318 = vadd.f32 %v1262, %v1300
          %v1319 = vadd.f32 %v1263, %v1299
          %v1320 = vadd.f32 %v1264, %v1300
          %v1321 = vadd.f32 %v1265, %v1299
          %v1322 = vadd.f32 %v1266, %v1300
          %v1323 = vadd.f32 %v1267, %v1299
          %v1324 = vadd.f32 %v1268, %v1300
          %v1325 = vadd.f32 %v1269, %v1299
          %v1326 = vadd.f32 %v1270, %v1300
          %v1327 = vadd.f32 %v1271, %v1299
          %v1328 = vadd.f32 %v1272, %v1300
          %v1329 = vadd.f32 %v1273, %v1299
          %v1330 = vadd.f32 %v1274, %v1300
          %v1331 = vadd.f32 %v1275, %v1299
          %v1332 = vadd.f32 %v1276, %v1300
          %v1333 = vadd.f32 %v1277, %v1299
          %v1334 = vadd.f32 %v1278, %v1300
          %v1335 = vadd.f32 %v1279, %v1299
          %v1336 = vadd.f32 %v1280, %v1300
          %v1337 = vadd.f32 %v1281, %v1299
          %v1338 = vadd.f32 %v1282, %v1300
          %v1339 = vadd.f32 %v1283, %v1299
          %v1340 = vadd.f32 %v1284, %v1300
          %v1341 = vadd.f32 %v1285, %v1299
          %v1342 = vadd.f32 %v1286, %v1300
          %v1343 = vadd.f32 %v1287, %v1299
          %v1344 = vadd.f32 %v1288, %v1300
          %v1345 = vadd.f32 %v1289, %v1299
          %v1346 = vadd.f32 %v1290, %v1300
          %v1347 = vadd.f32 %v1291, %v1299
          %v1348 = vadd.f32 %v1292, %v1300
          %v1349 = vadd.f32 %v1293, %v1299
          %v1350 = vadd.f32 %v1294, %v1300
          %v1351 = vadd.f32 %v1295, %v1299
          %v1352 = vadd.f32 %v1296, %v1300
          %v1353 = vmax.f32 %v1303, 0.0
          %v1354 = vmax.f32 %v1304, 0.0
          %v1355 = vmax.f32 %v1305, 0.0
          %v1356 = vmax.f32 %v1306, 0.0
          %v1357 = vmax.f32 %v1307, 0.0
          %v1358 = vmax.f32 %v1308, 0.0
          %v1359 = vmax.f32 %v1309, 0.0
          %v1360 = vmax.f32 %v1310, 0.0
          %v1361 = vmax.f32 %v1311, 0.0
          %v1362 = vmax.f32 %v1312, 0.0
          %v1363 = vmax.f32 %v1313, 0.0
          %v1364 = vmax.f32 %v1314, 0.0
          %v1365 = vmax.f32 %v1315, 0.0
          %v1366 = vmax.f32 %v1316, 0.0
          %v1367 = vmax.f32 %v1317, 0.0
          %v1368 = vmax.f32 %v1318, 0.0
          %v1369 = vmax.f32 %v1319, 0.0
          %v1370 = vmax.f32 %v1320, 0.0
          %v1371 = vmax.f32 %v1321, 0.0
          %v1372 = vmax.f32 %v1322, 0.0
          %v1373 = vmax.f32 %v1323, 0.0
          %v1374 = vmax.f32 %v1324, 0.0
          %v1375 = vmax.f32 %v1325, 0.0
          %v1376 = vmax.f32 %v1326, 0.0
          %v1377 = vmax.f32 %v1327, 0.0
          %v1378 = vmax.f32 %v1328, 0.0
          %v1379 = vmax.f32 %v1329, 0.0
          %v1380 = vmax.f32 %v1330, 0.0
          %v1381 = vmax.f32 %v1331, 0.0
          %v1382 = vmax.f32 %v1332, 0.0
          %v1383 = vmax.f32 %v1333, 0.0
          %v1384 = vmax.f32 %v1334, 0.0
          %v1385 = vmax.f32 %v1335, 0.0
          %v1386 = vmax.f32 %v1336, 0.0
          %v1387 = vmax.f32 %v1337, 0.0
          %v1388 = vmax.f32 %v1338, 0.0
          %v1389 = vmax.f32 %v1339, 0.0
          %v1390 = vmax.f32 %v1340, 0.0
          %v1391 = vmax.f32 %v1341, 0.0
          %v1392 = vmax.f32 %v1342, 0.0
          %v1393 = vmax.f32 %v1343, 0.0
          %v1394 = vmax.f32 %v1344, 0.0
          %v1395 = vmax.f32 %v1345, 0.0
          %v1396 = vmax.f32 %v1346, 0.0
          %v1397 = vmax.f32 %v1347, 0.0
          %v1398 = vmax.f32 %v1348, 0.0
          %v1399 = vmax.f32 %v1349, 0.0
          %v1400 = vmax.f32 %v1350, 0.0
          %v1401 = vmax.f32 %v1351, 0.0
          %v1402 = vmax.f32 %v1352, 0.0
          %1403 = vst [vmem:[%s400] sm:$0xff] %v1353
          %1404 = vst [vmem:[%s400 + $0x8] sm:$0xff] %v1354
          %1405 = vst [vmem:[%s400 + $0x10] sm:$0xff] %v1355
          %1406 = vst [vmem:[%s400 + $0x18] sm:$0xff] %v1356
          %1407 = vst [vmem:[%s400 + $0x20] sm:$0xff] %v1357
          %1408 = vst [vmem:[%s400 + $0x28] sm:$0xff] %v1358
          %1409 = vst [vmem:[%s400 + $0x30] sm:$0xff] %v1359
          %1410 = vst [vmem:[%s400 + $0x38] sm:$0xff] %v1360
          %1411 = vst [vmem:[%s400 + $0x40] sm:$0xff] %v1361
          %1412 = vst [vmem:[%s400 + $0x48] sm:$0xff] %v1362
          %1413 = vst [vmem:[%s400 + $0x50] sm:$0xff] %v1363
          %1414 = vst [vmem:[%s400 + $0x58] sm:$0xff] %v1364
          %1415 = vst [vmem:[%s400 + $0x60] sm:$0xff] %v1365
          %1416 = vst [vmem:[%s400 + $0x68] sm:$0xff] %v1366
          %1417 = vst [vmem:[%s400 + $0x70] sm:$0xff] %v1367
          %1418 = vst [vmem:[%s400 + $0x78] sm:$0xff] %v1368
          %1419 = vst [vmem:[%s400 + $0x80] sm:$0xff] %v1369
          %1420 = vst [vmem:[%s400 + $0x88] sm:$0xff] %v1370
          %1421 = vst [vmem:[%s400 + $0x90] sm:$0xff] %v1371
          %1422 = vst [vmem:[%s400 + $0x98] sm:$0xff] %v1372
          %1423 = vst [vmem:[%s400 + $0xa0] sm:$0xff] %v1373
          %1424 = vst [vmem:[%s400 + $0xa8] sm:$0xff] %v1374
          %1425 = vst [vmem:[%s400 + $0xb0] sm:$0xff] %v1375
          %1426 = vst [vmem:[%s400 + $0xb8] sm:$0xff] %v1376
          %1427 = vst [vmem:[%s400 + $0xc0] sm:$0xff] %v1377
          %1428 = vst [vmem:[%s400 + $0xc8] sm:$0xff] %v1378
          %1429 = vst [vmem:[%s400 + $0xd0] sm:$0xff] %v1379
          %1430 = vst [vmem:[%s400 + $0xd8] sm:$0xff] %v1380
          %1431 = vst [vmem:[%s400 + $0xe0] sm:$0xff] %v1381
          %1432 = vst [vmem:[%s400 + $0xe8] sm:$0xff] %v1382
          %1433 = vst [vmem:[%s400 + $0xf0] sm:$0xff] %v1383
          %1434 = vst [vmem:[%s400 + $0xf8] sm:$0xff] %v1384
          %1435 = vst [vmem:[%s400 + $0x100] sm:$0xff] %v1385
          %1436 = vst [vmem:[%s400 + $0x108] sm:$0xff] %v1386
          %1437 = vst [vmem:[%s400 + $0x110] sm:$0xff] %v1387
          %1438 = vst [vmem:[%s400 + $0x118] sm:$0xff] %v1388
          %1439 = vst [vmem:[%s400 + $0x120] sm:$0xff] %v1389
          %1440 = vst [vmem:[%s400 + $0x128] sm:$0xff] %v1390
          %1441 = vst [vmem:[%s400 + $0x130] sm:$0xff] %v1391
          %1442 = vst [vmem:[%s400 + $0x138] sm:$0xff] %v1392
          %1443 = vst [vmem:[%s400 + $0x140] sm:$0xff] %v1393
          %1444 = vst [vmem:[%s400 + $0x148] sm:$0xff] %v1394
          %1445 = vst [vmem:[%s400 + $0x150] sm:$0xff] %v1395
          %1446 = vst [vmem:[%s400 + $0x158] sm:$0xff] %v1396
          %1447 = vst [vmem:[%s400 + $0x160] sm:$0xff] %v1397
          %1448 = vst [vmem:[%s400 + $0x168] sm:$0xff] %v1398
          %1449 = vst [vmem:[%s400 + $0x170] sm:$0xff] %v1399
          %1450 = vst [vmem:[%s400 + $0x178] sm:$0xff] %v1400
          %1451 = vst [vmem:[%s400 + $0x180] sm:$0xff] %v1401
          %1452 = vst [vmem:[%s400 + $0x188] sm:$0xff] %v1402
        $region78: #{mrnet_attention_forward.7} parent=65 // pred_fallthru
          _
        %s1453 = smul.u32 25, %s19
        %s1454 = smul.u32 2, %s20
        %p1455 = scmp.lt.s32.totalorder %s1453, 24
        %s1456 = scalar_select %p1455, %s1453, 24
        %p1457 = scmp.lt.s32.totalorder %s1454, 1
        %s1458 = scalar_select %p1457, %s1454, 1
        %s1459 = smul.addr %s1456, 2
        %s1460 = sadd.s32 %s1458, %s1459
        %s1461 = smul.addr %s1460, 8
        %s1462 = scalar_lea.vmem %s3, %s1461
        // Predicated region
        $region79: #{mrnet_attention_forward.7} parent=65 // pred_check
          %p1463 = pneg %p135
        $region80: #{mrnet_attention_forward.7} parent=65 // pred_check_branch
          %1465 = sbr.rel (%p1463) target = $region82
        $region81: #{mrnet_attention_forward.7} parent=65 // pred_region
          %s1466 = smul.u32 25, %s19
          %s1467 = smul.u32 2, %s20
        $region82: #{mrnet_attention_forward.7} parent=65 // pred_fallthru
          _
        // Predicated region
        $region83: #{mrnet_attention_forward.7} parent=65 // pred_check
          %p1468 = pneg %p135
        $region84: #{mrnet_attention_forward.7} parent=65 // pred_check_branch
          %1470 = sbr.rel (%p1468) target = $region86
        $region85: #{mrnet_attention_forward.7} parent=65 // pred_region
          %s1471 = smul.u32 25, %s19
          %s1472 = smul.u32 2, %s20
          %p1473 = scmp.lt.s32.totalorder %s1471, 24
          %s1474 = scalar_select %p1473, %s1471, 24
          %p1475 = scmp.lt.s32.totalorder %s1472, 1
          %s1476 = scalar_select %p1475, %s1472, 1
          %s1477 = smul.addr %s1474, 2
          %s1478 = sadd.s32 %s1476, %s1477
          %s1479 = smul.addr %s1478, 8
          %s1480 = scalar_lea.vmem %s3, %s1479
        $region86: #{mrnet_attention_forward.7} parent=65 // pred_fallthru
          _
      $region66: #{mrnet_attention_forward.7} parent=5 // pred_fallthru
        _
      %p1481 = scmp.le.s32.totalorder 2, %s9
      // Predicated region
      $region87: #{mrnet_attention_forward.7} parent=5 // pred_check
        %p1482 = pneg %p1481
      $region88: #{mrnet_attention_forward.7} parent=5 // pred_check_branch
        %1484 = sbr.rel (%p1482) target = $region90
      $region89: #{mrnet_attention_forward.7} parent=5 // pred_region
        %s1485 = ssub.s32 %s9, 2
      $region90: #{mrnet_attention_forward.7} parent=5 // pred_fallthru
        _
    $region6: #{mrnet_attention_forward.7} parent=1 // loop_footer
      %s13 = sadd.s32 1, %s9
    $region7: #{mrnet_attention_forward.7} parent=1 // loop_footer_branch
      %8 = sbr.rel target = $region3
    $region8: #{mrnet_attention_forward.7} parent=1 // loop_exit
      _

// kernel: mrnet_attention_forward.8
$region0: #{mrnet_attention_forward.8}
  #allocation0 [shape = 'u32[]', space=smem, size = 0x4, offset = 0x4, fixed_abs, tag = 'smem constant byte address 0x4 - core index']
  #allocation1 [shape = 'u32[72,128]{1,0:T(1,128)}', space=vmem, size = 0x9000, scoped, tag = 'internal scratch']
  #allocation2 [shape = 'f32[40,128]{1,0:T(8,128)}', space=vmem, size = 0x5000, scoped, tag = 'scratch operand']
  %s0 = inlined_call_operand.vmem [shape: bf16[40,1792], index: 0, kind: input, shape index: {}]
  %s1 = inlined_call_operand.vmem [shape: bf16[1792,384], index: 1, kind: input, shape index: {}]
  %s2 = inlined_call_operand.vmem [shape: f32[1,384], index: 2, kind: input, shape index: {}]
  %s3 = inlined_call_operand.vmem [shape: f32[40,384], index: 3, kind: output, shape index: {}]
  %s4 = sld [smem:[#allocation0]]
  $region166: #{mrnet_attention_forward.8} parent=0
    _
  %s6 = ssub.s32 1, %s4
  %s7 = scalar_select 0, %s6, %s4
  $region1: #{mrnet_attention_forward.8} parent=0
    #allocation3 [shape = 'u8[40960]{0}', space=vmem, size = 0xa000, scoped, tag = 'input window, operand 0']
    #allocation4 [shape = 'u8[131072]{0}', space=vmem, size = 0x20000, scoped, tag = 'input window, operand 1']
    #allocation5 [shape = 'u8[40960]{0}', space=vmem, size = 0xa000, scoped, tag = 'output window, operand 0']
    loop: start=0, step=1, limit=23
    $region2: #{mrnet_attention_forward.8} parent=1 // loop_pre_header
      _
    $region3: #{mrnet_attention_forward.8} parent=1 // loop_header
      %s9 = sphi 0, %s13
      %p10 = scmp.ge.s32.totalorder %s9, 23
      %s16 = sphi 0, %s35
      %s17 = sphi 0, %s31
      %s18 = sphi 0, %s27
      %s19 = sphi 0, %s16
      %s20 = sphi 0, %s17
      %s21 = sphi 0, %s18
      %s22 = sphi 0, %s19
      %s23 = sphi 0, %s20
      %s24 = sphi 0, %s21
      %s40 = sphi 0, %s42
      %s43 = sphi 0, %s40
      %s44 = sphi 0, %s43
      %s60 = sphi 0, %s44
      %s68 = sphi 0, %s70
      %s71 = sphi 0, %s68
      %s72 = sphi 0, %s71
      %s88 = sphi 0, %s72
      %s94 = sphi 0, %s96
      %s97 = sphi 0, %s94
      %s98 = sphi 0, %s97
      %s114 = sphi 0, %s98
      %s122 = sphi 0, %s124
      %s125 = sphi 0, %s122
      %s126 = sphi 0, %s125
      %s142 = sphi 0, %s126
    $region4: #{mrnet_attention_forward.8} parent=1 // loop_header_branch
      %12 = sbr.rel (%p10) target = $region8
    $region5: #{mrnet_attention_forward.8} parent=1 // loop_body
      %s14 = ssub.s32 %s9, 1
      %s15 = ssub.s32 %s9, 2
      %s25 = sadd.s32 1, %s18
      %p26 = scmp.ge.s32.totalorder %s25, 7
      %s27 = scalar_select %p26, 0, %s25
      %s28 = sadd.s32 1, %s17
      %s29 = scalar_select %p26, %s28, %s17
      %p30 = scmp.ge.s32.totalorder %s29, 3
      %s31 = scalar_select %p30, 0, %s29
      %s32 = sadd.s32 1, %s16
      %s33 = scalar_select %p30, %s32, %s16
      %p34 = scmp.ge.s32.totalorder %s33, 1
      %s35 = scalar_select %p34, 0, %s33
      %s36 = ssub.s32 %s16, %s35
      %s37 = ssub.s32 %s18, %s27
      %s38 = sor.u32 %s36, %s37
      %p39 = scmp.eq.s32.totalorder %s38, 0
      %s41 = sadd.s32 %s40, 1
      %s42 = scalar_select %p39, %s40, %s41
      %p45 = pneg %p39
      %p46 = scmp.eq.s32.totalorder %s9, 20
      %p47 = por %p45, %p46
      %p48 = scmp.ne.s32.totalorder %s40, %s43
      %p49 = scmp.eq.s32.totalorder %s9, 0
      %p50 = por %p48, %p49
      %p51 = scmp.ne.s32.totalorder %s40, %s43
      %p52 = scmp.eq.s32.totalorder %s14, 20
      %p53 = por %p51, %p52
      %p54 = scmp.ne.s32.totalorder %s43, %s44
      %p55 = scmp.eq.s32.totalorder %s14, 0
      %p56 = por %p54, %p55
      %p57 = scmp.ne.s32.totalorder %s43, %s44
      %p58 = scmp.eq.s32.totalorder %s15, 20
      %p59 = por %p57, %p58
      %p61 = scmp.ne.s32.totalorder %s44, %s60
      %p62 = scmp.eq.s32.totalorder %s15, 0
      %p63 = por %p61, %p62
      %s64 = ssub.s32 %s18, %s27
      %s65 = ssub.s32 %s17, %s31
      %s66 = sor.u32 %s64, %s65
      %p67 = scmp.eq.s32.totalorder %s66, 0
      %s69 = sadd.s32 %s68, 1
      %s70 = scalar_select %p67, %s68, %s69
      %p73 = pneg %p67
      %p74 = scmp.eq.s32.totalorder %s9, 20
      %p75 = por %p73, %p74
      %p76 = scmp.ne.s32.totalorder %s68, %s71
      %p77 = scmp.eq.s32.totalorder %s9, 0
      %p78 = por %p76, %p77
      %p79 = scmp.ne.s32.totalorder %s68, %s71
      %p80 = scmp.eq.s32.totalorder %s14, 20
      %p81 = por %p79, %p80
      %p82 = scmp.ne.s32.totalorder %s71, %s72
      %p83 = scmp.eq.s32.totalorder %s14, 0
      %p84 = por %p82, %p83
      %p85 = scmp.ne.s32.totalorder %s71, %s72
      %p86 = scmp.eq.s32.totalorder %s15, 20
      %p87 = por %p85, %p86
      %p89 = scmp.ne.s32.totalorder %s72, %s88
      %p90 = scmp.eq.s32.totalorder %s15, 0
      %p91 = por %p89, %p90
      %s92 = ssub.s32 %s17, %s31
      %p93 = scmp.eq.s32.totalorder %s92, 0
      %s95 = sadd.s32 %s94, 1
      %s96 = scalar_select %p93, %s94, %s95
      %p99 = pneg %p93
      %p100 = scmp.eq.s32.totalorder %s9, 20
      %p101 = por %p99, %p100
      %p102 = scmp.ne.s32.totalorder %s94, %s97
      %p103 = scmp.eq.s32.totalorder %s9, 0
      %p104 = por %p102, %p103
      %p105 = scmp.ne.s32.totalorder %s94, %s97
      %p106 = scmp.eq.s32.totalorder %s14, 20
      %p107 = por %p105, %p106
      %p108 = scmp.ne.s32.totalorder %s97, %s98
      %p109 = scmp.eq.s32.totalorder %s14, 0
      %p110 = por %p108, %p109
      %p111 = scmp.ne.s32.totalorder %s97, %s98
      %p112 = scmp.eq.s32.totalorder %s15, 20
      %p113 = por %p111, %p112
      %p115 = scmp.ne.s32.totalorder %s98, %s114
      %p116 = scmp.eq.s32.totalorder %s15, 0
      %p117 = por %p115, %p116
      %s118 = ssub.s32 %s16, %s35
      %s119 = ssub.s32 %s17, %s31
      %s120 = sor.u32 %s118, %s119
      %p121 = scmp.eq.s32.totalorder %s120, 0
      %s123 = sadd.s32 %s122, 1
      %s124 = scalar_select %p121, %s122, %s123
      %p127 = pneg %p121
      %p128 = scmp.eq.s32.totalorder %s9, 20
      %p129 = por %p127, %p128
      %p130 = scmp.ne.s32.totalorder %s122, %s125
      %p131 = scmp.eq.s32.totalorder %s9, 0
      %p132 = por %p130, %p131
      %p133 = scmp.ne.s32.totalorder %s122, %s125
      %p134 = scmp.eq.s32.totalorder %s14, 20
      %p135 = por %p133, %p134
      %p136 = scmp.ne.s32.totalorder %s125, %s126
      %p137 = scmp.eq.s32.totalorder %s14, 0
      %p138 = por %p136, %p137
      %p139 = scmp.ne.s32.totalorder %s125, %s126
      %p140 = scmp.eq.s32.totalorder %s15, 20
      %p141 = por %p139, %p140
      %p143 = scmp.ne.s32.totalorder %s126, %s142
      %p144 = scmp.eq.s32.totalorder %s15, 0
      %p145 = por %p143, %p144
      %p146 = scmp.le.s32.totalorder 1, %s9
      %p147 = scmp.lt.s32.totalorder %s9, 22
      %p148 = pnand %p146, %p147
      %p149 = pneg %p148
      // Predicated region
      $region9: #{mrnet_attention_forward.8} parent=5 // pred_check
        _
      $region10: #{mrnet_attention_forward.8} parent=5 // pred_check_branch
        %151 = sbr.rel (%p148) target = $region12
      $region11: #{mrnet_attention_forward.8} parent=5 // pred_region
        %s152 = ssub.s32 %s9, 1
      $region12: #{mrnet_attention_forward.8} parent=5 // pred_fallthru
        _
      %p153 = scmp.lt.s32.totalorder %s9, 21
      // Predicated region
      $region13: #{mrnet_attention_forward.8} parent=5 // pred_check
        %p154 = pneg %p153
      $region14: #{mrnet_attention_forward.8} parent=5 // pred_check_branch
        %156 = sbr.rel (%p154) target = $region16
      $region15: #{mrnet_attention_forward.8} parent=5 // pred_region
        // Predicated region
        $region17: #{mrnet_attention_forward.8} parent=15 // pred_check
          %p157 = pneg %p50
        $region18: #{mrnet_attention_forward.8} parent=15 // pred_check_branch
          %159 = sbr.rel (%p157) target = $region20
        $region19: #{mrnet_attention_forward.8} parent=15 // pred_region
          %s160 = sand.u32 %s40, 1
          %s161 = sand.u32 %s40, 1
          %s162 = smul.addr %s161, 40
          %s163 = scalar_lea.vmem [#allocation3], %s162
          %s164 = smul.u32 5, %s16
          %s165 = smul.u32 2, %s18
          %s166 = smul.addr %s164, 14
          %s167 = sadd.s32 %s165, %s166
          %s168 = smul.addr %s167, 4
          %s169 = scalar_lea.vmem %s0, %s168
          // Predicated region
          $region21: #{mrnet_attention_forward.8} parent=19 // pred_check
            _
          $region22: #{mrnet_attention_forward.8} parent=19 // pred_check_branch
            %171 = sbr.rel (0) target = $region24
          $region23: #{mrnet_attention_forward.8} parent=19 // pred_region
            // Predicated region
            $region25: #{mrnet_attention_forward.8} parent=23 // pred_check
              _
            $region26: #{mrnet_attention_forward.8} parent=23 // pred_check_branch
              %173 = sbr.rel (0) target = $region28
            $region27: #{mrnet_attention_forward.8} parent=23 // pred_region
              // Predicated region
              $region40: #{mrnet_attention_forward.8} parent=27 // pred_check
                _
              $region41: #{mrnet_attention_forward.8} parent=27 // pred_check_branch
                %197 = sbr.rel (0) target = $region43
              $region42: #{mrnet_attention_forward.8} parent=27 // pred_region
                loop: start=0, step=1, limit=1
                $region44: #{mrnet_attention_forward.8} parent=42 // loop_pre_header
                  _
                $region45: #{mrnet_attention_forward.8} parent=42 // loop_header
                  %s199 = sphi 0, %s203
                  %p200 = scmp.ge.s32.totalorder %s199, 1
                  %s204 = sphi %s169, %s169
                  %s205 = sphi %s163, %s163
                $region46: #{mrnet_attention_forward.8} parent=42 // loop_header_branch
                  %202 = sbr.rel (%p200) target = $region50
                $region47: #{mrnet_attention_forward.8} parent=42 // loop_body
                  %v206 = vld [vmem:[%s204] sm:$0xff]
                  %207 = vst [vmem:[%s205] sm:$0xff] %v206
                  %v208 = vld [vmem:[%s204 + $0x38] sm:$0xff]
                  %209 = vst [vmem:[%s205 + $0x8] sm:$0xff] %v208
                  %v210 = vld [vmem:[%s204 + $0x70] sm:$0xff]
                  %211 = vst [vmem:[%s205 + $0x10] sm:$0xff] %v210
                  %v212 = vld [vmem:[%s204 + $0xa8] sm:$0xff]
                  %213 = vst [vmem:[%s205 + $0x18] sm:$0xff] %v212
                  %v214 = vld [vmem:[%s204 + $0xe0] sm:$0xff]
                  %215 = vst [vmem:[%s205 + $0x20] sm:$0xff] %v214
                $region48: #{mrnet_attention_forward.8} parent=42 // loop_footer
                  %s203 = sadd.s32 1, %s199
                $region49: #{mrnet_attention_forward.8} parent=42 // loop_footer_branch
                  %198 = sbr.rel target = $region45
                $region50: #{mrnet_attention_forward.8} parent=42 // loop_exit
                  _
              $region43: #{mrnet_attention_forward.8} parent=27 // pred_fallthru
                _
              // Predicated region
              $region51: #{mrnet_attention_forward.8} parent=27 // pred_check
                _
              $region52: #{mrnet_attention_forward.8} parent=27 // pred_check_branch
                %217 = sbr.rel target = $region54
              $region53: #{mrnet_attention_forward.8} parent=27 // pred_region
                _
              $region54: #{mrnet_attention_forward.8} parent=27 // pred_fallthru
                _
            $region28: #{mrnet_attention_forward.8} parent=23 // pred_fallthru
              _
            // Predicated region
            $region29: #{mrnet_attention_forward.8} parent=23 // pred_check
              _
            $region30: #{mrnet_attention_forward.8} parent=23 // pred_check_branch
              %175 = sbr.rel target = $region32
            $region31: #{mrnet_attention_forward.8} parent=23 // pred_region
              %s177 = ssub.s32 256, 1
              loop: start=0, step=1, limit=1
              $region33: #{mrnet_attention_forward.8} parent=31 // loop_pre_header
                _
              $region34: #{mrnet_attention_forward.8} parent=31 // loop_header
                %s179 = sphi 0, %s183
                %p180 = scmp.ge.s32.totalorder %s179, 1
                %s184 = sphi %s169, %s169
                %s185 = sphi %s163, %s163
              $region35: #{mrnet_attention_forward.8} parent=31 // loop_header_branch
                %182 = sbr.rel (%p180) target = $region39
              $region36: #{mrnet_attention_forward.8} parent=31 // loop_body
                %v186 = vld [vmem:[%s184] sm:%s177]
                %187 = vst [vmem:[%s185] sm:%s177] %v186
                %v188 = vld [vmem:[%s184 + $0x38] sm:%s177]
                %189 = vst [vmem:[%s185 + $0x8] sm:%s177] %v188
                %v190 = vld [vmem:[%s184 + $0x70] sm:%s177]
                %191 = vst [vmem:[%s185 + $0x10] sm:%s177] %v190
                %v192 = vld [vmem:[%s184 + $0xa8] sm:%s177]
                %193 = vst [vmem:[%s185 + $0x18] sm:%s177] %v192
                %v194 = vld [vmem:[%s184 + $0xe0] sm:%s177]
                %195 = vst [vmem:[%s185 + $0x20] sm:%s177] %v194
              $region37: #{mrnet_attention_forward.8} parent=31 // loop_footer
                %s183 = sadd.s32 1, %s179
              $region38: #{mrnet_attention_forward.8} parent=31 // loop_footer_branch
                %178 = sbr.rel target = $region34
              $region39: #{mrnet_attention_forward.8} parent=31 // loop_exit
                _
            $region32: #{mrnet_attention_forward.8} parent=23 // pred_fallthru
              _
          $region24: #{mrnet_attention_forward.8} parent=19 // pred_fallthru
            _
          %218 = vnop
        $region20: #{mrnet_attention_forward.8} parent=15 // pred_fallthru
          _
        // Predicated region
        $region55: #{mrnet_attention_forward.8} parent=15 // pred_check
          %p219 = pneg %p78
        $region56: #{mrnet_attention_forward.8} parent=15 // pred_check_branch
          %221 = sbr.rel (%p219) target = $region58
        $region57: #{mrnet_attention_forward.8} parent=15 // pred_region
          %s222 = sand.u32 %s68, 1
          %s223 = sand.u32 %s68, 1
          %s224 = smul.addr %s223, 128
          %s225 = scalar_lea.vmem [#allocation4], %s224
          %s226 = smul.u32 32, %s18
          %s227 = smul.addr %s226, 3
          %s228 = sadd.s32 %s17, %s227
          %s229 = smul.addr %s228, 4
          %s230 = scalar_lea.vmem %s1, %s229
          // Predicated region
          $region59: #{mrnet_attention_forward.8} parent=57 // pred_check
            _
          $region60: #{mrnet_attention_forward.8} parent=57 // pred_check_branch
            %232 = sbr.rel (0) target = $region62
          $region61: #{mrnet_attention_forward.8} parent=57 // pred_region
            // Predicated region
            $region63: #{mrnet_attention_forward.8} parent=61 // pred_check
              _
            $region64: #{mrnet_attention_forward.8} parent=61 // pred_check_branch
              %234 = sbr.rel target = $region66
            $region65: #{mrnet_attention_forward.8} parent=61 // pred_region
              // Predicated region
              $region78: #{mrnet_attention_forward.8} parent=65 // pred_check
                _
              $region79: #{mrnet_attention_forward.8} parent=65 // pred_check_branch
                %312 = sbr.rel (0) target = $region81
              $region80: #{mrnet_attention_forward.8} parent=65 // pred_region
                loop: start=0, step=1, limit=1
                $region82: #{mrnet_attention_forward.8} parent=80 // loop_pre_header
                  _
                $region83: #{mrnet_attention_forward.8} parent=80 // loop_header
                  %s314 = sphi 0, %s318
                  %p315 = scmp.ge.s32.totalorder %s314, 1
                  %s319 = sphi %s230, %s230
                  %s320 = sphi %s225, %s225
                $region84: #{mrnet_attention_forward.8} parent=80 // loop_header_branch
                  %317 = sbr.rel (%p315) target = $region88
                $region85: #{mrnet_attention_forward.8} parent=80 // loop_body
                  _
                $region86: #{mrnet_attention_forward.8} parent=80 // loop_footer
                  %s318 = sadd.s32 1, %s314
                $region87: #{mrnet_attention_forward.8} parent=80 // loop_footer_branch
                  %313 = sbr.rel target = $region83
                $region88: #{mrnet_attention_forward.8} parent=80 // loop_exit
                  _
                %s322 = ssub.s32 16, 1
                loop: start=0, step=1, limit=1
                $region89: #{mrnet_attention_forward.8} parent=80 // loop_pre_header
                  _
                $region90: #{mrnet_attention_forward.8} parent=80 // loop_header
                  %s324 = sphi 0, %s328
                  %p325 = scmp.ge.s32.totalorder %s324, 1
                  %s329 = sphi %s230, %s230
                  %s330 = sphi %s225, %s225
                $region91: #{mrnet_attention_forward.8} parent=80 // loop_header_branch
                  %327 = sbr.rel (%p325) target = $region95
                $region92: #{mrnet_attention_forward.8} parent=80 // loop_body
                  %v331 = vld [vmem:[%s329] sm:%s322]
                  %332 = vst [vmem:[%s330] sm:%s322] %v331
                  %v333 = vld [vmem:[%s329 + $0xc] sm:%s322]
                  %334 = vst [vmem:[%s330 + $0x4] sm:%s322] %v333
                  %v335 = vld [vmem:[%s329 + $0x18] sm:%s322]
                  %336 = vst [vmem:[%s330 + $0x8] sm:%s322] %v335
                  %v337 = vld [vmem:[%s329 + $0x24] sm:%s322]
                  %338 = vst [vmem:[%s330 + $0xc] sm:%s322] %v337
                  %v339 = vld [vmem:[%s329 + $0x30] sm:%s322]
                  %340 = vst [vmem:[%s330 + $0x10] sm:%s322] %v339
                  %v341 = vld [vmem:[%s329 + $0x3c] sm:%s322]
                  %342 = vst [vmem:[%s330 + $0x14] sm:%s322] %v341
                  %v343 = vld [vmem:[%s329 + $0x48] sm:%s322]
                  %344 = vst [vmem:[%s330 + $0x18] sm:%s322] %v343
                  %v345 = vld [vmem:[%s329 + $0x54] sm:%s322]
                  %346 = vst [vmem:[%s330 + $0x1c] sm:%s322] %v345
                  %v347 = vld [vmem:[%s329 + $0x60] sm:%s322]
                  %348 = vst [vmem:[%s330 + $0x20] sm:%s322] %v347
                  %v349 = vld [vmem:[%s329 + $0x6c] sm:%s322]
                  %350 = vst [vmem:[%s330 + $0x24] sm:%s322] %v349
                  %v351 = vld [vmem:[%s329 + $0x78] sm:%s322]
                  %352 = vst [vmem:[%s330 + $0x28] sm:%s322] %v351
                  %v353 = vld [vmem:[%s329 + $0x84] sm:%s322]
                  %354 = vst [vmem:[%s330 + $0x2c] sm:%s322] %v353
                  %v355 = vld [vmem:[%s329 + $0x90] sm:%s322]
                  %356 = vst [vmem:[%s330 + $0x30] sm:%s322] %v355
                  %v357 = vld [vmem:[%s329 + $0x9c] sm:%s322]
                  %358 = vst [vmem:[%s330 + $0x34] sm:%s322] %v357
                  %v359 = vld [vmem:[%s329 + $0xa8] sm:%s322]
                  %360 = vst [vmem:[%s330 + $0x38] sm:%s322] %v359
                  %v361 = vld [vmem:[%s329 + $0xb4] sm:%s322]
                  %362 = vst [vmem:[%s330 + $0x3c] sm:%s322] %v361
                  %v363 = vld [vmem:[%s329 + $0xc0] sm:%s322]
                  %364 = vst [vmem:[%s330 + $0x40] sm:%s322] %v363
                  %v365 = vld [vmem:[%s329 + $0xcc] sm:%s322]
                  %366 = vst [vmem:[%s330 + $0x44] sm:%s322] %v365
                  %v367 = vld [vmem:[%s329 + $0xd8] sm:%s322]
                  %368 = vst [vmem:[%s330 + $0x48] sm:%s322] %v367
                  %v369 = vld [vmem:[%s329 + $0xe4] sm:%s322]
                  %370 = vst [vmem:[%s330 + $0x4c] sm:%s322] %v369
                  %v371 = vld [vmem:[%s329 + $0xf0] sm:%s322]
                  %372 = vst [vmem:[%s330 + $0x50] sm:%s322] %v371
                  %v373 = vld [vmem:[%s329 + $0xfc] sm:%s322]
                  %374 = vst [vmem:[%s330 + $0x54] sm:%s322] %v373
                  %v375 = vld [vmem:[%s329 + $0x108] sm:%s322]
                  %376 = vst [vmem:[%s330 + $0x58] sm:%s322] %v375
                  %v377 = vld [vmem:[%s329 + $0x114] sm:%s322]
                  %378 = vst [vmem:[%s330 + $0x5c] sm:%s322] %v377
                  %v379 = vld [vmem:[%s329 + $0x120] sm:%s322]
                  %380 = vst [vmem:[%s330 + $0x60] sm:%s322] %v379
                  %v381 = vld [vmem:[%s329 + $0x12c] sm:%s322]
                  %382 = vst [vmem:[%s330 + $0x64] sm:%s322] %v381
                  %v383 = vld [vmem:[%s329 + $0x138] sm:%s322]
                  %384 = vst [vmem:[%s330 + $0x68] sm:%s322] %v383
                  %v385 = vld [vmem:[%s329 + $0x144] sm:%s322]
                  %386 = vst [vmem:[%s330 + $0x6c] sm:%s322] %v385
                  %v387 = vld [vmem:[%s329 + $0x150] sm:%s322]
                  %388 = vst [vmem:[%s330 + $0x70] sm:%s322] %v387
                  %v389 = vld [vmem:[%s329 + $0x15c] sm:%s322]
                  %390 = vst [vmem:[%s330 + $0x74] sm:%s322] %v389
                  %v391 = vld [vmem:[%s329 + $0x168] sm:%s322]
                  %392 = vst [vmem:[%s330 + $0x78] sm:%s322] %v391
                  %v393 = vld [vmem:[%s329 + $0x174] sm:%s322]
                  %394 = vst [vmem:[%s330 + $0x7c] sm:%s322] %v393
                $region93: #{mrnet_attention_forward.8} parent=80 // loop_footer
                  %s328 = sadd.s32 1, %s324
                $region94: #{mrnet_attention_forward.8} parent=80 // loop_footer_branch
                  %323 = sbr.rel target = $region90
                $region95: #{mrnet_attention_forward.8} parent=80 // loop_exit
                  _
              $region81: #{mrnet_attention_forward.8} parent=65 // pred_fallthru
                _
            $region66: #{mrnet_attention_forward.8} parent=61 // pred_fallthru
              _
            // Predicated region
            $region67: #{mrnet_attention_forward.8} parent=61 // pred_check
              _
            $region68: #{mrnet_attention_forward.8} parent=61 // pred_check_branch
              %236 = sbr.rel (0) target = $region70
            $region69: #{mrnet_attention_forward.8} parent=61 // pred_region
              %s238 = ssub.s32 16, 1
              loop: start=0, step=1, limit=1
              $region71: #{mrnet_attention_forward.8} parent=69 // loop_pre_header
                _
              $region72: #{mrnet_attention_forward.8} parent=69 // loop_header
                %s240 = sphi 0, %s244
                %p241 = scmp.ge.s32.totalorder %s240, 1
                %s245 = sphi %s230, %s230
                %s246 = sphi %s225, %s225
              $region73: #{mrnet_attention_forward.8} parent=69 // loop_header_branch
                %243 = sbr.rel (%p241) target = $region77
              $region74: #{mrnet_attention_forward.8} parent=69 // loop_body
                %v247 = vld [vmem:[%s245] sm:%s238]
                %248 = vst [vmem:[%s246] sm:%s238] %v247
                %v249 = vld [vmem:[%s245 + $0xc] sm:%s238]
                %250 = vst [vmem:[%s246 + $0x4] sm:%s238] %v249
                %v251 = vld [vmem:[%s245 + $0x18] sm:%s238]
                %252 = vst [vmem:[%s246 + $0x8] sm:%s238] %v251
                %v253 = vld [vmem:[%s245 + $0x24] sm:%s238]
                %254 = vst [vmem:[%s246 + $0xc] sm:%s238] %v253
                %v255 = vld [vmem:[%s245 + $0x30] sm:%s238]
                %256 = vst [vmem:[%s246 + $0x10] sm:%s238] %v255
                %v257 = vld [vmem:[%s245 + $0x3c] sm:%s238]
                %258 = vst [vmem:[%s246 + $0x14] sm:%s238] %v257
                %v259 = vld [vmem:[%s245 + $0x48] sm:%s238]
                %260 = vst [vmem:[%s246 + $0x18] sm:%s238] %v259
                %v261 = vld [vmem:[%s245 + $0x54] sm:%s238]
                %262 = vst [vmem:[%s246 + $0x1c] sm:%s238] %v261
                %v263 = vld [vmem:[%s245 + $0x60] sm:%s238]
                %264 = vst [vmem:[%s246 + $0x20] sm:%s238] %v263
                %v265 = vld [vmem:[%s245 + $0x6c] sm:%s238]
                %266 = vst [vmem:[%s246 + $0x24] sm:%s238] %v265
                %v267 = vld [vmem:[%s245 + $0x78] sm:%s238]
                %268 = vst [vmem:[%s246 + $0x28] sm:%s238] %v267
                %v269 = vld [vmem:[%s245 + $0x84] sm:%s238]
                %270 = vst [vmem:[%s246 + $0x2c] sm:%s238] %v269
                %v271 = vld [vmem:[%s245 + $0x90] sm:%s238]
                %272 = vst [vmem:[%s246 + $0x30] sm:%s238] %v271
                %v273 = vld [vmem:[%s245 + $0x9c] sm:%s238]
                %274 = vst [vmem:[%s246 + $0x34] sm:%s238] %v273
                %v275 = vld [vmem:[%s245 + $0xa8] sm:%s238]
                %276 = vst [vmem:[%s246 + $0x38] sm:%s238] %v275
                %v277 = vld [vmem:[%s245 + $0xb4] sm:%s238]
                %278 = vst [vmem:[%s246 + $0x3c] sm:%s238] %v277
                %v279 = vld [vmem:[%s245 + $0xc0] sm:%s238]
                %280 = vst [vmem:[%s246 + $0x40] sm:%s238] %v279
                %v281 = vld [vmem:[%s245 + $0xcc] sm:%s238]
                %282 = vst [vmem:[%s246 + $0x44] sm:%s238] %v281
                %v283 = vld [vmem:[%s245 + $0xd8] sm:%s238]
                %284 = vst [vmem:[%s246 + $0x48] sm:%s238] %v283
                %v285 = vld [vmem:[%s245 + $0xe4] sm:%s238]
                %286 = vst [vmem:[%s246 + $0x4c] sm:%s238] %v285
                %v287 = vld [vmem:[%s245 + $0xf0] sm:%s238]
                %288 = vst [vmem:[%s246 + $0x50] sm:%s238] %v287
                %v289 = vld [vmem:[%s245 + $0xfc] sm:%s238]
                %290 = vst [vmem:[%s246 + $0x54] sm:%s238] %v289
                %v291 = vld [vmem:[%s245 + $0x108] sm:%s238]
                %292 = vst [vmem:[%s246 + $0x58] sm:%s238] %v291
                %v293 = vld [vmem:[%s245 + $0x114] sm:%s238]
                %294 = vst [vmem:[%s246 + $0x5c] sm:%s238] %v293
                %v295 = vld [vmem:[%s245 + $0x120] sm:%s238]
                %296 = vst [vmem:[%s246 + $0x60] sm:%s238] %v295
                %v297 = vld [vmem:[%s245 + $0x12c] sm:%s238]
                %298 = vst [vmem:[%s246 + $0x64] sm:%s238] %v297
                %v299 = vld [vmem:[%s245 + $0x138] sm:%s238]
                %300 = vst [vmem:[%s246 + $0x68] sm:%s238] %v299
                %v301 = vld [vmem:[%s245 + $0x144] sm:%s238]
                %302 = vst [vmem:[%s246 + $0x6c] sm:%s238] %v301
                %v303 = vld [vmem:[%s245 + $0x150] sm:%s238]
                %304 = vst [vmem:[%s246 + $0x70] sm:%s238] %v303
                %v305 = vld [vmem:[%s245 + $0x15c] sm:%s238]
                %306 = vst [vmem:[%s246 + $0x74] sm:%s238] %v305
                %v307 = vld [vmem:[%s245 + $0x168] sm:%s238]
                %308 = vst [vmem:[%s246 + $0x78] sm:%s238] %v307
                %v309 = vld [vmem:[%s245 + $0x174] sm:%s238]
                %310 = vst [vmem:[%s246 + $0x7c] sm:%s238] %v309
              $region75: #{mrnet_attention_forward.8} parent=69 // loop_footer
                %s244 = sadd.s32 1, %s240
              $region76: #{mrnet_attention_forward.8} parent=69 // loop_footer_branch
                %239 = sbr.rel target = $region72
              $region77: #{mrnet_attention_forward.8} parent=69 // loop_exit
                _
            $region70: #{mrnet_attention_forward.8} parent=61 // pred_fallthru
              _
          $region62: #{mrnet_attention_forward.8} parent=57 // pred_fallthru
            _
          %395 = vnop
        $region58: #{mrnet_attention_forward.8} parent=15 // pred_fallthru
          _
        // Predicated region
        $region96: #{mrnet_attention_forward.8} parent=15 // pred_check
          %p396 = pneg %p104
        $region97: #{mrnet_attention_forward.8} parent=15 // pred_check_branch
          %398 = sbr.rel (%p396) target = $region99
        $region98: #{mrnet_attention_forward.8} parent=15 // pred_region
          %p399 = scmp.lt.s32.totalorder %s17, 2
          %s400 = scalar_select %p399, %s17, 2
          %s401 = scalar_lea.vmem %s2, %s400
        $region99: #{mrnet_attention_forward.8} parent=15 // pred_fallthru
          _
      $region16: #{mrnet_attention_forward.8} parent=5 // pred_fallthru
        _
      %p402 = scmp.le.s32.totalorder 1, %s9
      %p403 = scmp.lt.s32.totalorder %s9, 22
      %p404 = pnand %p402, %p403
      %p405 = pneg %p404
      // Predicated region
      $region100: #{mrnet_attention_forward.8} parent=5 // pred_check
        _
      $region101: #{mrnet_attention_forward.8} parent=5 // pred_check_branch
        %407 = sbr.rel (%p404) target = $region103
      $region102: #{mrnet_attention_forward.8} parent=5 // pred_region
        %s408 = ssub.s32 %s9, 1
        %s409 = sand.u32 %s43, 1
        %s410 = sand.u32 %s43, 1
        %s411 = smul.addr %s410, 40
        %s412 = scalar_lea.vmem [#allocation3], %s411
        // Predicated region
        $region104: #{mrnet_attention_forward.8} parent=102 // pred_check
          %p413 = pneg %p56
        $region105: #{mrnet_attention_forward.8} parent=102 // pred_check_branch
          %415 = sbr.rel (%p413) target = $region107
        $region106: #{mrnet_attention_forward.8} parent=102 // pred_region
          _
        $region107: #{mrnet_attention_forward.8} parent=102 // pred_fallthru
          _
        %s416 = sand.u32 %s71, 1
        %s417 = sand.u32 %s71, 1
        %s418 = smul.addr %s417, 128
        %s419 = scalar_lea.vmem [#allocation4], %s418
        // Predicated region
        $region108: #{mrnet_attention_forward.8} parent=102 // pred_check
          %p420 = pneg %p84
        $region109: #{mrnet_attention_forward.8} parent=102 // pred_check_branch
          %422 = sbr.rel (%p420) target = $region111
        $region110: #{mrnet_attention_forward.8} parent=102 // pred_region
          _
        $region111: #{mrnet_attention_forward.8} parent=102 // pred_fallthru
          _
        %s423 = sand.u32 %s43, 1
        %s424 = sand.u32 %s43, 1
        %s425 = smul.addr %s424, 40
        %s426 = scalar_lea.vmem [#allocation3], %s425
        %p427 = pneg %p56
        %p428 = pneg %p53
        %s429 = sand.u32 %s71, 1
        %s430 = sand.u32 %s71, 1
        %s431 = smul.addr %s430, 128
        %s432 = scalar_lea.vmem [#allocation4], %s431
        %p433 = pneg %p84
        %p434 = pneg %p81
        %p435 = scmp.lt.s32.totalorder %s20, 2
        %s436 = scalar_select %p435, %s20, 2
        %s437 = scalar_lea.vmem %s2, %s436
        %p438 = pneg %p110
        %p439 = pneg %p107
        %p440 = pneg %p138
        %p441 = pneg %p135
        %s442 = sand.u32 %s125, 1
        %s443 = sand.u32 %s125, 1
        %s444 = smul.addr %s443, 40
        %s445 = scalar_lea.vmem [#allocation5], %s444
        %s446 = smul.u32 5, %s19
        %s447 = smul.u32 2, %s21
        %s448 = smul.u32 32, %s21
        %p449 = scmp.lt.s32.totalorder %s20, 2
        %s450 = scalar_select %p449, %s20, 2
        %s451 = scalar_lea.vmem %s2, %s450
        %s452 = smul.u32 5, %s19
        %p453 = scmp.eq.s32.totalorder %s21, 0
        // Predicated region
        $region112: #{mrnet_attention_forward.8} parent=102 // pred_check
          %p454 = pneg %p453
        $region113: #{mrnet_attention_forward.8} parent=102 // pred_check_branch
          %456 = sbr.rel (%p454) target = $region115
        $region114: #{mrnet_attention_forward.8} parent=102 // pred_region
          %457 = vst [vmem:[#allocation2] sm:$0xff] 0.0
          %458 = vst [vmem:[#allocation2 + $0x8] sm:$0xff] 0.0
          %459 = vst [vmem:[#allocation2 + $0x10] sm:$0xff] 0.0
          %460 = vst [vmem:[#allocation2 + $0x18] sm:$0xff] 0.0
          %461 = vst [vmem:[#allocation2 + $0x20] sm:$0xff] 0.0
        $region115: #{mrnet_attention_forward.8} parent=102 // pred_fallthru
          _
        %v462 = vld [vmem:[#allocation2] sm:$0xff]
        %v463 = vld [vmem:[#allocation2 + $0x8] sm:$0xff]
        %v464 = vld [vmem:[#allocation2 + $0x10] sm:$0xff]
        %v465 = vld [vmem:[#allocation2 + $0x18] sm:$0xff]
        %v466 = vld [vmem:[#allocation2 + $0x20] sm:$0xff]
        %v467 = vld [vmem:[%s412] sm:$0xff]
        %v468 = vld [vmem:[%s412 + $0x8] sm:$0xff]
        %v469 = vld [vmem:[%s412 + $0x10] sm:$0xff]
        %v470 = vld [vmem:[%s412 + $0x18] sm:$0xff]
        %v471 = vld [vmem:[%s412 + $0x20] sm:$0xff]
        %v472 = vld [vmem:[%s419] sm:$0xf]
        %v473 = vld [vmem:[%s419 + $0x4] sm:$0xf]
        %v474 = vld [vmem:[%s419 + $0x8] sm:$0xf]
        %v475 = vld [vmem:[%s419 + $0xc] sm:$0xf]
        %v476 = vld [vmem:[%s419 + $0x10] sm:$0xf]
        %v477 = vld [vmem:[%s419 + $0x14] sm:$0xf]
        %v478 = vld [vmem:[%s419 + $0x18] sm:$0xf]
        %v479 = vld [vmem:[%s419 + $0x1c] sm:$0xf]
        %v480 = vld [vmem:[%s419 + $0x20] sm:$0xf]
        %v481 = vld [vmem:[%s419 + $0x24] sm:$0xf]
        %v482 = vld [vmem:[%s419 + $0x28] sm:$0xf]
        %v483 = vld [vmem:[%s419 + $0x2c] sm:$0xf]
        %v484 = vld [vmem:[%s419 + $0x30] sm:$0xf]
        %v485 = vld [vmem:[%s419 + $0x34] sm:$0xf]
        %v486 = vld [vmem:[%s419 + $0x38] sm:$0xf]
        %v487 = vld [vmem:[%s419 + $0x3c] sm:$0xf]
        %v488 = vld [vmem:[%s419 + $0x40] sm:$0xf]
        %v489 = vld [vmem:[%s419 + $0x44] sm:$0xf]
        %v490 = vld [vmem:[%s419 + $0x48] sm:$0xf]
        %v491 = vld [vmem:[%s419 + $0x4c] sm:$0xf]
        %v492 = vld [vmem:[%s419 + $0x50] sm:$0xf]
        %v493 = vld [vmem:[%s419 + $0x54] sm:$0xf]
        %v494 = vld [vmem:[%s419 + $0x58] sm:$0xf]
        %v495 = vld [vmem:[%s419 + $0x5c] sm:$0xf]
        %v496 = vld [vmem:[%s419 + $0x60] sm:$0xf]
        %v497 = vld [vmem:[%s419 + $0x64] sm:$0xf]
        %v498 = vld [vmem:[%s419 + $0x68] sm:$0xf]
        %v499 = vld [vmem:[%s419 + $0x6c] sm:$0xf]
        %v500 = vld [vmem:[%s419 + $0x70] sm:$0xf]
        %v501 = vld [vmem:[%s419 + $0x74] sm:$0xf]
        %v502 = vld [vmem:[%s419 + $0x78] sm:$0xf]
        %v503 = vld [vmem:[%s419 + $0x7c] sm:$0xf]
        %v509 = vunpack.c.l.b16 %v467
        %v510 = vunpack.c.h.b16 %v467
        %v511 = vunpack.c.l.b16 %v468
        %v512 = vunpack.c.h.b16 %v468
        %v513 = vunpack.c.l.b16 %v469
        %v514 = vunpack.c.h.b16 %v469
        %v515 = vunpack.c.l.b16 %v470
        %v516 = vunpack.c.h.b16 %v470
        %v517 = vunpack.c.l.b16 %v471
        %v518 = vunpack.c.h.b16 %v471
        %v519 = vpack.c.b16 %v511, %v509
        %v520 = vpack.c.b16 %v512, %v510
        %v521 = vpack.c.b16 %v515, %v513
        %v522 = vpack.c.b16 %v516, %v514
        %v523 = vpack.c.b16 %v517, %v517
        %v524 = vpack.c.b16 %v518, %v518
        %v563 = vunpack.c.l.b16 %v472
        %v564 = vunpack.c.l.b16 %v473
        %v565 = vunpack.c.l.b16 %v474
        %v566 = vunpack.c.l.b16 %v475
        %v567 = vunpack.c.l.b16 %v476
        %v568 = vunpack.c.l.b16 %v477
        %v569 = vunpack.c.l.b16 %v478
        %v570 = vunpack.c.l.b16 %v479
        %v571 = vunpack.c.l.b16 %v480
        %v572 = vunpack.c.l.b16 %v481
        %v573 = vunpack.c.l.b16 %v482
        %v574 = vunpack.c.l.b16 %v483
        %v575 = vunpack.c.l.b16 %v484
        %v576 = vunpack.c.l.b16 %v485
        %v577 = vunpack.c.l.b16 %v486
        %v578 = vunpack.c.l.b16 %v487
        %v579 = vunpack.c.l.b16 %v488
        %v580 = vunpack.c.l.b16 %v489
        %v581 = vunpack.c.l.b16 %v490
        %v582 = vunpack.c.l.b16 %v491
        %v583 = vunpack.c.l.b16 %v492
        %v584 = vunpack.c.l.b16 %v493
        %v585 = vunpack.c.l.b16 %v494
        %v586 = vunpack.c.l.b16 %v495
        %v587 = vunpack.c.l.b16 %v496
        %v588 = vunpack.c.l.b16 %v497
        %v589 = vunpack.c.l.b16 %v498
        %v590 = vunpack.c.l.b16 %v499
        %v591 = vunpack.c.l.b16 %v500
        %v592 = vunpack.c.l.b16 %v501
        %v593 = vunpack.c.l.b16 %v502
        %v594 = vunpack.c.l.b16 %v503
        %v595 = vpack.c.b16 %v564, %v563
        %v596 = vpack.c.b16 %v566, %v565
        %v597 = vpack.c.b16 %v568, %v567
        %v598 = vpack.c.b16 %v570, %v569
        %v599 = vpack.c.b16 %v572, %v571
        %v600 = vpack.c.b16 %v574, %v573
        %v601 = vpack.c.b16 %v576, %v575
        %v602 = vpack.c.b16 %v578, %v577
        %v603 = vpack.c.b16 %v580, %v579
        %v604 = vpack.c.b16 %v582, %v581
        %v605 = vpack.c.b16 %v584, %v583
        %v606 = vpack.c.b16 %v586, %v585
        %v607 = vpack.c.b16 %v588, %v587
        %v608 = vpack.c.b16 %v590, %v589
        %v609 = vpack.c.b16 %v592, %v591
        %v610 = vpack.c.b16 %v594, %v593
        %627 = vmatpush.bf16.msra.mxu0 %v602
        %628 = vmatpush.bf16.msra.mxu0 %v601
        %629 = vmatpush.bf16.msra.mxu0 %v600
        %630 = vmatpush.bf16.msra.mxu0 %v599
        %631 = vmatpush.bf16.msra.mxu0 %v598
        %632 = vmatpush.bf16.msra.mxu0 %v597
        %633 = vmatpush.bf16.msra.mxu0 %v596
        %634 = vmatpush.bf16.msra.mxu0 %v595
        %635 = vmatmul.bf16.gmra.mxu0 %v519
        %v636 = vpop.f32.mrf.mxu0
        %v637 = vadd.f32 0.0, %v636
        %v638 = vpop.f32.mrf.mxu0
        %v639 = vadd.f32 0.0, %v638
        %640 = vmatmul.bf16.gmra.mxu0 %v521
        %v641 = vpop.f32.mrf.mxu0
        %v642 = vadd.f32 0.0, %v641
        %v643 = vpop.f32.mrf.mxu0
        %v644 = vadd.f32 0.0, %v643
        %645 = vmatmul.bf16.gmra.mxu0 %v523
        %v646 = vpop.f32.mrf.mxu0
        %v647 = vadd.f32 0.0, %v646
        %v648 = vpop.f32.mrf.mxu0
        %649 = vdwg.mxu0
        %650 = vmatpush.bf16.msra.mxu0 %v610
        %651 = vmatpush.bf16.msra.mxu0 %v609
        %652 = vmatpush.bf16.msra.mxu0 %v608
        %653 = vmatpush.bf16.msra.mxu0 %v607
        %654 = vmatpush.bf16.msra.mxu0 %v606
        %655 = vmatpush.bf16.msra.mxu0 %v605
        %656 = vmatpush.bf16.msra.mxu0 %v604
        %657 = vmatpush.bf16.msra.mxu0 %v603
        %658 = vmatmul.bf16.gmra.mxu0 %v520
        %v659 = vpop.f32.mrf.mxu0
        %v660 = vadd.f32 %v637, %v659
        %v661 = vpop.f32.mrf.mxu0
        %v662 = vadd.f32 %v639, %v661
        %663 = vmatmul.bf16.gmra.mxu0 %v522
        %v664 = vpop.f32.mrf.mxu0
        %v665 = vadd.f32 %v642, %v664
        %v666 = vpop.f32.mrf.mxu0
        %v667 = vadd.f32 %v644, %v666
        %668 = vmatmul.bf16.gmra.mxu0 %v524
        %v669 = vpop.f32.mrf.mxu0
        %v670 = vadd.f32 %v647, %v669
        %v671 = vpop.f32.mrf.mxu0
        %672 = vdwg.mxu0
        %v673 = vadd.f32 %v462, %v660
        %v674 = vadd.f32 %v463, %v662
        %v675 = vadd.f32 %v464, %v665
        %v676 = vadd.f32 %v465, %v667
        %v677 = vadd.f32 %v466, %v670
        %678 = vst [vmem:[#allocation2] sm:$0xff] %v673
        %679 = vst [vmem:[#allocation2 + $0x8] sm:$0xff] %v674
        %680 = vst [vmem:[#allocation2 + $0x10] sm:$0xff] %v675
        %681 = vst [vmem:[#allocation2 + $0x18] sm:$0xff] %v676
        %682 = vst [vmem:[#allocation2 + $0x20] sm:$0xff] %v677
        %p683 = scmp.eq.s32.totalorder %s21, 6
        // Predicated region
        $region116: #{mrnet_attention_forward.8} parent=102 // pred_check
          %p684 = pneg %p683
        $region117: #{mrnet_attention_forward.8} parent=102 // pred_check_branch
          %686 = sbr.rel (%p684) target = $region119
        $region118: #{mrnet_attention_forward.8} parent=102 // pred_region
          %v687 = vld [vmem:[#allocation2] sm:$0xff]
          %v688 = vld [vmem:[#allocation2 + $0x8] sm:$0xff]
          %v689 = vld [vmem:[#allocation2 + $0x10] sm:$0xff]
          %v690 = vld [vmem:[#allocation2 + $0x18] sm:$0xff]
          %v691 = vld [vmem:[#allocation2 + $0x20] sm:$0xff]
          %v692 = vld [vmem:[%s451] sm:$0x1]
          %v694 = vperm.slane %v692, 0
          %v696 = vadd.f32 %v687, %v694
          %v697 = vadd.f32 %v688, %v694
          %v698 = vadd.f32 %v689, %v694
          %v699 = vadd.f32 %v690, %v694
          %v700 = vadd.f32 %v691, %v694
          %v701 = vmax.f32 %v696, 0.0
          %v702 = vmax.f32 %v697, 0.0
          %v703 = vmax.f32 %v698, 0.0
          %v704 = vmax.f32 %v699, 0.0
          %v705 = vmax.f32 %v700, 0.0
          %706 = vst [vmem:[%s445] sm:$0xff] %v701
          %707 = vst [vmem:[%s445 + $0x8] sm:$0xff] %v702
          %708 = vst [vmem:[%s445 + $0x10] sm:$0xff] %v703
          %709 = vst [vmem:[%s445 + $0x18] sm:$0xff] %v704
          %710 = vst [vmem:[%s445 + $0x20] sm:$0xff] %v705
        $region119: #{mrnet_attention_forward.8} parent=102 // pred_fallthru
          _
        %s711 = sand.u32 %s125, 1
        %s712 = sand.u32 %s125, 1
        %s713 = smul.addr %s712, 40
        %s714 = scalar_lea.vmem [#allocation5], %s713
        // Predicated region
        $region120: #{mrnet_attention_forward.8} parent=102 // pred_check
          %p715 = pneg %p135
        $region121: #{mrnet_attention_forward.8} parent=102 // pred_check_branch
          %717 = sbr.rel (%p715) target = $region123
        $region122: #{mrnet_attention_forward.8} parent=102 // pred_region
          %s718 = smul.u32 5, %s19
          %s719 = smul.addr %s718, 3
          %s720 = sadd.s32 %s20, %s719
          %s721 = smul.addr %s720, 8
          %s722 = scalar_lea.vmem %s3, %s721
          // Predicated region
          $region124: #{mrnet_attention_forward.8} parent=122 // pred_check
            _
          $region125: #{mrnet_attention_forward.8} parent=122 // pred_check_branch
            %724 = sbr.rel (0) target = $region127
          $region126: #{mrnet_attention_forward.8} parent=122 // pred_region
            // Predicated region
            $region128: #{mrnet_attention_forward.8} parent=126 // pred_check
              _
            $region129: #{mrnet_attention_forward.8} parent=126 // pred_check_branch
              %726 = sbr.rel (0) target = $region131
            $region130: #{mrnet_attention_forward.8} parent=126 // pred_region
              // Predicated region
              $region143: #{mrnet_attention_forward.8} parent=130 // pred_check
                _
              $region144: #{mrnet_attention_forward.8} parent=130 // pred_check_branch
                %750 = sbr.rel (0) target = $region146
              $region145: #{mrnet_attention_forward.8} parent=130 // pred_region
                loop: start=0, step=1, limit=1
                $region147: #{mrnet_attention_forward.8} parent=145 // loop_pre_header
                  _
                $region148: #{mrnet_attention_forward.8} parent=145 // loop_header
                  %s752 = sphi 0, %s756
                  %p753 = scmp.ge.s32.totalorder %s752, 1
                  %s757 = sphi %s714, %s714
                  %s758 = sphi %s722, %s722
                $region149: #{mrnet_attention_forward.8} parent=145 // loop_header_branch
                  %755 = sbr.rel (%p753) target = $region153
                $region150: #{mrnet_attention_forward.8} parent=145 // loop_body
                  %v759 = vld [vmem:[%s757] sm:$0xff]
                  %760 = vst [vmem:[%s758] sm:$0xff] %v759
                  %v761 = vld [vmem:[%s757 + $0x8] sm:$0xff]
                  %762 = vst [vmem:[%s758 + $0x18] sm:$0xff] %v761
                  %v763 = vld [vmem:[%s757 + $0x10] sm:$0xff]
                  %764 = vst [vmem:[%s758 + $0x30] sm:$0xff] %v763
                  %v765 = vld [vmem:[%s757 + $0x18] sm:$0xff]
                  %766 = vst [vmem:[%s758 + $0x48] sm:$0xff] %v765
                  %v767 = vld [vmem:[%s757 + $0x20] sm:$0xff]
                  %768 = vst [vmem:[%s758 + $0x60] sm:$0xff] %v767
                $region151: #{mrnet_attention_forward.8} parent=145 // loop_footer
                  %s756 = sadd.s32 1, %s752
                $region152: #{mrnet_attention_forward.8} parent=145 // loop_footer_branch
                  %751 = sbr.rel target = $region148
                $region153: #{mrnet_attention_forward.8} parent=145 // loop_exit
                  _
              $region146: #{mrnet_attention_forward.8} parent=130 // pred_fallthru
                _
              // Predicated region
              $region154: #{mrnet_attention_forward.8} parent=130 // pred_check
                _
              $region155: #{mrnet_attention_forward.8} parent=130 // pred_check_branch
                %770 = sbr.rel target = $region157
              $region156: #{mrnet_attention_forward.8} parent=130 // pred_region
                _
              $region157: #{mrnet_attention_forward.8} parent=130 // pred_fallthru
                _
            $region131: #{mrnet_attention_forward.8} parent=126 // pred_fallthru
              _
            // Predicated region
            $region132: #{mrnet_attention_forward.8} parent=126 // pred_check
              _
            $region133: #{mrnet_attention_forward.8} parent=126 // pred_check_branch
              %728 = sbr.rel target = $region135
            $region134: #{mrnet_attention_forward.8} parent=126 // pred_region
              %s730 = ssub.s32 256, 1
              loop: start=0, step=1, limit=1
              $region136: #{mrnet_attention_forward.8} parent=134 // loop_pre_header
                _
              $region137: #{mrnet_attention_forward.8} parent=134 // loop_header
                %s732 = sphi 0, %s736
                %p733 = scmp.ge.s32.totalorder %s732, 1
                %s737 = sphi %s714, %s714
                %s738 = sphi %s722, %s722
              $region138: #{mrnet_attention_forward.8} parent=134 // loop_header_branch
                %735 = sbr.rel (%p733) target = $region142
              $region139: #{mrnet_attention_forward.8} parent=134 // loop_body
                %v739 = vld [vmem:[%s737] sm:%s730]
                %740 = vst [vmem:[%s738] sm:%s730] %v739
                %v741 = vld [vmem:[%s737 + $0x8] sm:%s730]
                %742 = vst [vmem:[%s738 + $0x18] sm:%s730] %v741
                %v743 = vld [vmem:[%s737 + $0x10] sm:%s730]
                %744 = vst [vmem:[%s738 + $0x30] sm:%s730] %v743
                %v745 = vld [vmem:[%s737 + $0x18] sm:%s730]
                %746 = vst [vmem:[%s738 + $0x48] sm:%s730] %v745
                %v747 = vld [vmem:[%s737 + $0x20] sm:%s730]
                %748 = vst [vmem:[%s738 + $0x60] sm:%s730] %v747
              $region140: #{mrnet_attention_forward.8} parent=134 // loop_footer
                %s736 = sadd.s32 1, %s732
              $region141: #{mrnet_attention_forward.8} parent=134 // loop_footer_branch
                %731 = sbr.rel target = $region137
              $region142: #{mrnet_attention_forward.8} parent=134 // loop_exit
                _
            $region135: #{mrnet_attention_forward.8} parent=126 // pred_fallthru
              _
          $region127: #{mrnet_attention_forward.8} parent=122 // pred_fallthru
            _
          %771 = vnop
        $region123: #{mrnet_attention_forward.8} parent=102 // pred_fallthru
          _
      $region103: #{mrnet_attention_forward.8} parent=5 // pred_fallthru
        _
      %p772 = scmp.le.s32.totalorder 2, %s9
      // Predicated region
      $region158: #{mrnet_attention_forward.8} parent=5 // pred_check
        %p773 = pneg %p772
      $region159: #{mrnet_attention_forward.8} parent=5 // pred_check_branch
        %775 = sbr.rel (%p773) target = $region161
      $region160: #{mrnet_attention_forward.8} parent=5 // pred_region
        %s776 = ssub.s32 %s9, 2
        // Predicated region
        $region162: #{mrnet_attention_forward.8} parent=160 // pred_check
          %p777 = pneg %p141
        $region163: #{mrnet_attention_forward.8} parent=160 // pred_check_branch
          %779 = sbr.rel (%p777) target = $region165
        $region164: #{mrnet_attention_forward.8} parent=160 // pred_region
          %s780 = sand.u32 %s126, 1
          %s781 = sand.u32 %s126, 1
          %s782 = smul.addr %s781, 40
          %s783 = scalar_lea.vmem [#allocation5], %s782
        $region165: #{mrnet_attention_forward.8} parent=160 // pred_fallthru
          _
      $region161: #{mrnet_attention_forward.8} parent=5 // pred_fallthru
        _
    $region6: #{mrnet_attention_forward.8} parent=1 // loop_footer
      %s13 = sadd.s32 1, %s9
    $region7: #{mrnet_attention_forward.8} parent=1 // loop_footer_branch
      %8 = sbr.rel target = $region3
    $region8: #{mrnet_attention_forward.8} parent=1 // loop_exit
      _

// kernel: mrnet_attention_forward.9
$region0: #{mrnet_attention_forward.9}
  #allocation0 [shape = 'u32[]', space=smem, size = 0x4, offset = 0x4, fixed_abs, tag = 'smem constant byte address 0x4 - core index']
  #allocation1 [shape = 'u32[72,128]{1,0:T(1,128)}', space=vmem, size = 0x9000, scoped, tag = 'internal scratch']
  #allocation2 [shape = 'f32[40,256]{1,0:T(8,128)}', space=vmem, size = 0xa000, scoped, tag = 'scratch operand']
  %s0 = inlined_call_operand.vmem [shape: bf16[40,3584], index: 0, kind: input, shape index: {}]
  %s1 = inlined_call_operand.vmem [shape: bf16[3584,256], index: 1, kind: input, shape index: {}]
  %s2 = inlined_call_operand.vmem [shape: f32[1,256], index: 2, kind: input, shape index: {}]
  %s3 = inlined_call_operand.vmem [shape: f32[40,256], index: 3, kind: output, shape index: {}]
  %s4 = sld [smem:[#allocation0]]
  $region91: #{mrnet_attention_forward.9} parent=0
    _
  %s6 = ssub.s32 1, %s4
  %s7 = scalar_select 0, %s6, %s4
  $region1: #{mrnet_attention_forward.9} parent=0
    #allocation3 [shape = 'u8[40960]{0}', space=vmem, size = 0xa000, scoped, tag = 'input window, operand 0']
    loop: start=0, step=1, limit=16
    $region2: #{mrnet_attention_forward.9} parent=1 // loop_pre_header
      _
    $region3: #{mrnet_attention_forward.9} parent=1 // loop_header
      %s9 = sphi 0, %s13
      %p10 = scmp.ge.s32.totalorder %s9, 16
      %s16 = sphi 0, %s35
      %s17 = sphi 0, %s31
      %s18 = sphi 0, %s27
      %s19 = sphi 0, %s16
      %s20 = sphi 0, %s17
      %s21 = sphi 0, %s18
      %s22 = sphi 0, %s19
      %s23 = sphi 0, %s20
      %s24 = sphi 0, %s21
      %s40 = sphi 0, %s42
      %s43 = sphi 0, %s40
      %s44 = sphi 0, %s43
      %s60 = sphi 0, %s44
      %s68 = sphi 0, %s70
      %s71 = sphi 0, %s68
      %s72 = sphi 0, %s71
      %s88 = sphi 0, %s72
      %s94 = sphi 0, %s96
      %s97 = sphi 0, %s94
      %s98 = sphi 0, %s97
      %s114 = sphi 0, %s98
      %s122 = sphi 0, %s124
      %s125 = sphi 0, %s122
      %s126 = sphi 0, %s125
      %s142 = sphi 0, %s126
    $region4: #{mrnet_attention_forward.9} parent=1 // loop_header_branch
      %12 = sbr.rel (%p10) target = $region8
    $region5: #{mrnet_attention_forward.9} parent=1 // loop_body
      %s14 = ssub.s32 %s9, 1
      %s15 = ssub.s32 %s9, 2
      %s25 = sadd.s32 1, %s18
      %p26 = scmp.ge.s32.totalorder %s25, 14
      %s27 = scalar_select %p26, 0, %s25
      %s28 = sadd.s32 1, %s17
      %s29 = scalar_select %p26, %s28, %s17
      %p30 = scmp.ge.s32.totalorder %s29, 1
      %s31 = scalar_select %p30, 0, %s29
      %s32 = sadd.s32 1, %s16
      %s33 = scalar_select %p30, %s32, %s16
      %p34 = scmp.ge.s32.totalorder %s33, 1
      %s35 = scalar_select %p34, 0, %s33
      %s36 = ssub.s32 %s16, %s35
      %s37 = ssub.s32 %s18, %s27
      %s38 = sor.u32 %s36, %s37
      %p39 = scmp.eq.s32.totalorder %s38, 0
      %s41 = sadd.s32 %s40, 1
      %s42 = scalar_select %p39, %s40, %s41
      %p45 = pneg %p39
      %p46 = scmp.eq.s32.totalorder %s9, 13
      %p47 = por %p45, %p46
      %p48 = scmp.ne.s32.totalorder %s40, %s43
      %p49 = scmp.eq.s32.totalorder %s9, 0
      %p50 = por %p48, %p49
      %p51 = scmp.ne.s32.totalorder %s40, %s43
      %p52 = scmp.eq.s32.totalorder %s14, 13
      %p53 = por %p51, %p52
      %p54 = scmp.ne.s32.totalorder %s43, %s44
      %p55 = scmp.eq.s32.totalorder %s14, 0
      %p56 = por %p54, %p55
      %p57 = scmp.ne.s32.totalorder %s43, %s44
      %p58 = scmp.eq.s32.totalorder %s15, 13
      %p59 = por %p57, %p58
      %p61 = scmp.ne.s32.totalorder %s44, %s60
      %p62 = scmp.eq.s32.totalorder %s15, 0
      %p63 = por %p61, %p62
      %s64 = ssub.s32 %s18, %s27
      %s65 = ssub.s32 %s17, %s31
      %s66 = sor.u32 %s64, %s65
      %p67 = scmp.eq.s32.totalorder %s66, 0
      %s69 = sadd.s32 %s68, 1
      %s70 = scalar_select %p67, %s68, %s69
      %p73 = pneg %p67
      %p74 = scmp.eq.s32.totalorder %s9, 13
      %p75 = por %p73, %p74
      %p76 = scmp.ne.s32.totalorder %s68, %s71
      %p77 = scmp.eq.s32.totalorder %s9, 0
      %p78 = por %p76, %p77
      %p79 = scmp.ne.s32.totalorder %s68, %s71
      %p80 = scmp.eq.s32.totalorder %s14, 13
      %p81 = por %p79, %p80
      %p82 = scmp.ne.s32.totalorder %s71, %s72
      %p83 = scmp.eq.s32.totalorder %s14, 0
      %p84 = por %p82, %p83
      %p85 = scmp.ne.s32.totalorder %s71, %s72
      %p86 = scmp.eq.s32.totalorder %s15, 13
      %p87 = por %p85, %p86
      %p89 = scmp.ne.s32.totalorder %s72, %s88
      %p90 = scmp.eq.s32.totalorder %s15, 0
      %p91 = por %p89, %p90
      %s92 = ssub.s32 %s17, %s31
      %p93 = scmp.eq.s32.totalorder %s92, 0
      %s95 = sadd.s32 %s94, 1
      %s96 = scalar_select %p93, %s94, %s95
      %p99 = pneg %p93
      %p100 = scmp.eq.s32.totalorder %s9, 13
      %p101 = por %p99, %p100
      %p102 = scmp.ne.s32.totalorder %s94, %s97
      %p103 = scmp.eq.s32.totalorder %s9, 0
      %p104 = por %p102, %p103
      %p105 = scmp.ne.s32.totalorder %s94, %s97
      %p106 = scmp.eq.s32.totalorder %s14, 13
      %p107 = por %p105, %p106
      %p108 = scmp.ne.s32.totalorder %s97, %s98
      %p109 = scmp.eq.s32.totalorder %s14, 0
      %p110 = por %p108, %p109
      %p111 = scmp.ne.s32.totalorder %s97, %s98
      %p112 = scmp.eq.s32.totalorder %s15, 13
      %p113 = por %p111, %p112
      %p115 = scmp.ne.s32.totalorder %s98, %s114
      %p116 = scmp.eq.s32.totalorder %s15, 0
      %p117 = por %p115, %p116
      %s118 = ssub.s32 %s16, %s35
      %s119 = ssub.s32 %s17, %s31
      %s120 = sor.u32 %s118, %s119
      %p121 = scmp.eq.s32.totalorder %s120, 0
      %s123 = sadd.s32 %s122, 1
      %s124 = scalar_select %p121, %s122, %s123
      %p127 = pneg %p121
      %p128 = scmp.eq.s32.totalorder %s9, 13
      %p129 = por %p127, %p128
      %p130 = scmp.ne.s32.totalorder %s122, %s125
      %p131 = scmp.eq.s32.totalorder %s9, 0
      %p132 = por %p130, %p131
      %p133 = scmp.ne.s32.totalorder %s122, %s125
      %p134 = scmp.eq.s32.totalorder %s14, 13
      %p135 = por %p133, %p134
      %p136 = scmp.ne.s32.totalorder %s125, %s126
      %p137 = scmp.eq.s32.totalorder %s14, 0
      %p138 = por %p136, %p137
      %p139 = scmp.ne.s32.totalorder %s125, %s126
      %p140 = scmp.eq.s32.totalorder %s15, 13
      %p141 = por %p139, %p140
      %p143 = scmp.ne.s32.totalorder %s126, %s142
      %p144 = scmp.eq.s32.totalorder %s15, 0
      %p145 = por %p143, %p144
      %p146 = scmp.le.s32.totalorder 1, %s9
      %p147 = scmp.lt.s32.totalorder %s9, 15
      %p148 = pnand %p146, %p147
      %p149 = pneg %p148
      // Predicated region
      $region9: #{mrnet_attention_forward.9} parent=5 // pred_check
        _
      $region10: #{mrnet_attention_forward.9} parent=5 // pred_check_branch
        %151 = sbr.rel (%p148) target = $region12
      $region11: #{mrnet_attention_forward.9} parent=5 // pred_region
        %s152 = ssub.s32 %s9, 1
        // Predicated region
        $region13: #{mrnet_attention_forward.9} parent=11 // pred_check
          %p153 = pneg %p110
        $region14: #{mrnet_attention_forward.9} parent=11 // pred_check_branch
          %155 = sbr.rel (%p153) target = $region16
        $region15: #{mrnet_attention_forward.9} parent=11 // pred_region
          %s156 = smul.u32 2, %s20
          %p157 = scmp.lt.s32.totalorder %s156, 1
          %s158 = scalar_select %p157, %s156, 1
          %s159 = scalar_lea.vmem %s2, %s158
          %s160 = smul.u32 2, %s20
        $region16: #{mrnet_attention_forward.9} parent=11 // pred_fallthru
          _
      $region12: #{mrnet_attention_forward.9} parent=5 // pred_fallthru
        _
      %p161 = scmp.lt.s32.totalorder %s9, 14
      // Predicated region
      $region17: #{mrnet_attention_forward.9} parent=5 // pred_check
        %p162 = pneg %p161
      $region18: #{mrnet_attention_forward.9} parent=5 // pred_check_branch
        %164 = sbr.rel (%p162) target = $region20
      $region19: #{mrnet_attention_forward.9} parent=5 // pred_region
        // Predicated region
        $region21: #{mrnet_attention_forward.9} parent=19 // pred_check
          %p165 = pneg %p50
        $region22: #{mrnet_attention_forward.9} parent=19 // pred_check_branch
          %167 = sbr.rel (%p165) target = $region24
        $region23: #{mrnet_attention_forward.9} parent=19 // pred_region
          %s168 = sand.u32 %s40, 1
          %s169 = sand.u32 %s40, 1
          %s170 = smul.addr %s169, 40
          %s171 = scalar_lea.vmem [#allocation3], %s170
          %s172 = smul.u32 5, %s16
          %s173 = smul.u32 2, %s18
          %s174 = smul.addr %s172, 28
          %s175 = sadd.s32 %s173, %s174
          %s176 = smul.addr %s175, 4
          %s177 = scalar_lea.vmem %s0, %s176
          // Predicated region
          $region25: #{mrnet_attention_forward.9} parent=23 // pred_check
            _
          $region26: #{mrnet_attention_forward.9} parent=23 // pred_check_branch
            %179 = sbr.rel (0) target = $region28
          $region27: #{mrnet_attention_forward.9} parent=23 // pred_region
            // Predicated region
            $region29: #{mrnet_attention_forward.9} parent=27 // pred_check
              _
            $region30: #{mrnet_attention_forward.9} parent=27 // pred_check_branch
              %181 = sbr.rel (0) target = $region32
            $region31: #{mrnet_attention_forward.9} parent=27 // pred_region
              // Predicated region
              $region44: #{mrnet_attention_forward.9} parent=31 // pred_check
                _
              $region45: #{mrnet_attention_forward.9} parent=31 // pred_check_branch
                %205 = sbr.rel (0) target = $region47
              $region46: #{mrnet_attention_forward.9} parent=31 // pred_region
                loop: start=0, step=1, limit=1
                $region48: #{mrnet_attention_forward.9} parent=46 // loop_pre_header
                  _
                $region49: #{mrnet_attention_forward.9} parent=46 // loop_header
                  %s207 = sphi 0, %s211
                  %p208 = scmp.ge.s32.totalorder %s207, 1
                  %s212 = sphi %s177, %s177
                  %s213 = sphi %s171, %s171
                $region50: #{mrnet_attention_forward.9} parent=46 // loop_header_branch
                  %210 = sbr.rel (%p208) target = $region54
                $region51: #{mrnet_attention_forward.9} parent=46 // loop_body
                  %v214 = vld [vmem:[%s212] sm:$0xff]
                  %215 = vst [vmem:[%s213] sm:$0xff] %v214
                  %v216 = vld [vmem:[%s212 + $0x70] sm:$0xff]
                  %217 = vst [vmem:[%s213 + $0x8] sm:$0xff] %v216
                  %v218 = vld [vmem:[%s212 + $0xe0] sm:$0xff]
                  %219 = vst [vmem:[%s213 + $0x10] sm:$0xff] %v218
                  %v220 = vld [vmem:[%s212 + $0x150] sm:$0xff]
                  %221 = vst [vmem:[%s213 + $0x18] sm:$0xff] %v220
                  %v222 = vld [vmem:[%s212 + $0x1c0] sm:$0xff]
                  %223 = vst [vmem:[%s213 + $0x20] sm:$0xff] %v222
                $region52: #{mrnet_attention_forward.9} parent=46 // loop_footer
                  %s211 = sadd.s32 1, %s207
                $region53: #{mrnet_attention_forward.9} parent=46 // loop_footer_branch
                  %206 = sbr.rel target = $region49
                $region54: #{mrnet_attention_forward.9} parent=46 // loop_exit
                  _
              $region47: #{mrnet_attention_forward.9} parent=31 // pred_fallthru
                _
              // Predicated region
              $region55: #{mrnet_attention_forward.9} parent=31 // pred_check
                _
              $region56: #{mrnet_attention_forward.9} parent=31 // pred_check_branch
                %225 = sbr.rel target = $region58
              $region57: #{mrnet_attention_forward.9} parent=31 // pred_region
                _
              $region58: #{mrnet_attention_forward.9} parent=31 // pred_fallthru
                _
            $region32: #{mrnet_attention_forward.9} parent=27 // pred_fallthru
              _
            // Predicated region
            $region33: #{mrnet_attention_forward.9} parent=27 // pred_check
              _
            $region34: #{mrnet_attention_forward.9} parent=27 // pred_check_branch
              %183 = sbr.rel target = $region36
            $region35: #{mrnet_attention_forward.9} parent=27 // pred_region
              %s185 = ssub.s32 256, 1
              loop: start=0, step=1, limit=1
              $region37: #{mrnet_attention_forward.9} parent=35 // loop_pre_header
                _
              $region38: #{mrnet_attention_forward.9} parent=35 // loop_header
                %s187 = sphi 0, %s191
                %p188 = scmp.ge.s32.totalorder %s187, 1
                %s192 = sphi %s177, %s177
                %s193 = sphi %s171, %s171
              $region39: #{mrnet_attention_forward.9} parent=35 // loop_header_branch
                %190 = sbr.rel (%p188) target = $region43
              $region40: #{mrnet_attention_forward.9} parent=35 // loop_body
                %v194 = vld [vmem:[%s192] sm:%s185]
                %195 = vst [vmem:[%s193] sm:%s185] %v194
                %v196 = vld [vmem:[%s192 + $0x70] sm:%s185]
                %197 = vst [vmem:[%s193 + $0x8] sm:%s185] %v196
                %v198 = vld [vmem:[%s192 + $0xe0] sm:%s185]
                %199 = vst [vmem:[%s193 + $0x10] sm:%s185] %v198
                %v200 = vld [vmem:[%s192 + $0x150] sm:%s185]
                %201 = vst [vmem:[%s193 + $0x18] sm:%s185] %v200
                %v202 = vld [vmem:[%s192 + $0x1c0] sm:%s185]
                %203 = vst [vmem:[%s193 + $0x20] sm:%s185] %v202
              $region41: #{mrnet_attention_forward.9} parent=35 // loop_footer
                %s191 = sadd.s32 1, %s187
              $region42: #{mrnet_attention_forward.9} parent=35 // loop_footer_branch
                %186 = sbr.rel target = $region38
              $region43: #{mrnet_attention_forward.9} parent=35 // loop_exit
                _
            $region36: #{mrnet_attention_forward.9} parent=27 // pred_fallthru
              _
          $region28: #{mrnet_attention_forward.9} parent=23 // pred_fallthru
            _
          %226 = vnop
        $region24: #{mrnet_attention_forward.9} parent=19 // pred_fallthru
          _
        // Predicated region
        $region59: #{mrnet_attention_forward.9} parent=19 // pred_check
          %p227 = pneg %p78
        $region60: #{mrnet_attention_forward.9} parent=19 // pred_check_branch
          %229 = sbr.rel (%p227) target = $region62
        $region61: #{mrnet_attention_forward.9} parent=19 // pred_region
          %s230 = smul.u32 32, %s18
          %s231 = smul.u32 2, %s17
          %p232 = scmp.lt.s32.totalorder %s230, 447
          %s233 = scalar_select %p232, %s230, 447
          %p234 = scmp.lt.s32.totalorder %s231, 1
          %s235 = scalar_select %p234, %s231, 1
          %s236 = smul.addr %s233, 2
          %s237 = sadd.s32 %s235, %s236
          %s238 = smul.addr %s237, 4
          %s239 = scalar_lea.vmem %s1, %s238
          %s240 = smul.u32 32, %s18
          %s241 = smul.u32 2, %s17
        $region62: #{mrnet_attention_forward.9} parent=19 // pred_fallthru
          _
      $region20: #{mrnet_attention_forward.9} parent=5 // pred_fallthru
        _
      %p242 = scmp.le.s32.totalorder 1, %s9
      %p243 = scmp.lt.s32.totalorder %s9, 15
      %p244 = pnand %p242, %p243
      %p245 = pneg %p244
      // Predicated region
      $region63: #{mrnet_attention_forward.9} parent=5 // pred_check
        _
      $region64: #{mrnet_attention_forward.9} parent=5 // pred_check_branch
        %247 = sbr.rel (%p244) target = $region66
      $region65: #{mrnet_attention_forward.9} parent=5 // pred_region
        %s248 = ssub.s32 %s9, 1
        %s249 = sand.u32 %s43, 1
        %s250 = sand.u32 %s43, 1
        %s251 = smul.addr %s250, 40
        %s252 = scalar_lea.vmem [#allocation3], %s251
        // Predicated region
        $region67: #{mrnet_attention_forward.9} parent=65 // pred_check
          %p253 = pneg %p56
        $region68: #{mrnet_attention_forward.9} parent=65 // pred_check_branch
          %255 = sbr.rel (%p253) target = $region70
        $region69: #{mrnet_attention_forward.9} parent=65 // pred_region
          _
        $region70: #{mrnet_attention_forward.9} parent=65 // pred_fallthru
          _
        %s256 = sand.u32 %s43, 1
        %s257 = sand.u32 %s43, 1
        %s258 = smul.addr %s257, 40
        %s259 = scalar_lea.vmem [#allocation3], %s258
        %p260 = pneg %p56
        %p261 = pneg %p53
        %s262 = smul.u32 32, %s21
        %s263 = smul.u32 2, %s20
        %p264 = scmp.lt.s32.totalorder %s262, 447
        %s265 = scalar_select %p264, %s262, 447
        %p266 = scmp.lt.s32.totalorder %s263, 1
        %s267 = scalar_select %p266, %s263, 1
        %s268 = smul.addr %s265, 2
        %s269 = sadd.s32 %s267, %s268
        %s270 = smul.addr %s269, 4
        %s271 = scalar_lea.vmem %s1, %s270
        %p272 = pneg %p84
        %p273 = pneg %p81
        %s274 = smul.u32 2, %s20
        %p275 = scmp.lt.s32.totalorder %s274, 1
        %s276 = scalar_select %p275, %s274, 1
        %s277 = scalar_lea.vmem %s2, %s276
        %p278 = pneg %p110
        %p279 = pneg %p107
        %p280 = pneg %p138
        %p281 = pneg %p135
        %s282 = smul.u32 5, %s19
        %s283 = smul.u32 2, %s20
        %p284 = scmp.lt.s32.totalorder %s282, 4
        %s285 = scalar_select %p284, %s282, 4
        %p286 = scmp.lt.s32.totalorder %s283, 1
        %s287 = scalar_select %p286, %s283, 1
        %s288 = smul.addr %s285, 2
        %s289 = sadd.s32 %s287, %s288
        %s290 = smul.addr %s289, 8
        %s291 = scalar_lea.vmem %s3, %s290
        %s292 = smul.u32 5, %s19
        %s293 = smul.u32 2, %s21
        %s294 = smul.u32 32, %s21
        %s295 = smul.u32 2, %s20
        %p296 = scmp.lt.s32.totalorder %s294, 447
        %s297 = scalar_select %p296, %s294, 447
        %p298 = scmp.lt.s32.totalorder %s295, 1
        %s299 = scalar_select %p298, %s295, 1
        %s300 = smul.addr %s297, 2
        %s301 = sadd.s32 %s299, %s300
        %s302 = smul.addr %s301, 4
        %s303 = scalar_lea.vmem %s1, %s302
        %s304 = smul.u32 32, %s21
        %s305 = smul.u32 2, %s20
        %s306 = smul.u32 2, %s20
        %p307 = scmp.lt.s32.totalorder %s306, 1
        %s308 = scalar_select %p307, %s306, 1
        %s309 = scalar_lea.vmem %s2, %s308
        %s310 = smul.u32 2, %s20
        %s311 = smul.u32 5, %s19
        %s312 = smul.u32 2, %s20
        %p313 = scmp.lt.s32.totalorder %s311, 4
        %s314 = scalar_select %p313, %s311, 4
        %p315 = scmp.lt.s32.totalorder %s312, 1
        %s316 = scalar_select %p315, %s312, 1
        %s317 = smul.addr %s314, 2
        %s318 = sadd.s32 %s316, %s317
        %s319 = smul.addr %s318, 8
        %s320 = scalar_lea.vmem %s3, %s319
        %s321 = smul.u32 5, %s19
        %s322 = smul.u32 2, %s20
        %p323 = scmp.eq.s32.totalorder %s21, 0
        // Predicated region
        $region71: #{mrnet_attention_forward.9} parent=65 // pred_check
          %p324 = pneg %p323
        $region72: #{mrnet_attention_forward.9} parent=65 // pred_check_branch
          %326 = sbr.rel (%p324) target = $region74
        $region73: #{mrnet_attention_forward.9} parent=65 // pred_region
          %327 = vst [vmem:[#allocation2] sm:$0xff] 0.0
          %328 = vst [vmem:[#allocation2 + $0x8] sm:$0xff] 0.0
          %329 = vst [vmem:[#allocation2 + $0x10] sm:$0xff] 0.0
          %330 = vst [vmem:[#allocation2 + $0x18] sm:$0xff] 0.0
          %331 = vst [vmem:[#allocation2 + $0x20] sm:$0xff] 0.0
          %332 = vst [vmem:[#allocation2 + $0x28] sm:$0xff] 0.0
          %333 = vst [vmem:[#allocation2 + $0x30] sm:$0xff] 0.0
          %334 = vst [vmem:[#allocation2 + $0x38] sm:$0xff] 0.0
          %335 = vst [vmem:[#allocation2 + $0x40] sm:$0xff] 0.0
          %336 = vst [vmem:[#allocation2 + $0x48] sm:$0xff] 0.0
        $region74: #{mrnet_attention_forward.9} parent=65 // pred_fallthru
          _
        %v337 = vld [vmem:[#allocation2] sm:$0xff]
        %v338 = vld [vmem:[#allocation2 + $0x8] sm:$0xff]
        %v339 = vld [vmem:[#allocation2 + $0x10] sm:$0xff]
        %v340 = vld [vmem:[#allocation2 + $0x18] sm:$0xff]
        %v341 = vld [vmem:[#allocation2 + $0x20] sm:$0xff]
        %v342 = vld [vmem:[#allocation2 + $0x28] sm:$0xff]
        %v343 = vld [vmem:[#allocation2 + $0x30] sm:$0xff]
        %v344 = vld [vmem:[#allocation2 + $0x38] sm:$0xff]
        %v345 = vld [vmem:[#allocation2 + $0x40] sm:$0xff]
        %v346 = vld [vmem:[#allocation2 + $0x48] sm:$0xff]
        %v347 = vld [vmem:[%s252] sm:$0xff]
        %v348 = vld [vmem:[%s252 + $0x8] sm:$0xff]
        %v349 = vld [vmem:[%s252 + $0x10] sm:$0xff]
        %v350 = vld [vmem:[%s252 + $0x18] sm:$0xff]
        %v351 = vld [vmem:[%s252 + $0x20] sm:$0xff]
        %v352 = vld [vmem:[%s303] sm:$0xff]
        %v353 = vld [vmem:[%s303 + $0x8] sm:$0xff]
        %v354 = vld [vmem:[%s303 + $0x10] sm:$0xff]
        %v355 = vld [vmem:[%s303 + $0x18] sm:$0xff]
        %v356 = vld [vmem:[%s303 + $0x20] sm:$0xff]
        %v357 = vld [vmem:[%s303 + $0x28] sm:$0xff]
        %v358 = vld [vmem:[%s303 + $0x30] sm:$0xff]
        %v359 = vld [vmem:[%s303 + $0x38] sm:$0xff]
        %v360 = vld [vmem:[%s303 + $0x40] sm:$0xff]
        %v361 = vld [vmem:[%s303 + $0x48] sm:$0xff]
        %v362 = vld [vmem:[%s303 + $0x50] sm:$0xff]
        %v363 = vld [vmem:[%s303 + $0x58] sm:$0xff]
        %v364 = vld [vmem:[%s303 + $0x60] sm:$0xff]
        %v365 = vld [vmem:[%s303 + $0x68] sm:$0xff]
        %v366 = vld [vmem:[%s303 + $0x70] sm:$0xff]
        %v367 = vld [vmem:[%s303 + $0x78] sm:$0xff]
        %v368 = vld [vmem:[%s303 + $0x80] sm:$0xff]
        %v369 = vld [vmem:[%s303 + $0x88] sm:$0xff]
        %v370 = vld [vmem:[%s303 + $0x90] sm:$0xff]
        %v371 = vld [vmem:[%s303 + $0x98] sm:$0xff]
        %v372 = vld [vmem:[%s303 + $0xa0] sm:$0xff]
        %v373 = vld [vmem:[%s303 + $0xa8] sm:$0xff]
        %v374 = vld [vmem:[%s303 + $0xb0] sm:$0xff]
        %v375 = vld [vmem:[%s303 + $0xb8] sm:$0xff]
        %v376 = vld [vmem:[%s303 + $0xc0] sm:$0xff]
        %v377 = vld [vmem:[%s303 + $0xc8] sm:$0xff]
        %v378 = vld [vmem:[%s303 + $0xd0] sm:$0xff]
        %v379 = vld [vmem:[%s303 + $0xd8] sm:$0xff]
        %v380 = vld [vmem:[%s303 + $0xe0] sm:$0xff]
        %v381 = vld [vmem:[%s303 + $0xe8] sm:$0xff]
        %v382 = vld [vmem:[%s303 + $0xf0] sm:$0xff]
        %v383 = vld [vmem:[%s303 + $0xf8] sm:$0xff]
        %v389 = vunpack.c.l.b16 %v347
        %v390 = vunpack.c.h.b16 %v347
        %v391 = vunpack.c.l.b16 %v348
        %v392 = vunpack.c.h.b16 %v348
        %v393 = vunpack.c.l.b16 %v349
        %v394 = vunpack.c.h.b16 %v349
        %v395 = vunpack.c.l.b16 %v350
        %v396 = vunpack.c.h.b16 %v350
        %v397 = vunpack.c.l.b16 %v351
        %v398 = vunpack.c.h.b16 %v351
        %v399 = vpack.c.b16 %v391, %v389
        %v400 = vpack.c.b16 %v392, %v390
        %v401 = vpack.c.b16 %v395, %v393
        %v402 = vpack.c.b16 %v396, %v394
        %v403 = vpack.c.b16 %v397, %v397
        %v404 = vpack.c.b16 %v398, %v398
        %v443 = vunpack.c.l.b16 %v352
        %v444 = vunpack.c.h.b16 %v352
        %v445 = vunpack.c.l.b16 %v353
        %v446 = vunpack.c.h.b16 %v353
        %v447 = vunpack.c.l.b16 %v354
        %v448 = vunpack.c.h.b16 %v354
        %v449 = vunpack.c.l.b16 %v355
        %v450 = vunpack.c.h.b16 %v355
        %v451 = vunpack.c.l.b16 %v356
        %v452 = vunpack.c.h.b16 %v356
        %v453 = vunpack.c.l.b16 %v357
        %v454 = vunpack.c.h.b16 %v357
        %v455 = vunpack.c.l.b16 %v358
        %v456 = vunpack.c.h.b16 %v358
        %v457 = vunpack.c.l.b16 %v359
        %v458 = vunpack.c.h.b16 %v359
        %v459 = vunpack.c.l.b16 %v360
        %v460 = vunpack.c.h.b16 %v360
        %v461 = vunpack.c.l.b16 %v361
        %v462 = vunpack.c.h.b16 %v361
        %v463 = vunpack.c.l.b16 %v362
        %v464 = vunpack.c.h.b16 %v362
        %v465 = vunpack.c.l.b16 %v363
        %v466 = vunpack.c.h.b16 %v363
        %v467 = vunpack.c.l.b16 %v364
        %v468 = vunpack.c.h.b16 %v364
        %v469 = vunpack.c.l.b16 %v365
        %v470 = vunpack.c.h.b16 %v365
        %v471 = vunpack.c.l.b16 %v366
        %v472 = vunpack.c.h.b16 %v366
        %v473 = vunpack.c.l.b16 %v367
        %v474 = vunpack.c.h.b16 %v367
        %v475 = vunpack.c.l.b16 %v368
        %v476 = vunpack.c.h.b16 %v368
        %v477 = vunpack.c.l.b16 %v369
        %v478 = vunpack.c.h.b16 %v369
        %v479 = vunpack.c.l.b16 %v370
        %v480 = vunpack.c.h.b16 %v370
        %v481 = vunpack.c.l.b16 %v371
        %v482 = vunpack.c.h.b16 %v371
        %v483 = vunpack.c.l.b16 %v372
        %v484 = vunpack.c.h.b16 %v372
        %v485 = vunpack.c.l.b16 %v373
        %v486 = vunpack.c.h.b16 %v373
        %v487 = vunpack.c.l.b16 %v374
        %v488 = vunpack.c.h.b16 %v374
        %v489 = vunpack.c.l.b16 %v375
        %v490 = vunpack.c.h.b16 %v375
        %v491 = vunpack.c.l.b16 %v376
        %v492 = vunpack.c.h.b16 %v376
        %v493 = vunpack.c.l.b16 %v377
        %v494 = vunpack.c.h.b16 %v377
        %v495 = vunpack.c.l.b16 %v378
        %v496 = vunpack.c.h.b16 %v378
        %v497 = vunpack.c.l.b16 %v379
        %v498 = vunpack.c.h.b16 %v379
        %v499 = vunpack.c.l.b16 %v380
        %v500 = vunpack.c.h.b16 %v380
        %v501 = vunpack.c.l.b16 %v381
        %v502 = vunpack.c.h.b16 %v381
        %v503 = vunpack.c.l.b16 %v382
        %v504 = vunpack.c.h.b16 %v382
        %v505 = vunpack.c.l.b16 %v383
        %v506 = vunpack.c.h.b16 %v383
        %v507 = vpack.c.b16 %v445, %v443
        %v508 = vpack.c.b16 %v446, %v444
        %v509 = vpack.c.b16 %v449, %v447
        %v510 = vpack.c.b16 %v450, %v448
        %v511 = vpack.c.b16 %v453, %v451
        %v512 = vpack.c.b16 %v454, %v452
        %v513 = vpack.c.b16 %v457, %v455
        %v514 = vpack.c.b16 %v458, %v456
        %v515 = vpack.c.b16 %v461, %v459
        %v516 = vpack.c.b16 %v462, %v460
        %v517 = vpack.c.b16 %v465, %v463
        %v518 = vpack.c.b16 %v466, %v464
        %v519 = vpack.c.b16 %v469, %v467
        %v520 = vpack.c.b16 %v470, %v468
        %v521 = vpack.c.b16 %v473, %v471
        %v522 = vpack.c.b16 %v474, %v472
        %v523 = vpack.c.b16 %v477, %v475
        %v524 = vpack.c.b16 %v478, %v476
        %v525 = vpack.c.b16 %v481, %v479
        %v526 = vpack.c.b16 %v482, %v480
        %v527 = vpack.c.b16 %v485, %v483
        %v528 = vpack.c.b16 %v486, %v484
        %v529 = vpack.c.b16 %v489, %v487
        %v530 = vpack.c.b16 %v490, %v488
        %v531 = vpack.c.b16 %v493, %v491
        %v532 = vpack.c.b16 %v494, %v492
        %v533 = vpack.c.b16 %v497, %v495
        %v534 = vpack.c.b16 %v498, %v496
        %v535 = vpack.c.b16 %v501, %v499
        %v536 = vpack.c.b16 %v502, %v500
        %v537 = vpack.c.b16 %v505, %v503
        %v538 = vpack.c.b16 %v506, %v504
        %571 = vmatpush.bf16.msra.mxu0 %v521
        %572 = vmatpush.bf16.msra.mxu0 %v519
        %573 = vmatpush.bf16.msra.mxu0 %v517
        %574 = vmatpush.bf16.msra.mxu0 %v515
        %575 = vmatpush.bf16.msra.mxu0 %v513
        %576 = vmatpush.bf16.msra.mxu0 %v511
        %577 = vmatpush.bf16.msra.mxu0 %v509
        %578 = vmatpush.bf16.msra.mxu0 %v507
        %579 = vmatmul.bf16.gmra.mxu0 %v399
        %v580 = vpop.f32.mrf.mxu0
        %v581 = vadd.f32 0.0, %v580
        %v582 = vpop.f32.mrf.mxu0
        %v583 = vadd.f32 0.0, %v582
        %584 = vmatmul.bf16.gmra.mxu0 %v401
        %v585 = vpop.f32.mrf.mxu0
        %v586 = vadd.f32 0.0, %v585
        %v587 = vpop.f32.mrf.mxu0
        %v588 = vadd.f32 0.0, %v587
        %589 = vmatmul.bf16.gmra.mxu0 %v403
        %v590 = vpop.f32.mrf.mxu0
        %v591 = vadd.f32 0.0, %v590
        %v592 = vpop.f32.mrf.mxu0
        %593 = vdwg.mxu0
        %594 = vmatpush.bf16.msra.mxu0 %v537
        %595 = vmatpush.bf16.msra.mxu0 %v535
        %596 = vmatpush.bf16.msra.mxu0 %v533
        %597 = vmatpush.bf16.msra.mxu0 %v531
        %598 = vmatpush.bf16.msra.mxu0 %v529
        %599 = vmatpush.bf16.msra.mxu0 %v527
        %600 = vmatpush.bf16.msra.mxu0 %v525
        %601 = vmatpush.bf16.msra.mxu0 %v523
        %602 = vmatmul.bf16.gmra.mxu0 %v400
        %v603 = vpop.f32.mrf.mxu0
        %v604 = vadd.f32 %v581, %v603
        %v605 = vpop.f32.mrf.mxu0
        %v606 = vadd.f32 %v583, %v605
        %607 = vmatmul.bf16.gmra.mxu0 %v402
        %v608 = vpop.f32.mrf.mxu0
        %v609 = vadd.f32 %v586, %v608
        %v610 = vpop.f32.mrf.mxu0
        %v611 = vadd.f32 %v588, %v610
        %612 = vmatmul.bf16.gmra.mxu0 %v404
        %v613 = vpop.f32.mrf.mxu0
        %v614 = vadd.f32 %v591, %v613
        %v615 = vpop.f32.mrf.mxu0
        %616 = vdwg.mxu0
        %617 = vmatpush.bf16.msra.mxu0 %v522
        %618 = vmatpush.bf16.msra.mxu0 %v520
        %619 = vmatpush.bf16.msra.mxu0 %v518
        %620 = vmatpush.bf16.msra.mxu0 %v516
        %621 = vmatpush.bf16.msra.mxu0 %v514
        %622 = vmatpush.bf16.msra.mxu0 %v512
        %623 = vmatpush.bf16.msra.mxu0 %v510
        %624 = vmatpush.bf16.msra.mxu0 %v508
        %625 = vmatmul.bf16.gmra.mxu0 %v399
        %v626 = vpop.f32.mrf.mxu0
        %v627 = vadd.f32 0.0, %v626
        %v628 = vpop.f32.mrf.mxu0
        %v629 = vadd.f32 0.0, %v628
        %630 = vmatmul.bf16.gmra.mxu0 %v401
        %v631 = vpop.f32.mrf.mxu0
        %v632 = vadd.f32 0.0, %v631
        %v633 = vpop.f32.mrf.mxu0
        %v634 = vadd.f32 0.0, %v633
        %635 = vmatmul.bf16.gmra.mxu0 %v403
        %v636 = vpop.f32.mrf.mxu0
        %v637 = vadd.f32 0.0, %v636
        %v638 = vpop.f32.mrf.mxu0
        %639 = vdwg.mxu0
        %640 = vmatpush.bf16.msra.mxu0 %v538
        %641 = vmatpush.bf16.msra.mxu0 %v536
        %642 = vmatpush.bf16.msra.mxu0 %v534
        %643 = vmatpush.bf16.msra.mxu0 %v532
        %644 = vmatpush.bf16.msra.mxu0 %v530
        %645 = vmatpush.bf16.msra.mxu0 %v528
        %646 = vmatpush.bf16.msra.mxu0 %v526
        %647 = vmatpush.bf16.msra.mxu0 %v524
        %648 = vmatmul.bf16.gmra.mxu0 %v400
        %v649 = vpop.f32.mrf.mxu0
        %v650 = vadd.f32 %v627, %v649
        %v651 = vpop.f32.mrf.mxu0
        %v652 = vadd.f32 %v629, %v651
        %653 = vmatmul.bf16.gmra.mxu0 %v402
        %v654 = vpop.f32.mrf.mxu0
        %v655 = vadd.f32 %v632, %v654
        %v656 = vpop.f32.mrf.mxu0
        %v657 = vadd.f32 %v634, %v656
        %658 = vmatmul.bf16.gmra.mxu0 %v404
        %v659 = vpop.f32.mrf.mxu0
        %v660 = vadd.f32 %v637, %v659
        %v661 = vpop.f32.mrf.mxu0
        %662 = vdwg.mxu0
        %v663 = vadd.f32 %v337, %v604
        %v664 = vadd.f32 %v338, %v650
        %v665 = vadd.f32 %v339, %v606
        %v666 = vadd.f32 %v340, %v652
        %v667 = vadd.f32 %v341, %v609
        %v668 = vadd.f32 %v342, %v655
        %v669 = vadd.f32 %v343, %v611
        %v670 = vadd.f32 %v344, %v657
        %v671 = vadd.f32 %v345, %v614
        %v672 = vadd.f32 %v346, %v660
        %673 = vst [vmem:[#allocation2] sm:$0xff] %v663
        %674 = vst [vmem:[#allocation2 + $0x8] sm:$0xff] %v664
        %675 = vst [vmem:[#allocation2 + $0x10] sm:$0xff] %v665
        %676 = vst [vmem:[#allocation2 + $0x18] sm:$0xff] %v666
        %677 = vst [vmem:[#allocation2 + $0x20] sm:$0xff] %v667
        %678 = vst [vmem:[#allocation2 + $0x28] sm:$0xff] %v668
        %679 = vst [vmem:[#allocation2 + $0x30] sm:$0xff] %v669
        %680 = vst [vmem:[#allocation2 + $0x38] sm:$0xff] %v670
        %681 = vst [vmem:[#allocation2 + $0x40] sm:$0xff] %v671
        %682 = vst [vmem:[#allocation2 + $0x48] sm:$0xff] %v672
        %p683 = scmp.eq.s32.totalorder %s21, 13
        // Predicated region
        $region75: #{mrnet_attention_forward.9} parent=65 // pred_check
          %p684 = pneg %p683
        $region76: #{mrnet_attention_forward.9} parent=65 // pred_check_branch
          %686 = sbr.rel (%p684) target = $region78
        $region77: #{mrnet_attention_forward.9} parent=65 // pred_region
          %v687 = vld [vmem:[#allocation2] sm:$0xff]
          %v688 = vld [vmem:[#allocation2 + $0x8] sm:$0xff]
          %v689 = vld [vmem:[#allocation2 + $0x10] sm:$0xff]
          %v690 = vld [vmem:[#allocation2 + $0x18] sm:$0xff]
          %v691 = vld [vmem:[#allocation2 + $0x20] sm:$0xff]
          %v692 = vld [vmem:[#allocation2 + $0x28] sm:$0xff]
          %v693 = vld [vmem:[#allocation2 + $0x30] sm:$0xff]
          %v694 = vld [vmem:[#allocation2 + $0x38] sm:$0xff]
          %v695 = vld [vmem:[#allocation2 + $0x40] sm:$0xff]
          %v696 = vld [vmem:[#allocation2 + $0x48] sm:$0xff]
          %v697 = vld [vmem:[%s309] sm:$0x3]
          %v699 = vperm.slane %v697, 0
          %v700 = vperm.slane %v697, 1
          %v703 = vadd.f32 %v687, %v699
          %v704 = vadd.f32 %v688, %v700
          %v705 = vadd.f32 %v689, %v699
          %v706 = vadd.f32 %v690, %v700
          %v707 = vadd.f32 %v691, %v699
          %v708 = vadd.f32 %v692, %v700
          %v709 = vadd.f32 %v693, %v699
          %v710 = vadd.f32 %v694, %v700
          %v711 = vadd.f32 %v695, %v699
          %v712 = vadd.f32 %v696, %v700
          %v713 = vmax.f32 %v703, 0.0
          %v714 = vmax.f32 %v704, 0.0
          %v715 = vmax.f32 %v705, 0.0
          %v716 = vmax.f32 %v706, 0.0
          %v717 = vmax.f32 %v707, 0.0
          %v718 = vmax.f32 %v708, 0.0
          %v719 = vmax.f32 %v709, 0.0
          %v720 = vmax.f32 %v710, 0.0
          %v721 = vmax.f32 %v711, 0.0
          %v722 = vmax.f32 %v712, 0.0
          %723 = vst [vmem:[%s320] sm:$0xff] %v713
          %724 = vst [vmem:[%s320 + $0x8] sm:$0xff] %v714
          %725 = vst [vmem:[%s320 + $0x10] sm:$0xff] %v715
          %726 = vst [vmem:[%s320 + $0x18] sm:$0xff] %v716
          %727 = vst [vmem:[%s320 + $0x20] sm:$0xff] %v717
          %728 = vst [vmem:[%s320 + $0x28] sm:$0xff] %v718
          %729 = vst [vmem:[%s320 + $0x30] sm:$0xff] %v719
          %730 = vst [vmem:[%s320 + $0x38] sm:$0xff] %v720
          %731 = vst [vmem:[%s320 + $0x40] sm:$0xff] %v721
          %732 = vst [vmem:[%s320 + $0x48] sm:$0xff] %v722
        $region78: #{mrnet_attention_forward.9} parent=65 // pred_fallthru
          _
        %s733 = smul.u32 5, %s19
        %s734 = smul.u32 2, %s20
        %p735 = scmp.lt.s32.totalorder %s733, 4
        %s736 = scalar_select %p735, %s733, 4
        %p737 = scmp.lt.s32.totalorder %s734, 1
        %s738 = scalar_select %p737, %s734, 1
        %s739 = smul.addr %s736, 2
        %s740 = sadd.s32 %s738, %s739
        %s741 = smul.addr %s740, 8
        %s742 = scalar_lea.vmem %s3, %s741
        // Predicated region
        $region79: #{mrnet_attention_forward.9} parent=65 // pred_check
          %p743 = pneg %p135
        $region80: #{mrnet_attention_forward.9} parent=65 // pred_check_branch
          %745 = sbr.rel (%p743) target = $region82
        $region81: #{mrnet_attention_forward.9} parent=65 // pred_region
          %s746 = smul.u32 5, %s19
          %s747 = smul.u32 2, %s20
        $region82: #{mrnet_attention_forward.9} parent=65 // pred_fallthru
          _
        // Predicated region
        $region83: #{mrnet_attention_forward.9} parent=65 // pred_check
          %p748 = pneg %p135
        $region84: #{mrnet_attention_forward.9} parent=65 // pred_check_branch
          %750 = sbr.rel (%p748) target = $region86
        $region85: #{mrnet_attention_forward.9} parent=65 // pred_region
          %s751 = smul.u32 5, %s19
          %s752 = smul.u32 2, %s20
          %p753 = scmp.lt.s32.totalorder %s751, 4
          %s754 = scalar_select %p753, %s751, 4
          %p755 = scmp.lt.s32.totalorder %s752, 1
          %s756 = scalar_select %p755, %s752, 1
          %s757 = smul.addr %s754, 2
          %s758 = sadd.s32 %s756, %s757
          %s759 = smul.addr %s758, 8
          %s760 = scalar_lea.vmem %s3, %s759
        $region86: #{mrnet_attention_forward.9} parent=65 // pred_fallthru
          _
      $region66: #{mrnet_attention_forward.9} parent=5 // pred_fallthru
        _
      %p761 = scmp.le.s32.totalorder 2, %s9
      // Predicated region
      $region87: #{mrnet_attention_forward.9} parent=5 // pred_check
        %p762 = pneg %p761
      $region88: #{mrnet_attention_forward.9} parent=5 // pred_check_branch
        %764 = sbr.rel (%p762) target = $region90
      $region89: #{mrnet_attention_forward.9} parent=5 // pred_region
        %s765 = ssub.s32 %s9, 2
      $region90: #{mrnet_attention_forward.9} parent=5 // pred_fallthru
        _
    $region6: #{mrnet_attention_forward.9} parent=1 // loop_footer
      %s13 = sadd.s32 1, %s9
    $region7: #{mrnet_attention_forward.9} parent=1 // loop_footer_branch
      %8 = sbr.rel target = $region3
    $region8: #{mrnet_attention_forward.9} parent=1 // loop_exit
      _

// kernel: mrnet_attention_forward.10
$region0: #{mrnet_attention_forward.10}
  #allocation0 [shape = 'u32[]', space=smem, size = 0x4, offset = 0x4, fixed_abs, tag = 'smem constant byte address 0x4 - core index']
  #allocation1 [shape = 'u32[72,128]{1,0:T(1,128)}', space=vmem, size = 0x9000, scoped, tag = 'internal scratch']
  #allocation2 [shape = 'f32[40,256]{1,0:T(8,128)}', space=vmem, size = 0xa000, scoped, tag = 'scratch operand']
  %s0 = inlined_call_operand.vmem [shape: bf16[40,2304], index: 0, kind: input, shape index: {}]
  %s1 = inlined_call_operand.vmem [shape: bf16[2304,256], index: 1, kind: input, shape index: {}]
  %s2 = inlined_call_operand.vmem [shape: f32[1,256], index: 2, kind: input, shape index: {}]
  %s3 = inlined_call_operand.vmem [shape: f32[40,256], index: 3, kind: output, shape index: {}]
  %s4 = sld [smem:[#allocation0]]
  $region91: #{mrnet_attention_forward.10} parent=0
    _
  %s6 = ssub.s32 1, %s4
  %s7 = scalar_select 0, %s6, %s4
  $region1: #{mrnet_attention_forward.10} parent=0
    #allocation3 [shape = 'u8[40960]{0}', space=vmem, size = 0xa000, scoped, tag = 'input window, operand 0']
    loop: start=0, step=1, limit=11
    $region2: #{mrnet_attention_forward.10} parent=1 // loop_pre_header
      _
    $region3: #{mrnet_attention_forward.10} parent=1 // loop_header
      %s9 = sphi 0, %s13
      %p10 = scmp.ge.s32.totalorder %s9, 11
      %s16 = sphi 0, %s35
      %s17 = sphi 0, %s31
      %s18 = sphi 0, %s27
      %s19 = sphi 0, %s16
      %s20 = sphi 0, %s17
      %s21 = sphi 0, %s18
      %s22 = sphi 0, %s19
      %s23 = sphi 0, %s20
      %s24 = sphi 0, %s21
      %s40 = sphi 0, %s42
      %s43 = sphi 0, %s40
      %s44 = sphi 0, %s43
      %s60 = sphi 0, %s44
      %s68 = sphi 0, %s70
      %s71 = sphi 0, %s68
      %s72 = sphi 0, %s71
      %s88 = sphi 0, %s72
      %s94 = sphi 0, %s96
      %s97 = sphi 0, %s94
      %s98 = sphi 0, %s97
      %s114 = sphi 0, %s98
      %s122 = sphi 0, %s124
      %s125 = sphi 0, %s122
      %s126 = sphi 0, %s125
      %s142 = sphi 0, %s126
    $region4: #{mrnet_attention_forward.10} parent=1 // loop_header_branch
      %12 = sbr.rel (%p10) target = $region8
    $region5: #{mrnet_attention_forward.10} parent=1 // loop_body
      %s14 = ssub.s32 %s9, 1
      %s15 = ssub.s32 %s9, 2
      %s25 = sadd.s32 1, %s18
      %p26 = scmp.ge.s32.totalorder %s25, 9
      %s27 = scalar_select %p26, 0, %s25
      %s28 = sadd.s32 1, %s17
      %s29 = scalar_select %p26, %s28, %s17
      %p30 = scmp.ge.s32.totalorder %s29, 1
      %s31 = scalar_select %p30, 0, %s29
      %s32 = sadd.s32 1, %s16
      %s33 = scalar_select %p30, %s32, %s16
      %p34 = scmp.ge.s32.totalorder %s33, 1
      %s35 = scalar_select %p34, 0, %s33
      %s36 = ssub.s32 %s16, %s35
      %s37 = ssub.s32 %s18, %s27
      %s38 = sor.u32 %s36, %s37
      %p39 = scmp.eq.s32.totalorder %s38, 0
      %s41 = sadd.s32 %s40, 1
      %s42 = scalar_select %p39, %s40, %s41
      %p45 = pneg %p39
      %p46 = scmp.eq.s32.totalorder %s9, 8
      %p47 = por %p45, %p46
      %p48 = scmp.ne.s32.totalorder %s40, %s43
      %p49 = scmp.eq.s32.totalorder %s9, 0
      %p50 = por %p48, %p49
      %p51 = scmp.ne.s32.totalorder %s40, %s43
      %p52 = scmp.eq.s32.totalorder %s14, 8
      %p53 = por %p51, %p52
      %p54 = scmp.ne.s32.totalorder %s43, %s44
      %p55 = scmp.eq.s32.totalorder %s14, 0
      %p56 = por %p54, %p55
      %p57 = scmp.ne.s32.totalorder %s43, %s44
      %p58 = scmp.eq.s32.totalorder %s15, 8
      %p59 = por %p57, %p58
      %p61 = scmp.ne.s32.totalorder %s44, %s60
      %p62 = scmp.eq.s32.totalorder %s15, 0
      %p63 = por %p61, %p62
      %s64 = ssub.s32 %s18, %s27
      %s65 = ssub.s32 %s17, %s31
      %s66 = sor.u32 %s64, %s65
      %p67 = scmp.eq.s32.totalorder %s66, 0
      %s69 = sadd.s32 %s68, 1
      %s70 = scalar_select %p67, %s68, %s69
      %p73 = pneg %p67
      %p74 = scmp.eq.s32.totalorder %s9, 8
      %p75 = por %p73, %p74
      %p76 = scmp.ne.s32.totalorder %s68, %s71
      %p77 = scmp.eq.s32.totalorder %s9, 0
      %p78 = por %p76, %p77
      %p79 = scmp.ne.s32.totalorder %s68, %s71
      %p80 = scmp.eq.s32.totalorder %s14, 8
      %p81 = por %p79, %p80
      %p82 = scmp.ne.s32.totalorder %s71, %s72
      %p83 = scmp.eq.s32.totalorder %s14, 0
      %p84 = por %p82, %p83
      %p85 = scmp.ne.s32.totalorder %s71, %s72
      %p86 = scmp.eq.s32.totalorder %s15, 8
      %p87 = por %p85, %p86
      %p89 = scmp.ne.s32.totalorder %s72, %s88
      %p90 = scmp.eq.s32.totalorder %s15, 0
      %p91 = por %p89, %p90
      %s92 = ssub.s32 %s17, %s31
      %p93 = scmp.eq.s32.totalorder %s92, 0
      %s95 = sadd.s32 %s94, 1
      %s96 = scalar_select %p93, %s94, %s95
      %p99 = pneg %p93
      %p100 = scmp.eq.s32.totalorder %s9, 8
      %p101 = por %p99, %p100
      %p102 = scmp.ne.s32.totalorder %s94, %s97
      %p103 = scmp.eq.s32.totalorder %s9, 0
      %p104 = por %p102, %p103
      %p105 = scmp.ne.s32.totalorder %s94, %s97
      %p106 = scmp.eq.s32.totalorder %s14, 8
      %p107 = por %p105, %p106
      %p108 = scmp.ne.s32.totalorder %s97, %s98
      %p109 = scmp.eq.s32.totalorder %s14, 0
      %p110 = por %p108, %p109
      %p111 = scmp.ne.s32.totalorder %s97, %s98
      %p112 = scmp.eq.s32.totalorder %s15, 8
      %p113 = por %p111, %p112
      %p115 = scmp.ne.s32.totalorder %s98, %s114
      %p116 = scmp.eq.s32.totalorder %s15, 0
      %p117 = por %p115, %p116
      %s118 = ssub.s32 %s16, %s35
      %s119 = ssub.s32 %s17, %s31
      %s120 = sor.u32 %s118, %s119
      %p121 = scmp.eq.s32.totalorder %s120, 0
      %s123 = sadd.s32 %s122, 1
      %s124 = scalar_select %p121, %s122, %s123
      %p127 = pneg %p121
      %p128 = scmp.eq.s32.totalorder %s9, 8
      %p129 = por %p127, %p128
      %p130 = scmp.ne.s32.totalorder %s122, %s125
      %p131 = scmp.eq.s32.totalorder %s9, 0
      %p132 = por %p130, %p131
      %p133 = scmp.ne.s32.totalorder %s122, %s125
      %p134 = scmp.eq.s32.totalorder %s14, 8
      %p135 = por %p133, %p134
      %p136 = scmp.ne.s32.totalorder %s125, %s126
      %p137 = scmp.eq.s32.totalorder %s14, 0
      %p138 = por %p136, %p137
      %p139 = scmp.ne.s32.totalorder %s125, %s126
      %p140 = scmp.eq.s32.totalorder %s15, 8
      %p141 = por %p139, %p140
      %p143 = scmp.ne.s32.totalorder %s126, %s142
      %p144 = scmp.eq.s32.totalorder %s15, 0
      %p145 = por %p143, %p144
      %p146 = scmp.le.s32.totalorder 1, %s9
      %p147 = scmp.lt.s32.totalorder %s9, 10
      %p148 = pnand %p146, %p147
      %p149 = pneg %p148
      // Predicated region
      $region9: #{mrnet_attention_forward.10} parent=5 // pred_check
        _
      $region10: #{mrnet_attention_forward.10} parent=5 // pred_check_branch
        %151 = sbr.rel (%p148) target = $region12
      $region11: #{mrnet_attention_forward.10} parent=5 // pred_region
        %s152 = ssub.s32 %s9, 1
        // Predicated region
        $region13: #{mrnet_attention_forward.10} parent=11 // pred_check
          %p153 = pneg %p110
        $region14: #{mrnet_attention_forward.10} parent=11 // pred_check_branch
          %155 = sbr.rel (%p153) target = $region16
        $region15: #{mrnet_attention_forward.10} parent=11 // pred_region
          %s156 = smul.u32 2, %s20
          %p157 = scmp.lt.s32.totalorder %s156, 1
          %s158 = scalar_select %p157, %s156, 1
          %s159 = scalar_lea.vmem %s2, %s158
          %s160 = smul.u32 2, %s20
        $region16: #{mrnet_attention_forward.10} parent=11 // pred_fallthru
          _
      $region12: #{mrnet_attention_forward.10} parent=5 // pred_fallthru
        _
      %p161 = scmp.lt.s32.totalorder %s9, 9
      // Predicated region
      $region17: #{mrnet_attention_forward.10} parent=5 // pred_check
        %p162 = pneg %p161
      $region18: #{mrnet_attention_forward.10} parent=5 // pred_check_branch
        %164 = sbr.rel (%p162) target = $region20
      $region19: #{mrnet_attention_forward.10} parent=5 // pred_region
        // Predicated region
        $region21: #{mrnet_attention_forward.10} parent=19 // pred_check
          %p165 = pneg %p50
        $region22: #{mrnet_attention_forward.10} parent=19 // pred_check_branch
          %167 = sbr.rel (%p165) target = $region24
        $region23: #{mrnet_attention_forward.10} parent=19 // pred_region
          %s168 = sand.u32 %s40, 1
          %s169 = sand.u32 %s40, 1
          %s170 = smul.addr %s169, 40
          %s171 = scalar_lea.vmem [#allocation3], %s170
          %s172 = smul.u32 5, %s16
          %s173 = smul.u32 2, %s18
          %s174 = smul.addr %s172, 18
          %s175 = sadd.s32 %s173, %s174
          %s176 = smul.addr %s175, 4
          %s177 = scalar_lea.vmem %s0, %s176
          // Predicated region
          $region25: #{mrnet_attention_forward.10} parent=23 // pred_check
            _
          $region26: #{mrnet_attention_forward.10} parent=23 // pred_check_branch
            %179 = sbr.rel (0) target = $region28
          $region27: #{mrnet_attention_forward.10} parent=23 // pred_region
            // Predicated region
            $region29: #{mrnet_attention_forward.10} parent=27 // pred_check
              _
            $region30: #{mrnet_attention_forward.10} parent=27 // pred_check_branch
              %181 = sbr.rel (0) target = $region32
            $region31: #{mrnet_attention_forward.10} parent=27 // pred_region
              // Predicated region
              $region44: #{mrnet_attention_forward.10} parent=31 // pred_check
                _
              $region45: #{mrnet_attention_forward.10} parent=31 // pred_check_branch
                %205 = sbr.rel (0) target = $region47
              $region46: #{mrnet_attention_forward.10} parent=31 // pred_region
                loop: start=0, step=1, limit=1
                $region48: #{mrnet_attention_forward.10} parent=46 // loop_pre_header
                  _
                $region49: #{mrnet_attention_forward.10} parent=46 // loop_header
                  %s207 = sphi 0, %s211
                  %p208 = scmp.ge.s32.totalorder %s207, 1
                  %s212 = sphi %s177, %s177
                  %s213 = sphi %s171, %s171
                $region50: #{mrnet_attention_forward.10} parent=46 // loop_header_branch
                  %210 = sbr.rel (%p208) target = $region54
                $region51: #{mrnet_attention_forward.10} parent=46 // loop_body
                  %v214 = vld [vmem:[%s212] sm:$0xff]
                  %215 = vst [vmem:[%s213] sm:$0xff] %v214
                  %v216 = vld [vmem:[%s212 + $0x48] sm:$0xff]
                  %217 = vst [vmem:[%s213 + $0x8] sm:$0xff] %v216
                  %v218 = vld [vmem:[%s212 + $0x90] sm:$0xff]
                  %219 = vst [vmem:[%s213 + $0x10] sm:$0xff] %v218
                  %v220 = vld [vmem:[%s212 + $0xd8] sm:$0xff]
                  %221 = vst [vmem:[%s213 + $0x18] sm:$0xff] %v220
                  %v222 = vld [vmem:[%s212 + $0x120] sm:$0xff]
                  %223 = vst [vmem:[%s213 + $0x20] sm:$0xff] %v222
                $region52: #{mrnet_attention_forward.10} parent=46 // loop_footer
                  %s211 = sadd.s32 1, %s207
                $region53: #{mrnet_attention_forward.10} parent=46 // loop_footer_branch
                  %206 = sbr.rel target = $region49
                $region54: #{mrnet_attention_forward.10} parent=46 // loop_exit
                  _
              $region47: #{mrnet_attention_forward.10} parent=31 // pred_fallthru
                _
              // Predicated region
              $region55: #{mrnet_attention_forward.10} parent=31 // pred_check
                _
              $region56: #{mrnet_attention_forward.10} parent=31 // pred_check_branch
                %225 = sbr.rel target = $region58
              $region57: #{mrnet_attention_forward.10} parent=31 // pred_region
                _
              $region58: #{mrnet_attention_forward.10} parent=31 // pred_fallthru
                _
            $region32: #{mrnet_attention_forward.10} parent=27 // pred_fallthru
              _
            // Predicated region
            $region33: #{mrnet_attention_forward.10} parent=27 // pred_check
              _
            $region34: #{mrnet_attention_forward.10} parent=27 // pred_check_branch
              %183 = sbr.rel target = $region36
            $region35: #{mrnet_attention_forward.10} parent=27 // pred_region
              %s185 = ssub.s32 256, 1
              loop: start=0, step=1, limit=1
              $region37: #{mrnet_attention_forward.10} parent=35 // loop_pre_header
                _
              $region38: #{mrnet_attention_forward.10} parent=35 // loop_header
                %s187 = sphi 0, %s191
                %p188 = scmp.ge.s32.totalorder %s187, 1
                %s192 = sphi %s177, %s177
                %s193 = sphi %s171, %s171
              $region39: #{mrnet_attention_forward.10} parent=35 // loop_header_branch
                %190 = sbr.rel (%p188) target = $region43
              $region40: #{mrnet_attention_forward.10} parent=35 // loop_body
                %v194 = vld [vmem:[%s192] sm:%s185]
                %195 = vst [vmem:[%s193] sm:%s185] %v194
                %v196 = vld [vmem:[%s192 + $0x48] sm:%s185]
                %197 = vst [vmem:[%s193 + $0x8] sm:%s185] %v196
                %v198 = vld [vmem:[%s192 + $0x90] sm:%s185]
                %199 = vst [vmem:[%s193 + $0x10] sm:%s185] %v198
                %v200 = vld [vmem:[%s192 + $0xd8] sm:%s185]
                %201 = vst [vmem:[%s193 + $0x18] sm:%s185] %v200
                %v202 = vld [vmem:[%s192 + $0x120] sm:%s185]
                %203 = vst [vmem:[%s193 + $0x20] sm:%s185] %v202
              $region41: #{mrnet_attention_forward.10} parent=35 // loop_footer
                %s191 = sadd.s32 1, %s187
              $region42: #{mrnet_attention_forward.10} parent=35 // loop_footer_branch
                %186 = sbr.rel target = $region38
              $region43: #{mrnet_attention_forward.10} parent=35 // loop_exit
                _
            $region36: #{mrnet_attention_forward.10} parent=27 // pred_fallthru
              _
          $region28: #{mrnet_attention_forward.10} parent=23 // pred_fallthru
            _
          %226 = vnop
        $region24: #{mrnet_attention_forward.10} parent=19 // pred_fallthru
          _
        // Predicated region
        $region59: #{mrnet_attention_forward.10} parent=19 // pred_check
          %p227 = pneg %p78
        $region60: #{mrnet_attention_forward.10} parent=19 // pred_check_branch
          %229 = sbr.rel (%p227) target = $region62
        $region61: #{mrnet_attention_forward.10} parent=19 // pred_region
          %s230 = smul.u32 32, %s18
          %s231 = smul.u32 2, %s17
          %p232 = scmp.lt.s32.totalorder %s230, 287
          %s233 = scalar_select %p232, %s230, 287
          %p234 = scmp.lt.s32.totalorder %s231, 1
          %s235 = scalar_select %p234, %s231, 1
          %s236 = smul.addr %s233, 2
          %s237 = sadd.s32 %s235, %s236
          %s238 = smul.addr %s237, 4
          %s239 = scalar_lea.vmem %s1, %s238
          %s240 = smul.u32 32, %s18
          %s241 = smul.u32 2, %s17
        $region62: #{mrnet_attention_forward.10} parent=19 // pred_fallthru
          _
      $region20: #{mrnet_attention_forward.10} parent=5 // pred_fallthru
        _
      %p242 = scmp.le.s32.totalorder 1, %s9
      %p243 = scmp.lt.s32.totalorder %s9, 10
      %p244 = pnand %p242, %p243
      %p245 = pneg %p244
      // Predicated region
      $region63: #{mrnet_attention_forward.10} parent=5 // pred_check
        _
      $region64: #{mrnet_attention_forward.10} parent=5 // pred_check_branch
        %247 = sbr.rel (%p244) target = $region66
      $region65: #{mrnet_attention_forward.10} parent=5 // pred_region
        %s248 = ssub.s32 %s9, 1
        %s249 = sand.u32 %s43, 1
        %s250 = sand.u32 %s43, 1
        %s251 = smul.addr %s250, 40
        %s252 = scalar_lea.vmem [#allocation3], %s251
        // Predicated region
        $region67: #{mrnet_attention_forward.10} parent=65 // pred_check
          %p253 = pneg %p56
        $region68: #{mrnet_attention_forward.10} parent=65 // pred_check_branch
          %255 = sbr.rel (%p253) target = $region70
        $region69: #{mrnet_attention_forward.10} parent=65 // pred_region
          _
        $region70: #{mrnet_attention_forward.10} parent=65 // pred_fallthru
          _
        %s256 = sand.u32 %s43, 1
        %s257 = sand.u32 %s43, 1
        %s258 = smul.addr %s257, 40
        %s259 = scalar_lea.vmem [#allocation3], %s258
        %p260 = pneg %p56
        %p261 = pneg %p53
        %s262 = smul.u32 32, %s21
        %s263 = smul.u32 2, %s20
        %p264 = scmp.lt.s32.totalorder %s262, 287
        %s265 = scalar_select %p264, %s262, 287
        %p266 = scmp.lt.s32.totalorder %s263, 1
        %s267 = scalar_select %p266, %s263, 1
        %s268 = smul.addr %s265, 2
        %s269 = sadd.s32 %s267, %s268
        %s270 = smul.addr %s269, 4
        %s271 = scalar_lea.vmem %s1, %s270
        %p272 = pneg %p84
        %p273 = pneg %p81
        %s274 = smul.u32 2, %s20
        %p275 = scmp.lt.s32.totalorder %s274, 1
        %s276 = scalar_select %p275, %s274, 1
        %s277 = scalar_lea.vmem %s2, %s276
        %p278 = pneg %p110
        %p279 = pneg %p107
        %p280 = pneg %p138
        %p281 = pneg %p135
        %s282 = smul.u32 5, %s19
        %s283 = smul.u32 2, %s20
        %p284 = scmp.lt.s32.totalorder %s282, 4
        %s285 = scalar_select %p284, %s282, 4
        %p286 = scmp.lt.s32.totalorder %s283, 1
        %s287 = scalar_select %p286, %s283, 1
        %s288 = smul.addr %s285, 2
        %s289 = sadd.s32 %s287, %s288
        %s290 = smul.addr %s289, 8
        %s291 = scalar_lea.vmem %s3, %s290
        %s292 = smul.u32 5, %s19
        %s293 = smul.u32 2, %s21
        %s294 = smul.u32 32, %s21
        %s295 = smul.u32 2, %s20
        %p296 = scmp.lt.s32.totalorder %s294, 287
        %s297 = scalar_select %p296, %s294, 287
        %p298 = scmp.lt.s32.totalorder %s295, 1
        %s299 = scalar_select %p298, %s295, 1
        %s300 = smul.addr %s297, 2
        %s301 = sadd.s32 %s299, %s300
        %s302 = smul.addr %s301, 4
        %s303 = scalar_lea.vmem %s1, %s302
        %s304 = smul.u32 32, %s21
        %s305 = smul.u32 2, %s20
        %s306 = smul.u32 2, %s20
        %p307 = scmp.lt.s32.totalorder %s306, 1
        %s308 = scalar_select %p307, %s306, 1
        %s309 = scalar_lea.vmem %s2, %s308
        %s310 = smul.u32 2, %s20
        %s311 = smul.u32 5, %s19
        %s312 = smul.u32 2, %s20
        %p313 = scmp.lt.s32.totalorder %s311, 4
        %s314 = scalar_select %p313, %s311, 4
        %p315 = scmp.lt.s32.totalorder %s312, 1
        %s316 = scalar_select %p315, %s312, 1
        %s317 = smul.addr %s314, 2
        %s318 = sadd.s32 %s316, %s317
        %s319 = smul.addr %s318, 8
        %s320 = scalar_lea.vmem %s3, %s319
        %s321 = smul.u32 5, %s19
        %s322 = smul.u32 2, %s20
        %p323 = scmp.eq.s32.totalorder %s21, 0
        // Predicated region
        $region71: #{mrnet_attention_forward.10} parent=65 // pred_check
          %p324 = pneg %p323
        $region72: #{mrnet_attention_forward.10} parent=65 // pred_check_branch
          %326 = sbr.rel (%p324) target = $region74
        $region73: #{mrnet_attention_forward.10} parent=65 // pred_region
          %327 = vst [vmem:[#allocation2] sm:$0xff] 0.0
          %328 = vst [vmem:[#allocation2 + $0x8] sm:$0xff] 0.0
          %329 = vst [vmem:[#allocation2 + $0x10] sm:$0xff] 0.0
          %330 = vst [vmem:[#allocation2 + $0x18] sm:$0xff] 0.0
          %331 = vst [vmem:[#allocation2 + $0x20] sm:$0xff] 0.0
          %332 = vst [vmem:[#allocation2 + $0x28] sm:$0xff] 0.0
          %333 = vst [vmem:[#allocation2 + $0x30] sm:$0xff] 0.0
          %334 = vst [vmem:[#allocation2 + $0x38] sm:$0xff] 0.0
          %335 = vst [vmem:[#allocation2 + $0x40] sm:$0xff] 0.0
          %336 = vst [vmem:[#allocation2 + $0x48] sm:$0xff] 0.0
        $region74: #{mrnet_attention_forward.10} parent=65 // pred_fallthru
          _
        %v337 = vld [vmem:[#allocation2] sm:$0xff]
        %v338 = vld [vmem:[#allocation2 + $0x8] sm:$0xff]
        %v339 = vld [vmem:[#allocation2 + $0x10] sm:$0xff]
        %v340 = vld [vmem:[#allocation2 + $0x18] sm:$0xff]
        %v341 = vld [vmem:[#allocation2 + $0x20] sm:$0xff]
        %v342 = vld [vmem:[#allocation2 + $0x28] sm:$0xff]
        %v343 = vld [vmem:[#allocation2 + $0x30] sm:$0xff]
        %v344 = vld [vmem:[#allocation2 + $0x38] sm:$0xff]
        %v345 = vld [vmem:[#allocation2 + $0x40] sm:$0xff]
        %v346 = vld [vmem:[#allocation2 + $0x48] sm:$0xff]
        %v347 = vld [vmem:[%s252] sm:$0xff]
        %v348 = vld [vmem:[%s252 + $0x8] sm:$0xff]
        %v349 = vld [vmem:[%s252 + $0x10] sm:$0xff]
        %v350 = vld [vmem:[%s252 + $0x18] sm:$0xff]
        %v351 = vld [vmem:[%s252 + $0x20] sm:$0xff]
        %v352 = vld [vmem:[%s303] sm:$0xff]
        %v353 = vld [vmem:[%s303 + $0x8] sm:$0xff]
        %v354 = vld [vmem:[%s303 + $0x10] sm:$0xff]
        %v355 = vld [vmem:[%s303 + $0x18] sm:$0xff]
        %v356 = vld [vmem:[%s303 + $0x20] sm:$0xff]
        %v357 = vld [vmem:[%s303 + $0x28] sm:$0xff]
        %v358 = vld [vmem:[%s303 + $0x30] sm:$0xff]
        %v359 = vld [vmem:[%s303 + $0x38] sm:$0xff]
        %v360 = vld [vmem:[%s303 + $0x40] sm:$0xff]
        %v361 = vld [vmem:[%s303 + $0x48] sm:$0xff]
        %v362 = vld [vmem:[%s303 + $0x50] sm:$0xff]
        %v363 = vld [vmem:[%s303 + $0x58] sm:$0xff]
        %v364 = vld [vmem:[%s303 + $0x60] sm:$0xff]
        %v365 = vld [vmem:[%s303 + $0x68] sm:$0xff]
        %v366 = vld [vmem:[%s303 + $0x70] sm:$0xff]
        %v367 = vld [vmem:[%s303 + $0x78] sm:$0xff]
        %v368 = vld [vmem:[%s303 + $0x80] sm:$0xff]
        %v369 = vld [vmem:[%s303 + $0x88] sm:$0xff]
        %v370 = vld [vmem:[%s303 + $0x90] sm:$0xff]
        %v371 = vld [vmem:[%s303 + $0x98] sm:$0xff]
        %v372 = vld [vmem:[%s303 + $0xa0] sm:$0xff]
        %v373 = vld [vmem:[%s303 + $0xa8] sm:$0xff]
        %v374 = vld [vmem:[%s303 + $0xb0] sm:$0xff]
        %v375 = vld [vmem:[%s303 + $0xb8] sm:$0xff]
        %v376 = vld [vmem:[%s303 + $0xc0] sm:$0xff]
        %v377 = vld [vmem:[%s303 + $0xc8] sm:$0xff]
        %v378 = vld [vmem:[%s303 + $0xd0] sm:$0xff]
        %v379 = vld [vmem:[%s303 + $0xd8] sm:$0xff]
        %v380 = vld [vmem:[%s303 + $0xe0] sm:$0xff]
        %v381 = vld [vmem:[%s303 + $0xe8] sm:$0xff]
        %v382 = vld [vmem:[%s303 + $0xf0] sm:$0xff]
        %v383 = vld [vmem:[%s303 + $0xf8] sm:$0xff]
        %v389 = vunpack.c.l.b16 %v347
        %v390 = vunpack.c.h.b16 %v347
        %v391 = vunpack.c.l.b16 %v348
        %v392 = vunpack.c.h.b16 %v348
        %v393 = vunpack.c.l.b16 %v349
        %v394 = vunpack.c.h.b16 %v349
        %v395 = vunpack.c.l.b16 %v350
        %v396 = vunpack.c.h.b16 %v350
        %v397 = vunpack.c.l.b16 %v351
        %v398 = vunpack.c.h.b16 %v351
        %v399 = vpack.c.b16 %v391, %v389
        %v400 = vpack.c.b16 %v392, %v390
        %v401 = vpack.c.b16 %v395, %v393
        %v402 = vpack.c.b16 %v396, %v394
        %v403 = vpack.c.b16 %v397, %v397
        %v404 = vpack.c.b16 %v398, %v398
        %v443 = vunpack.c.l.b16 %v352
        %v444 = vunpack.c.h.b16 %v352
        %v445 = vunpack.c.l.b16 %v353
        %v446 = vunpack.c.h.b16 %v353
        %v447 = vunpack.c.l.b16 %v354
        %v448 = vunpack.c.h.b16 %v354
        %v449 = vunpack.c.l.b16 %v355
        %v450 = vunpack.c.h.b16 %v355
        %v451 = vunpack.c.l.b16 %v356
        %v452 = vunpack.c.h.b16 %v356
        %v453 = vunpack.c.l.b16 %v357
        %v454 = vunpack.c.h.b16 %v357
        %v455 = vunpack.c.l.b16 %v358
        %v456 = vunpack.c.h.b16 %v358
        %v457 = vunpack.c.l.b16 %v359
        %v458 = vunpack.c.h.b16 %v359
        %v459 = vunpack.c.l.b16 %v360
        %v460 = vunpack.c.h.b16 %v360
        %v461 = vunpack.c.l.b16 %v361
        %v462 = vunpack.c.h.b16 %v361
        %v463 = vunpack.c.l.b16 %v362
        %v464 = vunpack.c.h.b16 %v362
        %v465 = vunpack.c.l.b16 %v363
        %v466 = vunpack.c.h.b16 %v363
        %v467 = vunpack.c.l.b16 %v364
        %v468 = vunpack.c.h.b16 %v364
        %v469 = vunpack.c.l.b16 %v365
        %v470 = vunpack.c.h.b16 %v365
        %v471 = vunpack.c.l.b16 %v366
        %v472 = vunpack.c.h.b16 %v366
        %v473 = vunpack.c.l.b16 %v367
        %v474 = vunpack.c.h.b16 %v367
        %v475 = vunpack.c.l.b16 %v368
        %v476 = vunpack.c.h.b16 %v368
        %v477 = vunpack.c.l.b16 %v369
        %v478 = vunpack.c.h.b16 %v369
        %v479 = vunpack.c.l.b16 %v370
        %v480 = vunpack.c.h.b16 %v370
        %v481 = vunpack.c.l.b16 %v371
        %v482 = vunpack.c.h.b16 %v371
        %v483 = vunpack.c.l.b16 %v372
        %v484 = vunpack.c.h.b16 %v372
        %v485 = vunpack.c.l.b16 %v373
        %v486 = vunpack.c.h.b16 %v373
        %v487 = vunpack.c.l.b16 %v374
        %v488 = vunpack.c.h.b16 %v374
        %v489 = vunpack.c.l.b16 %v375
        %v490 = vunpack.c.h.b16 %v375
        %v491 = vunpack.c.l.b16 %v376
        %v492 = vunpack.c.h.b16 %v376
        %v493 = vunpack.c.l.b16 %v377
        %v494 = vunpack.c.h.b16 %v377
        %v495 = vunpack.c.l.b16 %v378
        %v496 = vunpack.c.h.b16 %v378
        %v497 = vunpack.c.l.b16 %v379
        %v498 = vunpack.c.h.b16 %v379
        %v499 = vunpack.c.l.b16 %v380
        %v500 = vunpack.c.h.b16 %v380
        %v501 = vunpack.c.l.b16 %v381
        %v502 = vunpack.c.h.b16 %v381
        %v503 = vunpack.c.l.b16 %v382
        %v504 = vunpack.c.h.b16 %v382
        %v505 = vunpack.c.l.b16 %v383
        %v506 = vunpack.c.h.b16 %v383
        %v507 = vpack.c.b16 %v445, %v443
        %v508 = vpack.c.b16 %v446, %v444
        %v509 = vpack.c.b16 %v449, %v447
        %v510 = vpack.c.b16 %v450, %v448
        %v511 = vpack.c.b16 %v453, %v451
        %v512 = vpack.c.b16 %v454, %v452
        %v513 = vpack.c.b16 %v457, %v455
        %v514 = vpack.c.b16 %v458, %v456
        %v515 = vpack.c.b16 %v461, %v459
        %v516 = vpack.c.b16 %v462, %v460
        %v517 = vpack.c.b16 %v465, %v463
        %v518 = vpack.c.b16 %v466, %v464
        %v519 = vpack.c.b16 %v469, %v467
        %v520 = vpack.c.b16 %v470, %v468
        %v521 = vpack.c.b16 %v473, %v471
        %v522 = vpack.c.b16 %v474, %v472
        %v523 = vpack.c.b16 %v477, %v475
        %v524 = vpack.c.b16 %v478, %v476
        %v525 = vpack.c.b16 %v481, %v479
        %v526 = vpack.c.b16 %v482, %v480
        %v527 = vpack.c.b16 %v485, %v483
        %v528 = vpack.c.b16 %v486, %v484
        %v529 = vpack.c.b16 %v489, %v487
        %v530 = vpack.c.b16 %v490, %v488
        %v531 = vpack.c.b16 %v493, %v491
        %v532 = vpack.c.b16 %v494, %v492
        %v533 = vpack.c.b16 %v497, %v495
        %v534 = vpack.c.b16 %v498, %v496
        %v535 = vpack.c.b16 %v501, %v499
        %v536 = vpack.c.b16 %v502, %v500
        %v537 = vpack.c.b16 %v505, %v503
        %v538 = vpack.c.b16 %v506, %v504
        %571 = vmatpush.bf16.msra.mxu0 %v521
        %572 = vmatpush.bf16.msra.mxu0 %v519
        %573 = vmatpush.bf16.msra.mxu0 %v517
        %574 = vmatpush.bf16.msra.mxu0 %v515
        %575 = vmatpush.bf16.msra.mxu0 %v513
        %576 = vmatpush.bf16.msra.mxu0 %v511
        %577 = vmatpush.bf16.msra.mxu0 %v509
        %578 = vmatpush.bf16.msra.mxu0 %v507
        %579 = vmatmul.bf16.gmra.mxu0 %v399
        %v580 = vpop.f32.mrf.mxu0
        %v581 = vadd.f32 0.0, %v580
        %v582 = vpop.f32.mrf.mxu0
        %v583 = vadd.f32 0.0, %v582
        %584 = vmatmul.bf16.gmra.mxu0 %v401
        %v585 = vpop.f32.mrf.mxu0
        %v586 = vadd.f32 0.0, %v585
        %v587 = vpop.f32.mrf.mxu0
        %v588 = vadd.f32 0.0, %v587
        %589 = vmatmul.bf16.gmra.mxu0 %v403
        %v590 = vpop.f32.mrf.mxu0
        %v591 = vadd.f32 0.0, %v590
        %v592 = vpop.f32.mrf.mxu0
        %593 = vdwg.mxu0
        %594 = vmatpush.bf16.msra.mxu0 %v537
        %595 = vmatpush.bf16.msra.mxu0 %v535
        %596 = vmatpush.bf16.msra.mxu0 %v533
        %597 = vmatpush.bf16.msra.mxu0 %v531
        %598 = vmatpush.bf16.msra.mxu0 %v529
        %599 = vmatpush.bf16.msra.mxu0 %v527
        %600 = vmatpush.bf16.msra.mxu0 %v525
        %601 = vmatpush.bf16.msra.mxu0 %v523
        %602 = vmatmul.bf16.gmra.mxu0 %v400
        %v603 = vpop.f32.mrf.mxu0
        %v604 = vadd.f32 %v581, %v603
        %v605 = vpop.f32.mrf.mxu0
        %v606 = vadd.f32 %v583, %v605
        %607 = vmatmul.bf16.gmra.mxu0 %v402
        %v608 = vpop.f32.mrf.mxu0
        %v609 = vadd.f32 %v586, %v608
        %v610 = vpop.f32.mrf.mxu0
        %v611 = vadd.f32 %v588, %v610
        %612 = vmatmul.bf16.gmra.mxu0 %v404
        %v613 = vpop.f32.mrf.mxu0
        %v614 = vadd.f32 %v591, %v613
        %v615 = vpop.f32.mrf.mxu0
        %616 = vdwg.mxu0
        %617 = vmatpush.bf16.msra.mxu0 %v522
        %618 = vmatpush.bf16.msra.mxu0 %v520
        %619 = vmatpush.bf16.msra.mxu0 %v518
        %620 = vmatpush.bf16.msra.mxu0 %v516
        %621 = vmatpush.bf16.msra.mxu0 %v514
        %622 = vmatpush.bf16.msra.mxu0 %v512
        %623 = vmatpush.bf16.msra.mxu0 %v510
        %624 = vmatpush.bf16.msra.mxu0 %v508
        %625 = vmatmul.bf16.gmra.mxu0 %v399
        %v626 = vpop.f32.mrf.mxu0
        %v627 = vadd.f32 0.0, %v626
        %v628 = vpop.f32.mrf.mxu0
        %v629 = vadd.f32 0.0, %v628
        %630 = vmatmul.bf16.gmra.mxu0 %v401
        %v631 = vpop.f32.mrf.mxu0
        %v632 = vadd.f32 0.0, %v631
        %v633 = vpop.f32.mrf.mxu0
        %v634 = vadd.f32 0.0, %v633
        %635 = vmatmul.bf16.gmra.mxu0 %v403
        %v636 = vpop.f32.mrf.mxu0
        %v637 = vadd.f32 0.0, %v636
        %v638 = vpop.f32.mrf.mxu0
        %639 = vdwg.mxu0
        %640 = vmatpush.bf16.msra.mxu0 %v538
        %641 = vmatpush.bf16.msra.mxu0 %v536
        %642 = vmatpush.bf16.msra.mxu0 %v534
        %643 = vmatpush.bf16.msra.mxu0 %v532
        %644 = vmatpush.bf16.msra.mxu0 %v530
        %645 = vmatpush.bf16.msra.mxu0 %v528
        %646 = vmatpush.bf16.msra.mxu0 %v526
        %647 = vmatpush.bf16.msra.mxu0 %v524
        %648 = vmatmul.bf16.gmra.mxu0 %v400
        %v649 = vpop.f32.mrf.mxu0
        %v650 = vadd.f32 %v627, %v649
        %v651 = vpop.f32.mrf.mxu0
        %v652 = vadd.f32 %v629, %v651
        %653 = vmatmul.bf16.gmra.mxu0 %v402
        %v654 = vpop.f32.mrf.mxu0
        %v655 = vadd.f32 %v632, %v654
        %v656 = vpop.f32.mrf.mxu0
        %v657 = vadd.f32 %v634, %v656
        %658 = vmatmul.bf16.gmra.mxu0 %v404
        %v659 = vpop.f32.mrf.mxu0
        %v660 = vadd.f32 %v637, %v659
        %v661 = vpop.f32.mrf.mxu0
        %662 = vdwg.mxu0
        %v663 = vadd.f32 %v337, %v604
        %v664 = vadd.f32 %v338, %v650
        %v665 = vadd.f32 %v339, %v606
        %v666 = vadd.f32 %v340, %v652
        %v667 = vadd.f32 %v341, %v609
        %v668 = vadd.f32 %v342, %v655
        %v669 = vadd.f32 %v343, %v611
        %v670 = vadd.f32 %v344, %v657
        %v671 = vadd.f32 %v345, %v614
        %v672 = vadd.f32 %v346, %v660
        %673 = vst [vmem:[#allocation2] sm:$0xff] %v663
        %674 = vst [vmem:[#allocation2 + $0x8] sm:$0xff] %v664
        %675 = vst [vmem:[#allocation2 + $0x10] sm:$0xff] %v665
        %676 = vst [vmem:[#allocation2 + $0x18] sm:$0xff] %v666
        %677 = vst [vmem:[#allocation2 + $0x20] sm:$0xff] %v667
        %678 = vst [vmem:[#allocation2 + $0x28] sm:$0xff] %v668
        %679 = vst [vmem:[#allocation2 + $0x30] sm:$0xff] %v669
        %680 = vst [vmem:[#allocation2 + $0x38] sm:$0xff] %v670
        %681 = vst [vmem:[#allocation2 + $0x40] sm:$0xff] %v671
        %682 = vst [vmem:[#allocation2 + $0x48] sm:$0xff] %v672
        %p683 = scmp.eq.s32.totalorder %s21, 8
        // Predicated region
        $region75: #{mrnet_attention_forward.10} parent=65 // pred_check
          %p684 = pneg %p683
        $region76: #{mrnet_attention_forward.10} parent=65 // pred_check_branch
          %686 = sbr.rel (%p684) target = $region78
        $region77: #{mrnet_attention_forward.10} parent=65 // pred_region
          %v687 = vld [vmem:[#allocation2] sm:$0xff]
          %v688 = vld [vmem:[#allocation2 + $0x8] sm:$0xff]
          %v689 = vld [vmem:[#allocation2 + $0x10] sm:$0xff]
          %v690 = vld [vmem:[#allocation2 + $0x18] sm:$0xff]
          %v691 = vld [vmem:[#allocation2 + $0x20] sm:$0xff]
          %v692 = vld [vmem:[#allocation2 + $0x28] sm:$0xff]
          %v693 = vld [vmem:[#allocation2 + $0x30] sm:$0xff]
          %v694 = vld [vmem:[#allocation2 + $0x38] sm:$0xff]
          %v695 = vld [vmem:[#allocation2 + $0x40] sm:$0xff]
          %v696 = vld [vmem:[#allocation2 + $0x48] sm:$0xff]
          %v697 = vld [vmem:[%s309] sm:$0x3]
          %v699 = vperm.slane %v697, 0
          %v700 = vperm.slane %v697, 1
          %v703 = vadd.f32 %v687, %v699
          %v704 = vadd.f32 %v688, %v700
          %v705 = vadd.f32 %v689, %v699
          %v706 = vadd.f32 %v690, %v700
          %v707 = vadd.f32 %v691, %v699
          %v708 = vadd.f32 %v692, %v700
          %v709 = vadd.f32 %v693, %v699
          %v710 = vadd.f32 %v694, %v700
          %v711 = vadd.f32 %v695, %v699
          %v712 = vadd.f32 %v696, %v700
          %v713 = vmax.f32 %v703, 0.0
          %v714 = vmax.f32 %v704, 0.0
          %v715 = vmax.f32 %v705, 0.0
          %v716 = vmax.f32 %v706, 0.0
          %v717 = vmax.f32 %v707, 0.0
          %v718 = vmax.f32 %v708, 0.0
          %v719 = vmax.f32 %v709, 0.0
          %v720 = vmax.f32 %v710, 0.0
          %v721 = vmax.f32 %v711, 0.0
          %v722 = vmax.f32 %v712, 0.0
          %723 = vst [vmem:[%s320] sm:$0xff] %v713
          %724 = vst [vmem:[%s320 + $0x8] sm:$0xff] %v714
          %725 = vst [vmem:[%s320 + $0x10] sm:$0xff] %v715
          %726 = vst [vmem:[%s320 + $0x18] sm:$0xff] %v716
          %727 = vst [vmem:[%s320 + $0x20] sm:$0xff] %v717
          %728 = vst [vmem:[%s320 + $0x28] sm:$0xff] %v718
          %729 = vst [vmem:[%s320 + $0x30] sm:$0xff] %v719
          %730 = vst [vmem:[%s320 + $0x38] sm:$0xff] %v720
          %731 = vst [vmem:[%s320 + $0x40] sm:$0xff] %v721
          %732 = vst [vmem:[%s320 + $0x48] sm:$0xff] %v722
        $region78: #{mrnet_attention_forward.10} parent=65 // pred_fallthru
          _
        %s733 = smul.u32 5, %s19
        %s734 = smul.u32 2, %s20
        %p735 = scmp.lt.s32.totalorder %s733, 4
        %s736 = scalar_select %p735, %s733, 4
        %p737 = scmp.lt.s32.totalorder %s734, 1
        %s738 = scalar_select %p737, %s734, 1
        %s739 = smul.addr %s736, 2
        %s740 = sadd.s32 %s738, %s739
        %s741 = smul.addr %s740, 8
        %s742 = scalar_lea.vmem %s3, %s741
        // Predicated region
        $region79: #{mrnet_attention_forward.10} parent=65 // pred_check
          %p743 = pneg %p135
        $region80: #{mrnet_attention_forward.10} parent=65 // pred_check_branch
          %745 = sbr.rel (%p743) target = $region82
        $region81: #{mrnet_attention_forward.10} parent=65 // pred_region
          %s746 = smul.u32 5, %s19
          %s747 = smul.u32 2, %s20
        $region82: #{mrnet_attention_forward.10} parent=65 // pred_fallthru
          _
        // Predicated region
        $region83: #{mrnet_attention_forward.10} parent=65 // pred_check
          %p748 = pneg %p135
        $region84: #{mrnet_attention_forward.10} parent=65 // pred_check_branch
          %750 = sbr.rel (%p748) target = $region86
        $region85: #{mrnet_attention_forward.10} parent=65 // pred_region
          %s751 = smul.u32 5, %s19
          %s752 = smul.u32 2, %s20
          %p753 = scmp.lt.s32.totalorder %s751, 4
          %s754 = scalar_select %p753, %s751, 4
          %p755 = scmp.lt.s32.totalorder %s752, 1
          %s756 = scalar_select %p755, %s752, 1
          %s757 = smul.addr %s754, 2
          %s758 = sadd.s32 %s756, %s757
          %s759 = smul.addr %s758, 8
          %s760 = scalar_lea.vmem %s3, %s759
        $region86: #{mrnet_attention_forward.10} parent=65 // pred_fallthru
          _
      $region66: #{mrnet_attention_forward.10} parent=5 // pred_fallthru
        _
      %p761 = scmp.le.s32.totalorder 2, %s9
      // Predicated region
      $region87: #{mrnet_attention_forward.10} parent=5 // pred_check
        %p762 = pneg %p761
      $region88: #{mrnet_attention_forward.10} parent=5 // pred_check_branch
        %764 = sbr.rel (%p762) target = $region90
      $region89: #{mrnet_attention_forward.10} parent=5 // pred_region
        %s765 = ssub.s32 %s9, 2
      $region90: #{mrnet_attention_forward.10} parent=5 // pred_fallthru
        _
    $region6: #{mrnet_attention_forward.10} parent=1 // loop_footer
      %s13 = sadd.s32 1, %s9
    $region7: #{mrnet_attention_forward.10} parent=1 // loop_footer_branch
      %8 = sbr.rel target = $region3
    $region8: #{mrnet_attention_forward.10} parent=1 // loop_exit
      _

// kernel: mrnet_attention_forward.11
$region0: #{mrnet_attention_forward.11}
  #allocation0 [shape = 'u32[]', space=smem, size = 0x4, offset = 0x4, fixed_abs, tag = 'smem constant byte address 0x4 - core index']
  #allocation1 [shape = 'u32[72,128]{1,0:T(1,128)}', space=vmem, size = 0x9000, scoped, tag = 'internal scratch']
  #allocation2 [shape = 'f32[1,1]{1,0:T(1,128)S(1)}', space=vmem, size = 0x200, scoped, tag = 'scoped memory for mrnet_attention_forward.11']
  #allocation3 [shape = 'f32[1,1]{1,0:T(1,128)S(1)}', space=vmem, size = 0x200, scoped, tag = 'scoped memory for mrnet_attention_forward.11']
  %s0 = inlined_call_operand.vmem [shape: f32[4,256], index: 0, kind: input, shape index: {}]
  %s1 = inlined_call_operand.vmem [shape: f32[1,256], index: 1, kind: input, shape index: {}]
  %s2 = inlined_call_operand.<no memory space> [shape: f32[1,1], index: 2, kind: input, shape index: {}]
  %s3 = inlined_call_operand.vmem [shape: f32[1,256], index: 3, kind: input, shape index: {}]
  %s4 = inlined_call_operand.<no memory space> [shape: f32[1,1], index: 4, kind: input, shape index: {}]
  %s5 = inlined_call_operand.hbm [shape: f32[1,1], index: 5, kind: output, shape index: {}]
  %s6 = sld [smem:[#allocation0]]
  $region30: #{mrnet_attention_forward.11} parent=0
    _
  %s8 = ssub.s32 1, %s6
  %s9 = scalar_select 0, %s8, %s6
  %v10 = vstv %s2
  %11 = vst [vmem:[#allocation2] sm:$0x1] %v10
  %v12 = vstv %s4
  %13 = vst [vmem:[#allocation3] sm:$0x1] %v12
  $region1: #{mrnet_attention_forward.11} parent=0
    #allocation4 [shape = 'u8[512]{0}', space=vmem, size = 0x400, scoped, tag = 'output window, operand 0, single buffered']
    #allocation5 [shape = 's32[1]{0}', space=sflag, size = 0x4, scoped, tag = 'scoped memory for mrnet_attention_forward.11']
    %14 = vsyncpa [#allocation5], 0
    // Predicated region
    $region2: #{mrnet_attention_forward.11} parent=1 // pred_check
      _
    $region3: #{mrnet_attention_forward.11} parent=1 // pred_check_branch
      %16 = sbr.rel (0) target = $region5
    $region4: #{mrnet_attention_forward.11} parent=1 // pred_region
      _
    $region5: #{mrnet_attention_forward.11} parent=1 // pred_fallthru
      _
    // Predicated region
    $region6: #{mrnet_attention_forward.11} parent=1 // pred_check
      _
    $region7: #{mrnet_attention_forward.11} parent=1 // pred_check_branch
      %18 = sbr.rel (0) target = $region9
    $region8: #{mrnet_attention_forward.11} parent=1 // pred_region
      _
    $region9: #{mrnet_attention_forward.11} parent=1 // pred_fallthru
      _
    // Predicated region
    $region10: #{mrnet_attention_forward.11} parent=1 // pred_check
      _
    $region11: #{mrnet_attention_forward.11} parent=1 // pred_check_branch
      %20 = sbr.rel (0) target = $region13
    $region12: #{mrnet_attention_forward.11} parent=1 // pred_region
      _
    $region13: #{mrnet_attention_forward.11} parent=1 // pred_fallthru
      _
    // Predicated region
    $region14: #{mrnet_attention_forward.11} parent=1 // pred_check
      _
    $region15: #{mrnet_attention_forward.11} parent=1 // pred_check_branch
      %22 = sbr.rel (0) target = $region17
    $region16: #{mrnet_attention_forward.11} parent=1 // pred_region
      _
    $region17: #{mrnet_attention_forward.11} parent=1 // pred_fallthru
      _
    // Predicated region
    $region18: #{mrnet_attention_forward.11} parent=1 // pred_check
      _
    $region19: #{mrnet_attention_forward.11} parent=1 // pred_check_branch
      %24 = sbr.rel (0) target = $region21
    $region20: #{mrnet_attention_forward.11} parent=1 // pred_region
      _
    $region21: #{mrnet_attention_forward.11} parent=1 // pred_fallthru
      _
    %v25 = vld [vmem:[%s0] sm:$0xff]
    %v26 = vld [vmem:[%s1] sm:$0x3]
    %v28 = vperm.slane %v26, 0
    %v29 = vperm.slane %v26, 1
    %v30 = vrot.slane %v29, 4
    %vm31 = vcmask 1043456
    %v32 = vsel %vm31, %v28, %v30
    %v34 = vmul.f32 %v25, %v32
    %36 = vst [vmem:[#allocation1] ss:$2 sm:$0xff] %v34
    %v37 = vld.sshfl [vmem:[#allocation1] sm:$0xff pattern:$0x75316420]
    %v38 = vld.sshfl [vmem:[#allocation1 + $0x8] sm:$0xff pattern:$0x75316420]
    %v41 = vsel %vm31, %v37, 0.0
    %v42 = vsel %vm31, %v38, 0.0
    %v43 = vadd.f32 %v41, %v42
    %44 = vadd.xlane.f32.xlu0 %v43
    %v45 = vpop.xlane.xlu0 %44
    %v46 = vld [vmem:[#allocation2] sm:$0x1]
    %v48 = vperm.slane %v46, 0
    %v50 = vadd.f32 %v45, %v48
    %vm51 = vcmask 3072
    %v52 = vsel %vm51, %v50, -inf
    %v53 = vrot.slane %v52, 4
    %v54 = vmax.f32 %v52, %v53
    %v55 = vrot.slane %v54, 2
    %v56 = vmax.f32 %v54, %v55
    %v57 = vrot.slane %v56, 1
    %v58 = vmax.f32 %v56, %v57
    %v59 = vsub.f32 %v50, %v58
    %v60 = vmul.f32 %v59, 1.442695
    %v61 = vpow.pop %v60
    %v62 = vsel %vm51, %v61, 0.0
    %v63 = vrot.slane %v62, 4
    %v64 = vadd.f32 %v62, %v63
    %v65 = vrot.slane %v64, 2
    %v66 = vadd.f32 %v64, %v65
    %v67 = vrot.slane %v66, 1
    %v68 = vadd.f32 %v66, %v67
    %v69 = vrcp.pop %v68
    %v70 = vmul.f32 %v68, %v69
    %v71 = vsub.f32 1.0, %v70
    %v72 = vmul.f32 %v69, %v71
    %v73 = vadd.f32 %v69, %v72
    %vm74 = vweird.f32 %v68
    %vm75 = vweird.f32 %v69
    %vm76 = vmor %vm74, %vm75
    %v77 = vsel %vm76, %v69, %v73
    %v78 = vand.u32 2147483647, %v68
    %vm79 = vcmp.eq.f32.partialorder %v78, 8.507059e+37
    %v80 = vand.u32 %v68, 2147483648
    %v81 = vor.u32 1.1754944e-38, %v80
    %v82 = vsel %vm79, %v81, %v77
    %v83 = vmul.f32 %v61, %v82
    %85 = vset.pattern.permute.xlu0 0
    %86 = vperm.xlu0 %85, %v83
    %v87 = vpop.permute.xlu0 %86
    %90 = vst [vmem:[#allocation1] ss:$2 sm:$0xff] %v25
    %v91 = vld.sshfl [vmem:[#allocation1] sm:$0xff pattern:$0x75316420]
    %v92 = vld.sshfl [vmem:[#allocation1 + $0x8] sm:$0xff pattern:$0x75316420]
    %v95 = vmul.f32 %v87, %v91
    %v96 = vmul.f32 %v87, %v92
    %v97 = vsel %vm31, %v95, 0.0
    %v98 = vrot.slane %v97, 4
    %v99 = vadd.f32 %v97, %v98
    %v100 = vrot.slane %v99, 2
    %v101 = vadd.f32 %v99, %v100
    %v102 = vrot.slane %v101, 1
    %v103 = vadd.f32 %v101, %v102
    %v104 = vsel %vm31, %v96, 0.0
    %v105 = vrot.slane %v104, 4
    %v106 = vadd.f32 %v104, %v105
    %v107 = vrot.slane %v106, 2
    %v108 = vadd.f32 %v106, %v107
    %v109 = vrot.slane %v108, 1
    %v110 = vadd.f32 %v108, %v109
    %v111 = vld [vmem:[%s3] sm:$0x3]
    %v113 = vperm.slane %v111, 0
    %v114 = vperm.slane %v111, 1
    %v117 = vmul.f32 %v103, %v113
    %v118 = vmul.f32 %v110, %v114
    %vm119 = vcmask 1040384
    %v120 = vsel %vm119, %v117, 0.0
    %v121 = vsel %vm119, %v118, 0.0
    %v122 = vadd.f32 %v120, %v121
    %123 = vadd.xlane.f32.xlu0 %v122
    %v124 = vpop.xlane.xlu0 %123
    %v125 = vld [vmem:[#allocation3] sm:$0x1]
    %v126 = vadd.f32 %v124, %v125
    %vm127 = vcmask 0
    %128 = vst.msk [vmem:[#allocation4] sm:$0x1] %vm127, %v126
    // Predicated region
    $region22: #{mrnet_attention_forward.11} parent=1 // pred_check
      _
    $region23: #{mrnet_attention_forward.11} parent=1 // pred_check_branch
      %130 = sbr.rel (0) target = $region25
    $region24: #{mrnet_attention_forward.11} parent=1 // pred_region
      %132 = vsyncadd [#allocation5], 0
      %s134 = sshll.u32 [#allocation4], 4
      %s135 = int_to_ptr.vmem [resolvable:$true] %s134
      %s136 = sshll.u32 %s5, 4
      %s137 = int_to_ptr.hbm [resolvable:$true] %s136
      %139 = dma.vmem_to_hbm [thread:$0]  %s135, 16, %s137, [#allocation5]
    $region25: #{mrnet_attention_forward.11} parent=1 // pred_fallthru
      _
    // Predicated region
    $region26: #{mrnet_attention_forward.11} parent=1 // pred_check
      _
    $region27: #{mrnet_attention_forward.11} parent=1 // pred_check_branch
      %141 = sbr.rel (0) target = $region29
    $region28: #{mrnet_attention_forward.11} parent=1 // pred_region
      %143 = dma.done [#allocation5], 16
    $region29: #{mrnet_attention_forward.11} parent=1 // pred_fallthru
      _
    %144 = vsyncpa [#allocation5], 1

</llo_original>
